<compile_context>
chip_gen: v7x
topology: tpu7x:2x2x1
jax: 0.10.0
libtpu: 0.0.40
codegen_flags: <defaults>
</compile_context>

<pallas_src>
import functools

import jax
import jax.numpy as jnp
from jax.experimental import pallas as pl
from jax.experimental.pallas import tpu as pltpu


def _round_up(x, m):
    return ((x + m - 1) // m) * m


# ----------------------------------------------------------------------------
# Fused kernel: 2-layer BiLSTM + hidden2tag, everything VMEM-resident.
#
# Gate-major column layout (8H columns):
#   [ i_f | i_b | f_f | f_b | o_f | o_b | g_f | g_b ]
# so sigmoid-activated gates occupy the first 6H columns contiguously.
# ----------------------------------------------------------------------------
def _tagger_kernel(
    x_ref,          # (T*BP, D0) f32  time-major embeddings, batch padded to BP
    wih0f_ref,      # (D0, 8H)  bf16  layer0 fwd W_ih^T in _f gate-major cols (zeros in _b)
    wih0b_ref,      # (D0, 8H)  bf16  layer0 bwd W_ih^T in _b gate-major cols
    whh0_ref,       # (2H, 8H)  bf16  layer0 block-diag [W_hh_f | W_hh_b] gate-major
    b0_ref,         # (1, 8H)   f32   layer0 (b_ih+b_hh) both directions, gate-major
    wih1nf_ref,     # (H, 8H)   bf16  layer1 fwd W_ih^T rows hit by nat-fwd acts
    wih1nb_ref,     # (H, 8H)   bf16  layer1 fwd W_ih^T rows hit by nat-bwd acts
    wih1rf_ref,     # (H, 8H)   bf16  layer1 bwd W_ih^T rows hit by rev-fwd acts
    wih1rb_ref,     # (H, 8H)   bf16  layer1 bwd W_ih^T rows hit by rev-bwd acts
    whh1_ref,       # (2H, 8H)  bf16
    b1_ref,         # (1, 8H)   f32
    wtagf_ref,      # (H, VPAD) bf16  hidden2tag.weight^T rows for fwd half (lane-padded)
    wtagb_ref,      # (H, VPAD) bf16  hidden2tag.weight^T rows for bwd half
    btag_ref,       # (1, VPAD) f32
    out_ref,        # (T*BP, VPAD) f32  padded logits (lane-dense)
    xrev_scr,       # (T*BP, D0) f32   time-reversed input (for the bwd projection)
    xp_scr,         # (T*BP, 8H) f32   hoisted, time-shifted gate pre-activations
    anf_scr,        # (T*BP, H)  f32   natural-time fwd hidden states (reused by layer 1)
    anb_scr,        # (T*BP, H)  f32   natural-time bwd hidden states (reused by layer 1)
    arf_scr,        # (T*BP, H)  f32   time-reversed fwd hidden states (layer 0 only)
    arb_scr,        # (T*BP, H)  f32   time-reversed bwd hidden states (layer 0 only)
    h_scr,          # (BP, 2H)   f32   merged [h_f | h_b] recurrent state
    c_scr,          # (BP, 2H)   f32   merged [c_f | c_b] recurrent state
):
    H = anf_scr.shape[1]
    H2, H6, H8 = 2 * H, 6 * H, 8 * H
    BP = h_scr.shape[0]
    T = xp_scr.shape[0] // BP
    bf16 = jnp.bfloat16
    unroll = True if T <= 16 else 8   # full unroll only for short sequences

    def bdot(a, w):
        # bf16 MXU operands, f32 accumulation (element-wise math stays f32).
        return jnp.dot(a.astype(bf16), w, preferred_element_type=jnp.float32)

    # ---- one-time, off-critical-path time reversal of the layer-0 input so the
    #      backward-direction hoisted projection lands in already-shifted rows.
    def rev_body(t, carry):
        rs = pl.multiple_of(t * BP, BP)
        rd = pl.multiple_of((T - 1 - t) * BP, BP)
        xrev_scr[pl.ds(rd, BP), :] = x_ref[pl.ds(rs, BP), :]
        return carry

    jax.lax.fori_loop(0, T, rev_body, 0, unroll=unroll)

    def run_layer(whh_ref, write_rev):
        # zero initial state (matches nn.LSTM default)
        h_scr[...] = jnp.zeros_like(h_scr)
        c_scr[...] = jnp.zeros_like(c_scr)
        whh = whh_ref[...]   # hoist the (2H, 8H) bf16 weight out of the loop

        def step(t, carry):
            rf = pl.multiple_of(t * BP, BP)              # forward timestep rows
            rb = pl.multiple_of((T - 1 - t) * BP, BP)    # backward timestep rows
            # xp row t already holds fwd(t) projections in the _f columns and
            # bwd(T-1-t) projections in the _b columns -> one contiguous read,
            # one MXU matmul for the merged recurrent update.
            gates = xp_scr[pl.ds(rf, BP), :] + bdot(h_scr[...], whh)
            sg = jax.nn.sigmoid(gates[:, 0:H6])          # [i_f i_b f_f f_b o_f o_b]
            gg = jnp.tanh(gates[:, H6:H8])               # [g_f g_b]
            c_new = sg[:, H2:2 * H2] * c_scr[...] + sg[:, 0:H2] * gg
            h_new = sg[:, 2 * H2:3 * H2] * jnp.tanh(c_new)
            c_scr[...] = c_new
            h_scr[...] = h_new
            anf_scr[pl.ds(rf, BP), :] = h_new[:, 0:H]    # fwd output at time t
            anb_scr[pl.ds(rb, BP), :] = h_new[:, H:H2]   # bwd output at time T-1-t
            if write_rev:  # also build the time-reversed copy for the next layer
                arf_scr[pl.ds(rb, BP), :] = h_new[:, 0:H]
                arb_scr[pl.ds(rf, BP), :] = h_new[:, H:H2]
            return carry

        jax.lax.fori_loop(0, T, step, 0, unroll=unroll)

    # ---- layer 0: hoisted, time-shifted input projection (both directions) ----
    xp_scr[...] = (bdot(x_ref[...], wih0f_ref[...])
                   + bdot(xrev_scr[...], wih0b_ref[...])
                   + b0_ref[...])
    run_layer(whh0_ref, write_rev=True)

    # ---- layer 1: input projection from layer-0 activations (split weights,
    #      no concatenate; rev buffers provide the time-shifted bwd columns) ----
    xp_scr[...] = (bdot(anf_scr[...], wih1nf_ref[...])
                   + bdot(anb_scr[...], wih1nb_ref[...])
                   + bdot(arf_scr[...], wih1rf_ref[...])
                   + bdot(arb_scr[...], wih1rb_ref[...])
                   + b1_ref[...])
    run_layer(whh1_ref, write_rev=False)   # overwrites anf/anb with layer-1 acts

    # ---- fused hidden2tag epilogue, lane-dense padded logits ----
    out_ref[...] = (bdot(anf_scr[...], wtagf_ref[...])
                    + bdot(anb_scr[...], wtagb_ref[...])
                    + btag_ref[...])


def _run_tagger_kernel(x_flat, kp, T, BP):
    H = kp["wtag_f"].shape[0]
    VPAD = kp["b_tag"].shape[1]
    D0 = x_flat.shape[1]
    rows = T * BP

    # Explicit VMEM budget (scratch + IO + weights), with headroom; never below
    # the 16 MiB scoped default, capped well under the v7x 64 MiB physical limit.
    scratch_b = 4 * (rows * (D0 + 8 * H + 4 * H) + 2 * BP * 2 * H)
    io_b = 4 * rows * (D0 + VPAD)
    w_b = 2 * (2 * D0 * 8 * H + 2 * (2 * H) * 8 * H + 4 * H * 8 * H + 2 * H * VPAD) \
        + 4 * (2 * 8 * H + VPAD)
    vmem_limit = int(min(48 << 20, max(16 << 20, 2 * (scratch_b + io_b + w_b))))

    # TODO(synk): v7x has 2 TensorCores; a batch grid with dimension_semantics=
    # ("parallel",) would use both, but it is pointless at the toy B=2 used here.
    # TODO(synk): pltpu.matmul_push_rhs weight staging across the time loop is
    # skipped in favour of portable jnp.dot.
    return pl.pallas_call(
        _tagger_kernel,
        out_shape=jax.ShapeDtypeStruct((rows, VPAD), jnp.float32),
        scratch_shapes=[
            pltpu.VMEM((rows, D0), jnp.float32),       # xrev
            pltpu.VMEM((rows, 8 * H), jnp.float32),    # xp (time-shifted gates)
            pltpu.VMEM((rows, H), jnp.float32),        # act nat fwd
            pltpu.VMEM((rows, H), jnp.float32),        # act nat bwd
            pltpu.VMEM((rows, H), jnp.float32),        # act rev fwd
            pltpu.VMEM((rows, H), jnp.float32),        # act rev bwd
            pltpu.VMEM((BP, 2 * H), jnp.float32),      # h [fwd|bwd]
            pltpu.VMEM((BP, 2 * H), jnp.float32),      # c [fwd|bwd]
        ],
        compiler_params=pltpu.CompilerParams(vmem_limit_bytes=vmem_limit),
    )(x_flat,
      kp["wih0_f"], kp["wih0_b"], kp["whh0"], kp["b0"],
      kp["wih1_nf"], kp["wih1_nb"], kp["wih1_rf"], kp["wih1_rb"],
      kp["whh1"], kp["b1"],
      kp["wtag_f"], kp["wtag_b"], kp["b_tag"])


# ----------------------------------------------------------------------------
# Forward: embedding gather + minimal layout glue in JAX, everything else fused.
# ----------------------------------------------------------------------------
# TODO(synk): embedding gathers stay as XLA glue; an in-kernel DMA gather is not
# worthwhile at these sizes.
@functools.partial(jax.jit, static_argnames=("label_vocab",))
def lstm_tagger_forward(kp, tokens, labels, *, label_vocab):
    B, T = tokens.shape
    # Gather directly in time-major order (transpose the tiny int index arrays
    # instead of the embedded tensor).
    emb = jnp.concatenate(
        [kp["emb_tokens"][tokens.T], kp["emb_labels"][labels.T]], axis=-1)  # (T,B,2E)
    BP = _round_up(B, 8)                                                    # sublane-align batch
    x = jnp.pad(emb.astype(jnp.float32), ((0, 0), (0, BP - B), (0, 0)))
    x_flat = x.reshape(T * BP, x.shape[-1])

    logits_flat = _run_tagger_kernel(x_flat, kp, T, BP)                     # (T*BP, VPAD)
    logits = logits_flat.reshape(T, BP, -1)[:, :B, :label_vocab]
    return jnp.transpose(logits, (1, 0, 2))                                 # (B, T, V)


# ----------------------------------------------------------------------------
# Parameters: raw (PyTorch-shaped) init + packing into the fused kernel layout.
# ----------------------------------------------------------------------------
def init_raw_params(key, token_vocab, label_vocab, emb_dim, hidden, n_layers,
                    bidi=True):
    assert bidi and n_layers == 2, "fused kernel targets the module defaults"
    scale = 1.0 / jnp.sqrt(hidden)

    def u(k, shape):
        return jax.random.uniform(k, shape, jnp.float32, -scale, scale)

    keys = jax.random.split(key, 2 + n_layers * 2 * 4 + 2)
    ki = iter(keys)
    emb_tokens = jax.random.normal(next(ki), (token_vocab, emb_dim),
                                   jnp.float32).at[0].set(0.0)  # padding_idx=0
    emb_labels = jax.random.normal(next(ki), (label_vocab, emb_dim),
                                   jnp.float32).at[0].set(0.0)  # padding_idx=0

    lstm_in = 2 * emb_dim
    layers = []
    for l in range(n_layers):
        d_in = lstm_in if l == 0 else 2 * hidden
        layer = {}
        for tag in ("f", "b"):
            layer[f"w_ih_{tag}"] = u(next(ki), (4 * hidden, d_in))
            layer[f"w_hh_{tag}"] = u(next(ki), (4 * hidden, hidden))
            layer[f"b_ih_{tag}"] = u(next(ki), (4 * hidden,))
            layer[f"b_hh_{tag}"] = u(next(ki), (4 * hidden,))
        layers.append(layer)

    w_tag = u(next(ki), (label_vocab, 2 * hidden))   # hidden2tag.weight
    b_tag = u(next(ki), (label_vocab,))              # hidden2tag.bias
    return dict(emb_tokens=emb_tokens, emb_labels=emb_labels,
                layers=layers, w_tag=w_tag, b_tag=b_tag)


def _gate_major_cols(w_t, direction, H):
    """w_t: (d_in, 4H) = W^T with PyTorch gate order [i|f|g|o] along columns.
    Scatter this direction's gates into the gate-major-across-directions layout
    [i_f i_b f_f f_b o_f o_b g_f g_b]; zeros in the other direction's columns."""
    i, f, g, o = w_t[:, 0:H], w_t[:, H:2 * H], w_t[:, 2 * H:3 * H], w_t[:, 3 * H:4 * H]
    z = jnp.zeros_like(i)
    blocks = (i, z, f, z, o, z, g, z) if direction == "f" else (z, i, z, f, z, o, z, g)
    return jnp.concatenate(blocks, axis=1)           # (d_in, 8H)


def _gate_major_bias(layer, H):
    def split(b):
        return b[0:H], b[H:2 * H], b[2 * H:3 * H], b[3 * H:4 * H]  # i, f, g, o
    i_f, f_f, g_f, o_f = [a + b for a, b in zip(split(layer["b_ih_f"]), split(layer["b_hh_f"]))]
    i_b, f_b, g_b, o_b = [a + b for a, b in zip(split(layer["b_ih_b"]), split(layer["b_hh_b"]))]
    return jnp.concatenate([i_f, i_b, f_f, f_b, o_f, o_b, g_f, g_b]).reshape(1, 8 * H)


def pack_kernel_params(raw, hidden, label_vocab):
    H = hidden
    l0, l1 = raw["layers"]
    VPAD = _round_up(label_vocab, 128)   # lane-dense logits
    bf16 = jnp.bfloat16

    def whh_bd(layer):
        # (2H, 8H) block-diagonal: rows 0:H (h_f) feed _f cols, rows H:2H feed _b cols
        return jnp.concatenate(
            [_gate_major_cols(layer["w_hh_f"].T, "f", H),
             _gate_major_cols(layer["w_hh_b"].T, "b", H)], axis=0).astype(bf16)

    wih1_f_t = l1["w_ih_f"].T   # (2H, 4H): input rows = [fwd half | bwd half] of layer-0 out
    wih1_b_t = l1["w_ih_b"].T
    wtag_t = jnp.pad(raw["w_tag"].T, ((0, 0), (0, VPAD - label_vocab)))     # (2H, VPAD)
    btag = jnp.pad(raw["b_tag"], (0, VPAD - label_vocab)).reshape(1, VPAD)

    return dict(
        emb_tokens=raw["emb_tokens"], emb_labels=raw["emb_labels"],
        wih0_f=_gate_major_cols(l0["w_ih_f"].T, "f", H).astype(bf16),
        wih0_b=_gate_major_cols(l0["w_ih_b"].T, "b", H).astype(bf16),
        whh0=whh_bd(l0), b0=_gate_major_bias(l0, H),
        wih1_nf=_gate_major_cols(wih1_f_t[0:H], "f", H).astype(bf16),
        wih1_nb=_gate_major_cols(wih1_f_t[H:2 * H], "f", H).astype(bf16),
        wih1_rf=_gate_major_cols(wih1_b_t[0:H], "b", H).astype(bf16),
        wih1_rb=_gate_major_cols(wih1_b_t[H:2 * H], "b", H).astype(bf16),
        whh1=whh_bd(l1), b1=_gate_major_bias(l1, H),
        wtag_f=wtag_t[0:H].astype(bf16), wtag_b=wtag_t[H:2 * H].astype(bf16),
        b_tag=btag,
    )


# ----------------------------------------------------------------------------
# Pure-JAX reference (same dtype policy as the kernel: bf16 MXU operands,
# f32 accumulation, f32 element-wise math).
# ----------------------------------------------------------------------------
def _bdot(a, b):
    return jnp.dot(a.astype(jnp.bfloat16), b.astype(jnp.bfloat16),
                   preferred_element_type=jnp.float32)


def _ref_lstm_dir(x, w_ih, w_hh, b_ih, b_hh):
    T, B, _ = x.shape
    H = w_hh.shape[1]
    h = jnp.zeros((B, H), jnp.float32)
    c = jnp.zeros((B, H), jnp.float32)
    bias = b_ih + b_hh
    outs = []
    for t in range(T):
        gates = _bdot(x[t], w_ih.T) + _bdot(h, w_hh.T) + bias
        i = jax.nn.sigmoid(gates[:, 0:H])
        f = jax.nn.sigmoid(gates[:, H:2 * H])
        g = jnp.tanh(gates[:, 2 * H:3 * H])
        o = jax.nn.sigmoid(gates[:, 3 * H:4 * H])
        c = f * c + i * g
        h = o * jnp.tanh(c)
        outs.append(h)
    return jnp.stack(outs, axis=0)


def ref_forward(raw, tokens, labels):
    emb = jnp.concatenate(
        [raw["emb_tokens"][tokens], raw["emb_labels"][labels]], axis=-1)
    x = jnp.transpose(emb, (1, 0, 2)).astype(jnp.float32)
    for layer in raw["layers"]:
        fwd = _ref_lstm_dir(x, layer["w_ih_f"], layer["w_hh_f"],
                            layer["b_ih_f"], layer["b_hh_f"])
        bwd = _ref_lstm_dir(x[::-1], layer["w_ih_b"], layer["w_hh_b"],
                            layer["b_ih_b"], layer["b_hh_b"])[::-1]
        x = jnp.concatenate([fwd, bwd], axis=-1)
    logits = _bdot(x, raw["w_tag"].T) + raw["b_tag"]
    return jnp.transpose(logits, (1, 0, 2))


# ----------------------------------------------------------------------------
if __name__ == "__main__":
    B, T = 2, 8
    TOKEN_VOCAB, LABEL_VOCAB = 50, 10
    EMB_DIM, HIDDEN, N_LAYERS = 12, 32, 2

    key = jax.random.PRNGKey(0)
    k_par, k_tok, k_lab = jax.random.split(key, 3)
    raw = init_raw_params(k_par, TOKEN_VOCAB, LABEL_VOCAB, EMB_DIM, HIDDEN, N_LAYERS)
    kp = pack_kernel_params(raw, HIDDEN, LABEL_VOCAB)

    tokens = jax.random.randint(k_tok, (B, T), 0, TOKEN_VOCAB, dtype=jnp.int32)
    labels = jax.random.randint(k_lab, (B, T), 0, LABEL_VOCAB, dtype=jnp.int32)

    logits = lstm_tagger_forward(kp, tokens, labels, label_vocab=LABEL_VOCAB)
    logits = jax.block_until_ready(logits)
    assert logits.shape == (B, T, LABEL_VOCAB), logits.shape

    expected = ref_forward(raw, tokens, labels)
    max_err = float(jnp.max(jnp.abs(logits - expected)))
    assert jnp.allclose(logits, expected, atol=5e-3, rtol=5e-3), max_err

    print("KERNEL_OK")
</pallas_src>

<mosaic_0001>
module attributes {stable_mosaic.version = 11 : i64} {
  func.func @_tagger_kernel(%arg0: memref<64x24xf32, #tpu.memory_space<vmem>>, %arg1: memref<24x256xbf16, #tpu.memory_space<vmem>>, %arg2: memref<24x256xbf16, #tpu.memory_space<vmem>>, %arg3: memref<64x256xbf16, #tpu.memory_space<vmem>>, %arg4: memref<1x256xf32, #tpu.memory_space<vmem>>, %arg5: memref<32x256xbf16, #tpu.memory_space<vmem>>, %arg6: memref<32x256xbf16, #tpu.memory_space<vmem>>, %arg7: memref<32x256xbf16, #tpu.memory_space<vmem>>, %arg8: memref<32x256xbf16, #tpu.memory_space<vmem>>, %arg9: memref<64x256xbf16, #tpu.memory_space<vmem>>, %arg10: memref<1x256xf32, #tpu.memory_space<vmem>>, %arg11: memref<32x128xbf16, #tpu.memory_space<vmem>>, %arg12: memref<32x128xbf16, #tpu.memory_space<vmem>>, %arg13: memref<1x128xf32, #tpu.memory_space<vmem>>, %arg14: memref<64x128xf32, #tpu.memory_space<vmem>>, %arg15: memref<64x24xf32, #tpu.memory_space<vmem>>, %arg16: memref<64x256xf32, #tpu.memory_space<vmem>>, %arg17: memref<64x32xf32, #tpu.memory_space<vmem>>, %arg18: memref<64x32xf32, #tpu.memory_space<vmem>>, %arg19: memref<64x32xf32, #tpu.memory_space<vmem>>, %arg20: memref<64x32xf32, #tpu.memory_space<vmem>>, %arg21: memref<8x64xf32, #tpu.memory_space<vmem>>, %arg22: memref<8x64xf32, #tpu.memory_space<vmem>>) attributes {dimension_semantics = [], scalar_prefetch = 0 : i64, scratch_operands = 8 : i64, tpu.core_type = #tpu.core_type<tc>} {
    %c0_i32 = arith.constant 0 : i32
    %c8_i32 = arith.constant 8 : i32
    %0 = arith.muli %c0_i32, %c8_i32 : i32
    %1 = tpu.assume_multiple %0, 8 : i32
    %c7_i32 = arith.constant 7 : i32
    %2 = arith.subi %c7_i32, %c0_i32 : i32
    %c8_i32_0 = arith.constant 8 : i32
    %3 = arith.muli %2, %c8_i32_0 : i32
    %4 = tpu.assume_multiple %3, 8 : i32
    %5 = arith.index_cast %1 : i32 to index
    %c0 = arith.constant 0 : index
    %6 = vector.load %arg0[%5, %c0] : memref<64x24xf32, #tpu.memory_space<vmem>>, vector<8x24xf32>
    %7 = arith.index_cast %4 : i32 to index
    %c0_1 = arith.constant 0 : index
    %8 = vector.load %arg15[%7, %c0_1] : memref<64x24xf32, #tpu.memory_space<vmem>>, vector<8x24xf32>
    tpu.vector_store %arg15[%7, %c0_1], %6 {strides = array<i32>} : memref<64x24xf32, #tpu.memory_space<vmem>>, vector<8x24xf32>,
    %c1_i32 = arith.constant 1 : i32
    %c8_i32_2 = arith.constant 8 : i32
    %9 = arith.muli %c1_i32, %c8_i32_2 : i32
    %10 = tpu.assume_multiple %9, 8 : i32
    %c7_i32_3 = arith.constant 7 : i32
    %11 = arith.subi %c7_i32_3, %c1_i32 : i32
    %c8_i32_4 = arith.constant 8 : i32
    %12 = arith.muli %11, %c8_i32_4 : i32
    %13 = tpu.assume_multiple %12, 8 : i32
    %14 = arith.index_cast %10 : i32 to index
    %c0_5 = arith.constant 0 : index
    %15 = vector.load %arg0[%14, %c0_5] : memref<64x24xf32, #tpu.memory_space<vmem>>, vector<8x24xf32>
    %16 = arith.index_cast %13 : i32 to index
    %c0_6 = arith.constant 0 : index
    %17 = vector.load %arg15[%16, %c0_6] : memref<64x24xf32, #tpu.memory_space<vmem>>, vector<8x24xf32>
    tpu.vector_store %arg15[%16, %c0_6], %15 {strides = array<i32>} : memref<64x24xf32, #tpu.memory_space<vmem>>, vector<8x24xf32>,
    %c2_i32 = arith.constant 2 : i32
    %c8_i32_7 = arith.constant 8 : i32
    %18 = arith.muli %c2_i32, %c8_i32_7 : i32
    %19 = tpu.assume_multiple %18, 8 : i32
    %c7_i32_8 = arith.constant 7 : i32
    %20 = arith.subi %c7_i32_8, %c2_i32 : i32
    %c8_i32_9 = arith.constant 8 : i32
    %21 = arith.muli %20, %c8_i32_9 : i32
    %22 = tpu.assume_multiple %21, 8 : i32
    %23 = arith.index_cast %19 : i32 to index
    %c0_10 = arith.constant 0 : index
    %24 = vector.load %arg0[%23, %c0_10] : memref<64x24xf32, #tpu.memory_space<vmem>>, vector<8x24xf32>
    %25 = arith.index_cast %22 : i32 to index
    %c0_11 = arith.constant 0 : index
    %26 = vector.load %arg15[%25, %c0_11] : memref<64x24xf32, #tpu.memory_space<vmem>>, vector<8x24xf32>
    tpu.vector_store %arg15[%25, %c0_11], %24 {strides = array<i32>} : memref<64x24xf32, #tpu.memory_space<vmem>>, vector<8x24xf32>,
    %c3_i32 = arith.constant 3 : i32
    %c8_i32_12 = arith.constant 8 : i32
    %27 = arith.muli %c3_i32, %c8_i32_12 : i32
    %28 = tpu.assume_multiple %27, 8 : i32
    %c7_i32_13 = arith.constant 7 : i32
    %29 = arith.subi %c7_i32_13, %c3_i32 : i32
    %c8_i32_14 = arith.constant 8 : i32
    %30 = arith.muli %29, %c8_i32_14 : i32
    %31 = tpu.assume_multiple %30, 8 : i32
    %32 = arith.index_cast %28 : i32 to index
    %c0_15 = arith.constant 0 : index
    %33 = vector.load %arg0[%32, %c0_15] : memref<64x24xf32, #tpu.memory_space<vmem>>, vector<8x24xf32>
    %34 = arith.index_cast %31 : i32 to index
    %c0_16 = arith.constant 0 : index
    %35 = vector.load %arg15[%34, %c0_16] : memref<64x24xf32, #tpu.memory_space<vmem>>, vector<8x24xf32>
    tpu.vector_store %arg15[%34, %c0_16], %33 {strides = array<i32>} : memref<64x24xf32, #tpu.memory_space<vmem>>, vector<8x24xf32>,
    %c4_i32 = arith.constant 4 : i32
    %c8_i32_17 = arith.constant 8 : i32
    %36 = arith.muli %c4_i32, %c8_i32_17 : i32
    %37 = tpu.assume_multiple %36, 8 : i32
    %c7_i32_18 = arith.constant 7 : i32
    %38 = arith.subi %c7_i32_18, %c4_i32 : i32
    %c8_i32_19 = arith.constant 8 : i32
    %39 = arith.muli %38, %c8_i32_19 : i32
    %40 = tpu.assume_multiple %39, 8 : i32
    %41 = arith.index_cast %37 : i32 to index
    %c0_20 = arith.constant 0 : index
    %42 = vector.load %arg0[%41, %c0_20] : memref<64x24xf32, #tpu.memory_space<vmem>>, vector<8x24xf32>
    %43 = arith.index_cast %40 : i32 to index
    %c0_21 = arith.constant 0 : index
    %44 = vector.load %arg15[%43, %c0_21] : memref<64x24xf32, #tpu.memory_space<vmem>>, vector<8x24xf32>
    tpu.vector_store %arg15[%43, %c0_21], %42 {strides = array<i32>} : memref<64x24xf32, #tpu.memory_space<vmem>>, vector<8x24xf32>,
    %c5_i32 = arith.constant 5 : i32
    %c8_i32_22 = arith.constant 8 : i32
    %45 = arith.muli %c5_i32, %c8_i32_22 : i32
    %46 = tpu.assume_multiple %45, 8 : i32
    %c7_i32_23 = arith.constant 7 : i32
    %47 = arith.subi %c7_i32_23, %c5_i32 : i32
    %c8_i32_24 = arith.constant 8 : i32
    %48 = arith.muli %47, %c8_i32_24 : i32
    %49 = tpu.assume_multiple %48, 8 : i32
    %50 = arith.index_cast %46 : i32 to index
    %c0_25 = arith.constant 0 : index
    %51 = vector.load %arg0[%50, %c0_25] : memref<64x24xf32, #tpu.memory_space<vmem>>, vector<8x24xf32>
    %52 = arith.index_cast %49 : i32 to index
    %c0_26 = arith.constant 0 : index
    %53 = vector.load %arg15[%52, %c0_26] : memref<64x24xf32, #tpu.memory_space<vmem>>, vector<8x24xf32>
    tpu.vector_store %arg15[%52, %c0_26], %51 {strides = array<i32>} : memref<64x24xf32, #tpu.memory_space<vmem>>, vector<8x24xf32>,
    %c6_i32 = arith.constant 6 : i32
    %c8_i32_27 = arith.constant 8 : i32
    %54 = arith.muli %c6_i32, %c8_i32_27 : i32
    %55 = tpu.assume_multiple %54, 8 : i32
    %c7_i32_28 = arith.constant 7 : i32
    %56 = arith.subi %c7_i32_28, %c6_i32 : i32
    %c8_i32_29 = arith.constant 8 : i32
    %57 = arith.muli %56, %c8_i32_29 : i32
    %58 = tpu.assume_multiple %57, 8 : i32
    %59 = arith.index_cast %55 : i32 to index
    %c0_30 = arith.constant 0 : index
    %60 = vector.load %arg0[%59, %c0_30] : memref<64x24xf32, #tpu.memory_space<vmem>>, vector<8x24xf32>
    %61 = arith.index_cast %58 : i32 to index
    %c0_31 = arith.constant 0 : index
    %62 = vector.load %arg15[%61, %c0_31] : memref<64x24xf32, #tpu.memory_space<vmem>>, vector<8x24xf32>
    tpu.vector_store %arg15[%61, %c0_31], %60 {strides = array<i32>} : memref<64x24xf32, #tpu.memory_space<vmem>>, vector<8x24xf32>,
    %c7_i32_32 = arith.constant 7 : i32
    %c8_i32_33 = arith.constant 8 : i32
    %63 = arith.muli %c7_i32_32, %c8_i32_33 : i32
    %64 = tpu.assume_multiple %63, 8 : i32
    %c7_i32_34 = arith.constant 7 : i32
    %65 = arith.subi %c7_i32_34, %c7_i32_32 : i32
    %c8_i32_35 = arith.constant 8 : i32
    %66 = arith.muli %65, %c8_i32_35 : i32
    %67 = tpu.assume_multiple %66, 8 : i32
    %68 = arith.index_cast %64 : i32 to index
    %c0_36 = arith.constant 0 : index
    %69 = vector.load %arg0[%68, %c0_36] : memref<64x24xf32, #tpu.memory_space<vmem>>, vector<8x24xf32>
    %70 = arith.index_cast %67 : i32 to index
    %c0_37 = arith.constant 0 : index
    %71 = vector.load %arg15[%70, %c0_37] : memref<64x24xf32, #tpu.memory_space<vmem>>, vector<8x24xf32>
    tpu.vector_store %arg15[%70, %c0_37], %69 {strides = array<i32>} : memref<64x24xf32, #tpu.memory_space<vmem>>, vector<8x24xf32>,
    %c8_i32_38 = arith.constant 8 : i32
    %c0_39 = arith.constant 0 : index
    %c0_40 = arith.constant 0 : index
    %72 = vector.load %arg0[%c0_39, %c0_40] : memref<64x24xf32, #tpu.memory_space<vmem>>, vector<64x24xf32>
    %c0_41 = arith.constant 0 : index
    %c0_42 = arith.constant 0 : index
    %73 = vector.load %arg1[%c0_41, %c0_42] : memref<24x256xbf16, #tpu.memory_space<vmem>>, vector<24x256xbf16>
    %74 = arith.truncf %72 : vector<64x24xf32> to vector<64x24xbf16>
    %cst = arith.constant dense<0.000000e+00> : vector<64x256xf32>
    %75 = tpu.matmul %74, %73, %cst {dimension_numbers = #tpu.dot_dimension_numbers<[1], [0], [0], [1], [0, 0, 1, 1], [], []>} : vector<64x24xbf16>, vector<24x256xbf16>, vector<64x256xf32> -> vector<64x256xf32>
    %c0_43 = arith.constant 0 : index
    %c0_44 = arith.constant 0 : index
    %76 = vector.load %arg15[%c0_43, %c0_44] : memref<64x24xf32, #tpu.memory_space<vmem>>, vector<64x24xf32>
    %c0_45 = arith.constant 0 : index
    %c0_46 = arith.constant 0 : index
    %77 = vector.load %arg2[%c0_45, %c0_46] : memref<24x256xbf16, #tpu.memory_space<vmem>>, vector<24x256xbf16>
    %78 = arith.truncf %76 : vector<64x24xf32> to vector<64x24xbf16>
    %cst_47 = arith.constant dense<0.000000e+00> : vector<64x256xf32>
    %79 = tpu.matmul %78, %77, %cst_47 {dimension_numbers = #tpu.dot_dimension_numbers<[1], [0], [0], [1], [0, 0, 1, 1], [], []>} : vector<64x24xbf16>, vector<24x256xbf16>, vector<64x256xf32> -> vector<64x256xf32>
    %80 = arith.addf %75, %79 : vector<64x256xf32>
    %c0_48 = arith.constant 0 : index
    %c0_49 = arith.constant 0 : index
    %81 = vector.load %arg4[%c0_48, %c0_49] : memref<1x256xf32, #tpu.memory_space<vmem>>, vector<1x256xf32>
    %82 = vector.broadcast %81 : vector<1x256xf32> to vector<64x256xf32>
    %83 = arith.addf %80, %82 : vector<64x256xf32>
    %c0_50 = arith.constant 0 : index
    %c0_51 = arith.constant 0 : index
    %84 = vector.load %arg16[%c0_50, %c0_51] : memref<64x256xf32, #tpu.memory_space<vmem>>, vector<64x256xf32>
    tpu.vector_store %arg16[%c0_50, %c0_51], %83 {strides = array<i32>} : memref<64x256xf32, #tpu.memory_space<vmem>>, vector<64x256xf32>,
    %cst_52 = arith.constant 0.000000e+00 : f32
    %85 = vector.broadcast %cst_52 : f32 to vector<8x64xf32>
    %c0_53 = arith.constant 0 : index
    %c0_54 = arith.constant 0 : index
    %86 = vector.load %arg21[%c0_53, %c0_54] : memref<8x64xf32, #tpu.memory_space<vmem>>, vector<8x64xf32>
    tpu.vector_store %arg21[%c0_53, %c0_54], %85 {strides = array<i32>} : memref<8x64xf32, #tpu.memory_space<vmem>>, vector<8x64xf32>,
    %cst_55 = arith.constant 0.000000e+00 : f32
    %87 = vector.broadcast %cst_55 : f32 to vector<8x64xf32>
    %c0_56 = arith.constant 0 : index
    %c0_57 = arith.constant 0 : index
    %88 = vector.load %arg22[%c0_56, %c0_57] : memref<8x64xf32, #tpu.memory_space<vmem>>, vector<8x64xf32>
    tpu.vector_store %arg22[%c0_56, %c0_57], %87 {strides = array<i32>} : memref<8x64xf32, #tpu.memory_space<vmem>>, vector<8x64xf32>,
    %c0_58 = arith.constant 0 : index
    %c0_59 = arith.constant 0 : index
    %89 = vector.load %arg3[%c0_58, %c0_59] : memref<64x256xbf16, #tpu.memory_space<vmem>>, vector<64x256xbf16>
    %c0_i32_60 = arith.constant 0 : i32
    %c8_i32_61 = arith.constant 8 : i32
    %90 = arith.muli %c0_i32_60, %c8_i32_61 : i32
    %91 = tpu.assume_multiple %90, 8 : i32
    %c7_i32_62 = arith.constant 7 : i32
    %92 = arith.subi %c7_i32_62, %c0_i32_60 : i32
    %c8_i32_63 = arith.constant 8 : i32
    %93 = arith.muli %92, %c8_i32_63 : i32
    %94 = tpu.assume_multiple %93, 8 : i32
    %95 = arith.index_cast %91 : i32 to index
    %c0_64 = arith.constant 0 : index
    %96 = vector.load %arg16[%95, %c0_64] : memref<64x256xf32, #tpu.memory_space<vmem>>, vector<8x256xf32>
    %c0_65 = arith.constant 0 : index
    %c0_66 = arith.constant 0 : index
    %97 = vector.load %arg21[%c0_65, %c0_66] : memref<8x64xf32, #tpu.memory_space<vmem>>, vector<8x64xf32>
    %98 = arith.truncf %97 : vector<8x64xf32> to vector<8x64xbf16>
    %cst_67 = arith.constant dense<0.000000e+00> : vector<8x256xf32>
    %99 = tpu.matmul %98, %89, %cst_67 {dimension_numbers = #tpu.dot_dimension_numbers<[1], [0], [0], [1], [0, 0, 1, 1], [], []>} : vector<8x64xbf16>, vector<64x256xbf16>, vector<8x256xf32> -> vector<8x256xf32>
    %100 = arith.addf %96, %99 : vector<8x256xf32>
    %101 = vector.extract_strided_slice %100 {offsets = [0, 0], sizes = [8, 192], strides = [1, 1]} : vector<8x256xf32> to vector<8x192xf32>
    %102 = arith.negf %101 : vector<8x192xf32>
    %103 = math.exp %102 : vector<8x192xf32>
    %cst_68 = arith.constant 1.000000e+00 : f32
    %104 = vector.broadcast %cst_68 : f32 to vector<8x192xf32>
    %105 = arith.addf %104, %103 : vector<8x192xf32>
    %106 = arith.divf %104, %105 : vector<8x192xf32>
    %107 = vector.extract_strided_slice %100 {offsets = [0, 192], sizes = [8, 64], strides = [1, 1]} : vector<8x256xf32> to vector<8x64xf32>
    %108 = math.tanh %107 : vector<8x64xf32>
    %109 = vector.extract_strided_slice %106 {offsets = [0, 64], sizes = [8, 64], strides = [1, 1]} : vector<8x192xf32> to vector<8x64xf32>
    %c0_69 = arith.constant 0 : index
    %c0_70 = arith.constant 0 : index
    %110 = vector.load %arg22[%c0_69, %c0_70] : memref<8x64xf32, #tpu.memory_space<vmem>>, vector<8x64xf32>
    %111 = arith.mulf %109, %110 : vector<8x64xf32>
    %112 = vector.extract_strided_slice %106 {offsets = [0, 0], sizes = [8, 64], strides = [1, 1]} : vector<8x192xf32> to vector<8x64xf32>
    %113 = arith.mulf %112, %108 : vector<8x64xf32>
    %114 = arith.addf %111, %113 : vector<8x64xf32>
    %115 = vector.extract_strided_slice %106 {offsets = [0, 128], sizes = [8, 64], strides = [1, 1]} : vector<8x192xf32> to vector<8x64xf32>
    %116 = math.tanh %114 : vector<8x64xf32>
    %117 = arith.mulf %115, %116 : vector<8x64xf32>
    %c0_71 = arith.constant 0 : index
    %c0_72 = arith.constant 0 : index
    %118 = vector.load %arg22[%c0_71, %c0_72] : memref<8x64xf32, #tpu.memory_space<vmem>>, vector<8x64xf32>
    tpu.vector_store %arg22[%c0_71, %c0_72], %114 {strides = array<i32>} : memref<8x64xf32, #tpu.memory_space<vmem>>, vector<8x64xf32>,
    %c0_73 = arith.constant 0 : index
    %c0_74 = arith.constant 0 : index
    %119 = vector.load %arg21[%c0_73, %c0_74] : memref<8x64xf32, #tpu.memory_space<vmem>>, vector<8x64xf32>
    tpu.vector_store %arg21[%c0_73, %c0_74], %117 {strides = array<i32>} : memref<8x64xf32, #tpu.memory_space<vmem>>, vector<8x64xf32>,
    %120 = vector.extract_strided_slice %117 {offsets = [0, 0], sizes = [8, 32], strides = [1, 1]} : vector<8x64xf32> to vector<8x32xf32>
    %121 = arith.index_cast %91 : i32 to index
    %c0_75 = arith.constant 0 : index
    %122 = vector.load %arg17[%121, %c0_75] : memref<64x32xf32, #tpu.memory_space<vmem>>, vector<8x32xf32>
    tpu.vector_store %arg17[%121, %c0_75], %120 {strides = array<i32>} : memref<64x32xf32, #tpu.memory_space<vmem>>, vector<8x32xf32>,
    %123 = vector.extract_strided_slice %117 {offsets = [0, 32], sizes = [8, 32], strides = [1, 1]} : vector<8x64xf32> to vector<8x32xf32>
    %124 = arith.index_cast %94 : i32 to index
    %c0_76 = arith.constant 0 : index
    %125 = vector.load %arg18[%124, %c0_76] : memref<64x32xf32, #tpu.memory_space<vmem>>, vector<8x32xf32>
    tpu.vector_store %arg18[%124, %c0_76], %123 {strides = array<i32>} : memref<64x32xf32, #tpu.memory_space<vmem>>, vector<8x32xf32>,
    %126 = vector.extract_strided_slice %117 {offsets = [0, 0], sizes = [8, 32], strides = [1, 1]} : vector<8x64xf32> to vector<8x32xf32>
    %127 = arith.index_cast %94 : i32 to index
    %c0_77 = arith.constant 0 : index
    %128 = vector.load %arg19[%127, %c0_77] : memref<64x32xf32, #tpu.memory_space<vmem>>, vector<8x32xf32>
    tpu.vector_store %arg19[%127, %c0_77], %126 {strides = array<i32>} : memref<64x32xf32, #tpu.memory_space<vmem>>, vector<8x32xf32>,
    %129 = vector.extract_strided_slice %117 {offsets = [0, 32], sizes = [8, 32], strides = [1, 1]} : vector<8x64xf32> to vector<8x32xf32>
    %130 = arith.index_cast %91 : i32 to index
    %c0_78 = arith.constant 0 : index
    %131 = vector.load %arg20[%130, %c0_78] : memref<64x32xf32, #tpu.memory_space<vmem>>, vector<8x32xf32>
    tpu.vector_store %arg20[%130, %c0_78], %129 {strides = array<i32>} : memref<64x32xf32, #tpu.memory_space<vmem>>, vector<8x32xf32>,
    %c1_i32_79 = arith.constant 1 : i32
    %c8_i32_80 = arith.constant 8 : i32
    %132 = arith.muli %c1_i32_79, %c8_i32_80 : i32
    %133 = tpu.assume_multiple %132, 8 : i32
    %c7_i32_81 = arith.constant 7 : i32
    %134 = arith.subi %c7_i32_81, %c1_i32_79 : i32
    %c8_i32_82 = arith.constant 8 : i32
    %135 = arith.muli %134, %c8_i32_82 : i32
    %136 = tpu.assume_multiple %135, 8 : i32
    %137 = arith.index_cast %133 : i32 to index
    %c0_83 = arith.constant 0 : index
    %138 = vector.load %arg16[%137, %c0_83] : memref<64x256xf32, #tpu.memory_space<vmem>>, vector<8x256xf32>
    %c0_84 = arith.constant 0 : index
    %c0_85 = arith.constant 0 : index
    %139 = vector.load %arg21[%c0_84, %c0_85] : memref<8x64xf32, #tpu.memory_space<vmem>>, vector<8x64xf32>
    %140 = arith.truncf %139 : vector<8x64xf32> to vector<8x64xbf16>
    %cst_86 = arith.constant dense<0.000000e+00> : vector<8x256xf32>
    %141 = tpu.matmul %140, %89, %cst_86 {dimension_numbers = #tpu.dot_dimension_numbers<[1], [0], [0], [1], [0, 0, 1, 1], [], []>} : vector<8x64xbf16>, vector<64x256xbf16>, vector<8x256xf32> -> vector<8x256xf32>
    %142 = arith.addf %138, %141 : vector<8x256xf32>
    %143 = vector.extract_strided_slice %142 {offsets = [0, 0], sizes = [8, 192], strides = [1, 1]} : vector<8x256xf32> to vector<8x192xf32>
    %144 = arith.negf %143 : vector<8x192xf32>
    %145 = math.exp %144 : vector<8x192xf32>
    %cst_87 = arith.constant 1.000000e+00 : f32
    %146 = vector.broadcast %cst_87 : f32 to vector<8x192xf32>
    %147 = arith.addf %146, %145 : vector<8x192xf32>
    %148 = arith.divf %146, %147 : vector<8x192xf32>
    %149 = vector.extract_strided_slice %142 {offsets = [0, 192], sizes = [8, 64], strides = [1, 1]} : vector<8x256xf32> to vector<8x64xf32>
    %150 = math.tanh %149 : vector<8x64xf32>
    %151 = vector.extract_strided_slice %148 {offsets = [0, 64], sizes = [8, 64], strides = [1, 1]} : vector<8x192xf32> to vector<8x64xf32>
    %c0_88 = arith.constant 0 : index
    %c0_89 = arith.constant 0 : index
    %152 = vector.load %arg22[%c0_88, %c0_89] : memref<8x64xf32, #tpu.memory_space<vmem>>, vector<8x64xf32>
    %153 = arith.mulf %151, %152 : vector<8x64xf32>
    %154 = vector.extract_strided_slice %148 {offsets = [0, 0], sizes = [8, 64], strides = [1, 1]} : vector<8x192xf32> to vector<8x64xf32>
    %155 = arith.mulf %154, %150 : vector<8x64xf32>
    %156 = arith.addf %153, %155 : vector<8x64xf32>
    %157 = vector.extract_strided_slice %148 {offsets = [0, 128], sizes = [8, 64], strides = [1, 1]} : vector<8x192xf32> to vector<8x64xf32>
    %158 = math.tanh %156 : vector<8x64xf32>
    %159 = arith.mulf %157, %158 : vector<8x64xf32>
    %c0_90 = arith.constant 0 : index
    %c0_91 = arith.constant 0 : index
    %160 = vector.load %arg22[%c0_90, %c0_91] : memref<8x64xf32, #tpu.memory_space<vmem>>, vector<8x64xf32>
    tpu.vector_store %arg22[%c0_90, %c0_91], %156 {strides = array<i32>} : memref<8x64xf32, #tpu.memory_space<vmem>>, vector<8x64xf32>,
    %c0_92 = arith.constant 0 : index
    %c0_93 = arith.constant 0 : index
    %161 = vector.load %arg21[%c0_92, %c0_93] : memref<8x64xf32, #tpu.memory_space<vmem>>, vector<8x64xf32>
    tpu.vector_store %arg21[%c0_92, %c0_93], %159 {strides = array<i32>} : memref<8x64xf32, #tpu.memory_space<vmem>>, vector<8x64xf32>,
    %162 = vector.extract_strided_slice %159 {offsets = [0, 0], sizes = [8, 32], strides = [1, 1]} : vector<8x64xf32> to vector<8x32xf32>
    %163 = arith.index_cast %133 : i32 to index
    %c0_94 = arith.constant 0 : index
    %164 = vector.load %arg17[%163, %c0_94] : memref<64x32xf32, #tpu.memory_space<vmem>>, vector<8x32xf32>
    tpu.vector_store %arg17[%163, %c0_94], %162 {strides = array<i32>} : memref<64x32xf32, #tpu.memory_space<vmem>>, vector<8x32xf32>,
    %165 = vector.extract_strided_slice %159 {offsets = [0, 32], sizes = [8, 32], strides = [1, 1]} : vector<8x64xf32> to vector<8x32xf32>
    %166 = arith.index_cast %136 : i32 to index
    %c0_95 = arith.constant 0 : index
    %167 = vector.load %arg18[%166, %c0_95] : memref<64x32xf32, #tpu.memory_space<vmem>>, vector<8x32xf32>
    tpu.vector_store %arg18[%166, %c0_95], %165 {strides = array<i32>} : memref<64x32xf32, #tpu.memory_space<vmem>>, vector<8x32xf32>,
    %168 = vector.extract_strided_slice %159 {offsets = [0, 0], sizes = [8, 32], strides = [1, 1]} : vector<8x64xf32> to vector<8x32xf32>
    %169 = arith.index_cast %136 : i32 to index
    %c0_96 = arith.constant 0 : index
    %170 = vector.load %arg19[%169, %c0_96] : memref<64x32xf32, #tpu.memory_space<vmem>>, vector<8x32xf32>
    tpu.vector_store %arg19[%169, %c0_96], %168 {strides = array<i32>} : memref<64x32xf32, #tpu.memory_space<vmem>>, vector<8x32xf32>,
    %171 = vector.extract_strided_slice %159 {offsets = [0, 32], sizes = [8, 32], strides = [1, 1]} : vector<8x64xf32> to vector<8x32xf32>
    %172 = arith.index_cast %133 : i32 to index
    %c0_97 = arith.constant 0 : index
    %173 = vector.load %arg20[%172, %c0_97] : memref<64x32xf32, #tpu.memory_space<vmem>>, vector<8x32xf32>
    tpu.vector_store %arg20[%172, %c0_97], %171 {strides = array<i32>} : memref<64x32xf32, #tpu.memory_space<vmem>>, vector<8x32xf32>,
    %c2_i32_98 = arith.constant 2 : i32
    %c8_i32_99 = arith.constant 8 : i32
    %174 = arith.muli %c2_i32_98, %c8_i32_99 : i32
    %175 = tpu.assume_multiple %174, 8 : i32
    %c7_i32_100 = arith.constant 7 : i32
    %176 = arith.subi %c7_i32_100, %c2_i32_98 : i32
    %c8_i32_101 = arith.constant 8 : i32
    %177 = arith.muli %176, %c8_i32_101 : i32
    %178 = tpu.assume_multiple %177, 8 : i32
    %179 = arith.index_cast %175 : i32 to index
    %c0_102 = arith.constant 0 : index
    %180 = vector.load %arg16[%179, %c0_102] : memref<64x256xf32, #tpu.memory_space<vmem>>, vector<8x256xf32>
    %c0_103 = arith.constant 0 : index
    %c0_104 = arith.constant 0 : index
    %181 = vector.load %arg21[%c0_103, %c0_104] : memref<8x64xf32, #tpu.memory_space<vmem>>, vector<8x64xf32>
    %182 = arith.truncf %181 : vector<8x64xf32> to vector<8x64xbf16>
    %cst_105 = arith.constant dense<0.000000e+00> : vector<8x256xf32>
    %183 = tpu.matmul %182, %89, %cst_105 {dimension_numbers = #tpu.dot_dimension_numbers<[1], [0], [0], [1], [0, 0, 1, 1], [], []>} : vector<8x64xbf16>, vector<64x256xbf16>, vector<8x256xf32> -> vector<8x256xf32>
    %184 = arith.addf %180, %183 : vector<8x256xf32>
    %185 = vector.extract_strided_slice %184 {offsets = [0, 0], sizes = [8, 192], strides = [1, 1]} : vector<8x256xf32> to vector<8x192xf32>
    %186 = arith.negf %185 : vector<8x192xf32>
    %187 = math.exp %186 : vector<8x192xf32>
    %cst_106 = arith.constant 1.000000e+00 : f32
    %188 = vector.broadcast %cst_106 : f32 to vector<8x192xf32>
    %189 = arith.addf %188, %187 : vector<8x192xf32>
    %190 = arith.divf %188, %189 : vector<8x192xf32>
    %191 = vector.extract_strided_slice %184 {offsets = [0, 192], sizes = [8, 64], strides = [1, 1]} : vector<8x256xf32> to vector<8x64xf32>
    %192 = math.tanh %191 : vector<8x64xf32>
    %193 = vector.extract_strided_slice %190 {offsets = [0, 64], sizes = [8, 64], strides = [1, 1]} : vector<8x192xf32> to vector<8x64xf32>
    %c0_107 = arith.constant 0 : index
    %c0_108 = arith.constant 0 : index
    %194 = vector.load %arg22[%c0_107, %c0_108] : memref<8x64xf32, #tpu.memory_space<vmem>>, vector<8x64xf32>
    %195 = arith.mulf %193, %194 : vector<8x64xf32>
    %196 = vector.extract_strided_slice %190 {offsets = [0, 0], sizes = [8, 64], strides = [1, 1]} : vector<8x192xf32> to vector<8x64xf32>
    %197 = arith.mulf %196, %192 : vector<8x64xf32>
    %198 = arith.addf %195, %197 : vector<8x64xf32>
    %199 = vector.extract_strided_slice %190 {offsets = [0, 128], sizes = [8, 64], strides = [1, 1]} : vector<8x192xf32> to vector<8x64xf32>
    %200 = math.tanh %198 : vector<8x64xf32>
    %201 = arith.mulf %199, %200 : vector<8x64xf32>
    %c0_109 = arith.constant 0 : index
    %c0_110 = arith.constant 0 : index
    %202 = vector.load %arg22[%c0_109, %c0_110] : memref<8x64xf32, #tpu.memory_space<vmem>>, vector<8x64xf32>
    tpu.vector_store %arg22[%c0_109, %c0_110], %198 {strides = array<i32>} : memref<8x64xf32, #tpu.memory_space<vmem>>, vector<8x64xf32>,
    %c0_111 = arith.constant 0 : index
    %c0_112 = arith.constant 0 : index
    %203 = vector.load %arg21[%c0_111, %c0_112] : memref<8x64xf32, #tpu.memory_space<vmem>>, vector<8x64xf32>
    tpu.vector_store %arg21[%c0_111, %c0_112], %201 {strides = array<i32>} : memref<8x64xf32, #tpu.memory_space<vmem>>, vector<8x64xf32>,
    %204 = vector.extract_strided_slice %201 {offsets = [0, 0], sizes = [8, 32], strides = [1, 1]} : vector<8x64xf32> to vector<8x32xf32>
    %205 = arith.index_cast %175 : i32 to index
    %c0_113 = arith.constant 0 : index
    %206 = vector.load %arg17[%205, %c0_113] : memref<64x32xf32, #tpu.memory_space<vmem>>, vector<8x32xf32>
    tpu.vector_store %arg17[%205, %c0_113], %204 {strides = array<i32>} : memref<64x32xf32, #tpu.memory_space<vmem>>, vector<8x32xf32>,
    %207 = vector.extract_strided_slice %201 {offsets = [0, 32], sizes = [8, 32], strides = [1, 1]} : vector<8x64xf32> to vector<8x32xf32>
    %208 = arith.index_cast %178 : i32 to index
    %c0_114 = arith.constant 0 : index
    %209 = vector.load %arg18[%208, %c0_114] : memref<64x32xf32, #tpu.memory_space<vmem>>, vector<8x32xf32>
    tpu.vector_store %arg18[%208, %c0_114], %207 {strides = array<i32>} : memref<64x32xf32, #tpu.memory_space<vmem>>, vector<8x32xf32>,
    %210 = vector.extract_strided_slice %201 {offsets = [0, 0], sizes = [8, 32], strides = [1, 1]} : vector<8x64xf32> to vector<8x32xf32>
    %211 = arith.index_cast %178 : i32 to index
    %c0_115 = arith.constant 0 : index
    %212 = vector.load %arg19[%211, %c0_115] : memref<64x32xf32, #tpu.memory_space<vmem>>, vector<8x32xf32>
    tpu.vector_store %arg19[%211, %c0_115], %210 {strides = array<i32>} : memref<64x32xf32, #tpu.memory_space<vmem>>, vector<8x32xf32>,
    %213 = vector.extract_strided_slice %201 {offsets = [0, 32], sizes = [8, 32], strides = [1, 1]} : vector<8x64xf32> to vector<8x32xf32>
    %214 = arith.index_cast %175 : i32 to index
    %c0_116 = arith.constant 0 : index
    %215 = vector.load %arg20[%214, %c0_116] : memref<64x32xf32, #tpu.memory_space<vmem>>, vector<8x32xf32>
    tpu.vector_store %arg20[%214, %c0_116], %213 {strides = array<i32>} : memref<64x32xf32, #tpu.memory_space<vmem>>, vector<8x32xf32>,
    %c3_i32_117 = arith.constant 3 : i32
    %c8_i32_118 = arith.constant 8 : i32
    %216 = arith.muli %c3_i32_117, %c8_i32_118 : i32
    %217 = tpu.assume_multiple %216, 8 : i32
    %c7_i32_119 = arith.constant 7 : i32
    %218 = arith.subi %c7_i32_119, %c3_i32_117 : i32
    %c8_i32_120 = arith.constant 8 : i32
    %219 = arith.muli %218, %c8_i32_120 : i32
    %220 = tpu.assume_multiple %219, 8 : i32
    %221 = arith.index_cast %217 : i32 to index
    %c0_121 = arith.constant 0 : index
    %222 = vector.load %arg16[%221, %c0_121] : memref<64x256xf32, #tpu.memory_space<vmem>>, vector<8x256xf32>
    %c0_122 = arith.constant 0 : index
    %c0_123 = arith.constant 0 : index
    %223 = vector.load %arg21[%c0_122, %c0_123] : memref<8x64xf32, #tpu.memory_space<vmem>>, vector<8x64xf32>
    %224 = arith.truncf %223 : vector<8x64xf32> to vector<8x64xbf16>
    %cst_124 = arith.constant dense<0.000000e+00> : vector<8x256xf32>
    %225 = tpu.matmul %224, %89, %cst_124 {dimension_numbers = #tpu.dot_dimension_numbers<[1], [0], [0], [1], [0, 0, 1, 1], [], []>} : vector<8x64xbf16>, vector<64x256xbf16>, vector<8x256xf32> -> vector<8x256xf32>
    %226 = arith.addf %222, %225 : vector<8x256xf32>
    %227 = vector.extract_strided_slice %226 {offsets = [0, 0], sizes = [8, 192], strides = [1, 1]} : vector<8x256xf32> to vector<8x192xf32>
    %228 = arith.negf %227 : vector<8x192xf32>
    %229 = math.exp %228 : vector<8x192xf32>
    %cst_125 = arith.constant 1.000000e+00 : f32
    %230 = vector.broadcast %cst_125 : f32 to vector<8x192xf32>
    %231 = arith.addf %230, %229 : vector<8x192xf32>
    %232 = arith.divf %230, %231 : vector<8x192xf32>
    %233 = vector.extract_strided_slice %226 {offsets = [0, 192], sizes = [8, 64], strides = [1, 1]} : vector<8x256xf32> to vector<8x64xf32>
    %234 = math.tanh %233 : vector<8x64xf32>
    %235 = vector.extract_strided_slice %232 {offsets = [0, 64], sizes = [8, 64], strides = [1, 1]} : vector<8x192xf32> to vector<8x64xf32>
    %c0_126 = arith.constant 0 : index
    %c0_127 = arith.constant 0 : index
    %236 = vector.load %arg22[%c0_126, %c0_127] : memref<8x64xf32, #tpu.memory_space<vmem>>, vector<8x64xf32>
    %237 = arith.mulf %235, %236 : vector<8x64xf32>
    %238 = vector.extract_strided_slice %232 {offsets = [0, 0], sizes = [8, 64], strides = [1, 1]} : vector<8x192xf32> to vector<8x64xf32>
    %239 = arith.mulf %238, %234 : vector<8x64xf32>
    %240 = arith.addf %237, %239 : vector<8x64xf32>
    %241 = vector.extract_strided_slice %232 {offsets = [0, 128], sizes = [8, 64], strides = [1, 1]} : vector<8x192xf32> to vector<8x64xf32>
    %242 = math.tanh %240 : vector<8x64xf32>
    %243 = arith.mulf %241, %242 : vector<8x64xf32>
    %c0_128 = arith.constant 0 : index
    %c0_129 = arith.constant 0 : index
    %244 = vector.load %arg22[%c0_128, %c0_129] : memref<8x64xf32, #tpu.memory_space<vmem>>, vector<8x64xf32>
    tpu.vector_store %arg22[%c0_128, %c0_129], %240 {strides = array<i32>} : memref<8x64xf32, #tpu.memory_space<vmem>>, vector<8x64xf32>,
    %c0_130 = arith.constant 0 : index
    %c0_131 = arith.constant 0 : index
    %245 = vector.load %arg21[%c0_130, %c0_131] : memref<8x64xf32, #tpu.memory_space<vmem>>, vector<8x64xf32>
    tpu.vector_store %arg21[%c0_130, %c0_131], %243 {strides = array<i32>} : memref<8x64xf32, #tpu.memory_space<vmem>>, vector<8x64xf32>,
    %246 = vector.extract_strided_slice %243 {offsets = [0, 0], sizes = [8, 32], strides = [1, 1]} : vector<8x64xf32> to vector<8x32xf32>
    %247 = arith.index_cast %217 : i32 to index
    %c0_132 = arith.constant 0 : index
    %248 = vector.load %arg17[%247, %c0_132] : memref<64x32xf32, #tpu.memory_space<vmem>>, vector<8x32xf32>
    tpu.vector_store %arg17[%247, %c0_132], %246 {strides = array<i32>} : memref<64x32xf32, #tpu.memory_space<vmem>>, vector<8x32xf32>,
    %249 = vector.extract_strided_slice %243 {offsets = [0, 32], sizes = [8, 32], strides = [1, 1]} : vector<8x64xf32> to vector<8x32xf32>
    %250 = arith.index_cast %220 : i32 to index
    %c0_133 = arith.constant 0 : index
    %251 = vector.load %arg18[%250, %c0_133] : memref<64x32xf32, #tpu.memory_space<vmem>>, vector<8x32xf32>
    tpu.vector_store %arg18[%250, %c0_133], %249 {strides = array<i32>} : memref<64x32xf32, #tpu.memory_space<vmem>>, vector<8x32xf32>,
    %252 = vector.extract_strided_slice %243 {offsets = [0, 0], sizes = [8, 32], strides = [1, 1]} : vector<8x64xf32> to vector<8x32xf32>
    %253 = arith.index_cast %220 : i32 to index
    %c0_134 = arith.constant 0 : index
    %254 = vector.load %arg19[%253, %c0_134] : memref<64x32xf32, #tpu.memory_space<vmem>>, vector<8x32xf32>
    tpu.vector_store %arg19[%253, %c0_134], %252 {strides = array<i32>} : memref<64x32xf32, #tpu.memory_space<vmem>>, vector<8x32xf32>,
    %255 = vector.extract_strided_slice %243 {offsets = [0, 32], sizes = [8, 32], strides = [1, 1]} : vector<8x64xf32> to vector<8x32xf32>
    %256 = arith.index_cast %217 : i32 to index
    %c0_135 = arith.constant 0 : index
    %257 = vector.load %arg20[%256, %c0_135] : memref<64x32xf32, #tpu.memory_space<vmem>>, vector<8x32xf32>
    tpu.vector_store %arg20[%256, %c0_135], %255 {strides = array<i32>} : memref<64x32xf32, #tpu.memory_space<vmem>>, vector<8x32xf32>,
    %c4_i32_136 = arith.constant 4 : i32
    %c8_i32_137 = arith.constant 8 : i32
    %258 = arith.muli %c4_i32_136, %c8_i32_137 : i32
    %259 = tpu.assume_multiple %258, 8 : i32
    %c7_i32_138 = arith.constant 7 : i32
    %260 = arith.subi %c7_i32_138, %c4_i32_136 : i32
    %c8_i32_139 = arith.constant 8 : i32
    %261 = arith.muli %260, %c8_i32_139 : i32
    %262 = tpu.assume_multiple %261, 8 : i32
    %263 = arith.index_cast %259 : i32 to index
    %c0_140 = arith.constant 0 : index
    %264 = vector.load %arg16[%263, %c0_140] : memref<64x256xf32, #tpu.memory_space<vmem>>, vector<8x256xf32>
    %c0_141 = arith.constant 0 : index
    %c0_142 = arith.constant 0 : index
    %265 = vector.load %arg21[%c0_141, %c0_142] : memref<8x64xf32, #tpu.memory_space<vmem>>, vector<8x64xf32>
    %266 = arith.truncf %265 : vector<8x64xf32> to vector<8x64xbf16>
    %cst_143 = arith.constant dense<0.000000e+00> : vector<8x256xf32>
    %267 = tpu.matmul %266, %89, %cst_143 {dimension_numbers = #tpu.dot_dimension_numbers<[1], [0], [0], [1], [0, 0, 1, 1], [], []>} : vector<8x64xbf16>, vector<64x256xbf16>, vector<8x256xf32> -> vector<8x256xf32>
    %268 = arith.addf %264, %267 : vector<8x256xf32>
    %269 = vector.extract_strided_slice %268 {offsets = [0, 0], sizes = [8, 192], strides = [1, 1]} : vector<8x256xf32> to vector<8x192xf32>
    %270 = arith.negf %269 : vector<8x192xf32>
    %271 = math.exp %270 : vector<8x192xf32>
    %cst_144 = arith.constant 1.000000e+00 : f32
    %272 = vector.broadcast %cst_144 : f32 to vector<8x192xf32>
    %273 = arith.addf %272, %271 : vector<8x192xf32>
    %274 = arith.divf %272, %273 : vector<8x192xf32>
    %275 = vector.extract_strided_slice %268 {offsets = [0, 192], sizes = [8, 64], strides = [1, 1]} : vector<8x256xf32> to vector<8x64xf32>
    %276 = math.tanh %275 : vector<8x64xf32>
    %277 = vector.extract_strided_slice %274 {offsets = [0, 64], sizes = [8, 64], strides = [1, 1]} : vector<8x192xf32> to vector<8x64xf32>
    %c0_145 = arith.constant 0 : index
    %c0_146 = arith.constant 0 : index
    %278 = vector.load %arg22[%c0_145, %c0_146] : memref<8x64xf32, #tpu.memory_space<vmem>>, vector<8x64xf32>
    %279 = arith.mulf %277, %278 : vector<8x64xf32>
    %280 = vector.extract_strided_slice %274 {offsets = [0, 0], sizes = [8, 64], strides = [1, 1]} : vector<8x192xf32> to vector<8x64xf32>
    %281 = arith.mulf %280, %276 : vector<8x64xf32>
    %282 = arith.addf %279, %281 : vector<8x64xf32>
    %283 = vector.extract_strided_slice %274 {offsets = [0, 128], sizes = [8, 64], strides = [1, 1]} : vector<8x192xf32> to vector<8x64xf32>
    %284 = math.tanh %282 : vector<8x64xf32>
    %285 = arith.mulf %283, %284 : vector<8x64xf32>
    %c0_147 = arith.constant 0 : index
    %c0_148 = arith.constant 0 : index
    %286 = vector.load %arg22[%c0_147, %c0_148] : memref<8x64xf32, #tpu.memory_space<vmem>>, vector<8x64xf32>
    tpu.vector_store %arg22[%c0_147, %c0_148], %282 {strides = array<i32>} : memref<8x64xf32, #tpu.memory_space<vmem>>, vector<8x64xf32>,
    %c0_149 = arith.constant 0 : index
    %c0_150 = arith.constant 0 : index
    %287 = vector.load %arg21[%c0_149, %c0_150] : memref<8x64xf32, #tpu.memory_space<vmem>>, vector<8x64xf32>
    tpu.vector_store %arg21[%c0_149, %c0_150], %285 {strides = array<i32>} : memref<8x64xf32, #tpu.memory_space<vmem>>, vector<8x64xf32>,
    %288 = vector.extract_strided_slice %285 {offsets = [0, 0], sizes = [8, 32], strides = [1, 1]} : vector<8x64xf32> to vector<8x32xf32>
    %289 = arith.index_cast %259 : i32 to index
    %c0_151 = arith.constant 0 : index
    %290 = vector.load %arg17[%289, %c0_151] : memref<64x32xf32, #tpu.memory_space<vmem>>, vector<8x32xf32>
    tpu.vector_store %arg17[%289, %c0_151], %288 {strides = array<i32>} : memref<64x32xf32, #tpu.memory_space<vmem>>, vector<8x32xf32>,
    %291 = vector.extract_strided_slice %285 {offsets = [0, 32], sizes = [8, 32], strides = [1, 1]} : vector<8x64xf32> to vector<8x32xf32>
    %292 = arith.index_cast %262 : i32 to index
    %c0_152 = arith.constant 0 : index
    %293 = vector.load %arg18[%292, %c0_152] : memref<64x32xf32, #tpu.memory_space<vmem>>, vector<8x32xf32>
    tpu.vector_store %arg18[%292, %c0_152], %291 {strides = array<i32>} : memref<64x32xf32, #tpu.memory_space<vmem>>, vector<8x32xf32>,
    %294 = vector.extract_strided_slice %285 {offsets = [0, 0], sizes = [8, 32], strides = [1, 1]} : vector<8x64xf32> to vector<8x32xf32>
    %295 = arith.index_cast %262 : i32 to index
    %c0_153 = arith.constant 0 : index
    %296 = vector.load %arg19[%295, %c0_153] : memref<64x32xf32, #tpu.memory_space<vmem>>, vector<8x32xf32>
    tpu.vector_store %arg19[%295, %c0_153], %294 {strides = array<i32>} : memref<64x32xf32, #tpu.memory_space<vmem>>, vector<8x32xf32>,
    %297 = vector.extract_strided_slice %285 {offsets = [0, 32], sizes = [8, 32], strides = [1, 1]} : vector<8x64xf32> to vector<8x32xf32>
    %298 = arith.index_cast %259 : i32 to index
    %c0_154 = arith.constant 0 : index
    %299 = vector.load %arg20[%298, %c0_154] : memref<64x32xf32, #tpu.memory_space<vmem>>, vector<8x32xf32>
    tpu.vector_store %arg20[%298, %c0_154], %297 {strides = array<i32>} : memref<64x32xf32, #tpu.memory_space<vmem>>, vector<8x32xf32>,
    %c5_i32_155 = arith.constant 5 : i32
    %c8_i32_156 = arith.constant 8 : i32
    %300 = arith.muli %c5_i32_155, %c8_i32_156 : i32
    %301 = tpu.assume_multiple %300, 8 : i32
    %c7_i32_157 = arith.constant 7 : i32
    %302 = arith.subi %c7_i32_157, %c5_i32_155 : i32
    %c8_i32_158 = arith.constant 8 : i32
    %303 = arith.muli %302, %c8_i32_158 : i32
    %304 = tpu.assume_multiple %303, 8 : i32
    %305 = arith.index_cast %301 : i32 to index
    %c0_159 = arith.constant 0 : index
    %306 = vector.load %arg16[%305, %c0_159] : memref<64x256xf32, #tpu.memory_space<vmem>>, vector<8x256xf32>
    %c0_160 = arith.constant 0 : index
    %c0_161 = arith.constant 0 : index
    %307 = vector.load %arg21[%c0_160, %c0_161] : memref<8x64xf32, #tpu.memory_space<vmem>>, vector<8x64xf32>
    %308 = arith.truncf %307 : vector<8x64xf32> to vector<8x64xbf16>
    %cst_162 = arith.constant dense<0.000000e+00> : vector<8x256xf32>
    %309 = tpu.matmul %308, %89, %cst_162 {dimension_numbers = #tpu.dot_dimension_numbers<[1], [0], [0], [1], [0, 0, 1, 1], [], []>} : vector<8x64xbf16>, vector<64x256xbf16>, vector<8x256xf32> -> vector<8x256xf32>
    %310 = arith.addf %306, %309 : vector<8x256xf32>
    %311 = vector.extract_strided_slice %310 {offsets = [0, 0], sizes = [8, 192], strides = [1, 1]} : vector<8x256xf32> to vector<8x192xf32>
    %312 = arith.negf %311 : vector<8x192xf32>
    %313 = math.exp %312 : vector<8x192xf32>
    %cst_163 = arith.constant 1.000000e+00 : f32
    %314 = vector.broadcast %cst_163 : f32 to vector<8x192xf32>
    %315 = arith.addf %314, %313 : vector<8x192xf32>
    %316 = arith.divf %314, %315 : vector<8x192xf32>
    %317 = vector.extract_strided_slice %310 {offsets = [0, 192], sizes = [8, 64], strides = [1, 1]} : vector<8x256xf32> to vector<8x64xf32>
    %318 = math.tanh %317 : vector<8x64xf32>
    %319 = vector.extract_strided_slice %316 {offsets = [0, 64], sizes = [8, 64], strides = [1, 1]} : vector<8x192xf32> to vector<8x64xf32>
    %c0_164 = arith.constant 0 : index
    %c0_165 = arith.constant 0 : index
    %320 = vector.load %arg22[%c0_164, %c0_165] : memref<8x64xf32, #tpu.memory_space<vmem>>, vector<8x64xf32>
    %321 = arith.mulf %319, %320 : vector<8x64xf32>
    %322 = vector.extract_strided_slice %316 {offsets = [0, 0], sizes = [8, 64], strides = [1, 1]} : vector<8x192xf32> to vector<8x64xf32>
    %323 = arith.mulf %322, %318 : vector<8x64xf32>
    %324 = arith.addf %321, %323 : vector<8x64xf32>
    %325 = vector.extract_strided_slice %316 {offsets = [0, 128], sizes = [8, 64], strides = [1, 1]} : vector<8x192xf32> to vector<8x64xf32>
    %326 = math.tanh %324 : vector<8x64xf32>
    %327 = arith.mulf %325, %326 : vector<8x64xf32>
    %c0_166 = arith.constant 0 : index
    %c0_167 = arith.constant 0 : index
    %328 = vector.load %arg22[%c0_166, %c0_167] : memref<8x64xf32, #tpu.memory_space<vmem>>, vector<8x64xf32>
    tpu.vector_store %arg22[%c0_166, %c0_167], %324 {strides = array<i32>} : memref<8x64xf32, #tpu.memory_space<vmem>>, vector<8x64xf32>,
    %c0_168 = arith.constant 0 : index
    %c0_169 = arith.constant 0 : index
    %329 = vector.load %arg21[%c0_168, %c0_169] : memref<8x64xf32, #tpu.memory_space<vmem>>, vector<8x64xf32>
    tpu.vector_store %arg21[%c0_168, %c0_169], %327 {strides = array<i32>} : memref<8x64xf32, #tpu.memory_space<vmem>>, vector<8x64xf32>,
    %330 = vector.extract_strided_slice %327 {offsets = [0, 0], sizes = [8, 32], strides = [1, 1]} : vector<8x64xf32> to vector<8x32xf32>
    %331 = arith.index_cast %301 : i32 to index
    %c0_170 = arith.constant 0 : index
    %332 = vector.load %arg17[%331, %c0_170] : memref<64x32xf32, #tpu.memory_space<vmem>>, vector<8x32xf32>
    tpu.vector_store %arg17[%331, %c0_170], %330 {strides = array<i32>} : memref<64x32xf32, #tpu.memory_space<vmem>>, vector<8x32xf32>,
    %333 = vector.extract_strided_slice %327 {offsets = [0, 32], sizes = [8, 32], strides = [1, 1]} : vector<8x64xf32> to vector<8x32xf32>
    %334 = arith.index_cast %304 : i32 to index
    %c0_171 = arith.constant 0 : index
    %335 = vector.load %arg18[%334, %c0_171] : memref<64x32xf32, #tpu.memory_space<vmem>>, vector<8x32xf32>
    tpu.vector_store %arg18[%334, %c0_171], %333 {strides = array<i32>} : memref<64x32xf32, #tpu.memory_space<vmem>>, vector<8x32xf32>,
    %336 = vector.extract_strided_slice %327 {offsets = [0, 0], sizes = [8, 32], strides = [1, 1]} : vector<8x64xf32> to vector<8x32xf32>
    %337 = arith.index_cast %304 : i32 to index
    %c0_172 = arith.constant 0 : index
    %338 = vector.load %arg19[%337, %c0_172] : memref<64x32xf32, #tpu.memory_space<vmem>>, vector<8x32xf32>
    tpu.vector_store %arg19[%337, %c0_172], %336 {strides = array<i32>} : memref<64x32xf32, #tpu.memory_space<vmem>>, vector<8x32xf32>,
    %339 = vector.extract_strided_slice %327 {offsets = [0, 32], sizes = [8, 32], strides = [1, 1]} : vector<8x64xf32> to vector<8x32xf32>
    %340 = arith.index_cast %301 : i32 to index
    %c0_173 = arith.constant 0 : index
    %341 = vector.load %arg20[%340, %c0_173] : memref<64x32xf32, #tpu.memory_space<vmem>>, vector<8x32xf32>
    tpu.vector_store %arg20[%340, %c0_173], %339 {strides = array<i32>} : memref<64x32xf32, #tpu.memory_space<vmem>>, vector<8x32xf32>,
    %c6_i32_174 = arith.constant 6 : i32
    %c8_i32_175 = arith.constant 8 : i32
    %342 = arith.muli %c6_i32_174, %c8_i32_175 : i32
    %343 = tpu.assume_multiple %342, 8 : i32
    %c7_i32_176 = arith.constant 7 : i32
    %344 = arith.subi %c7_i32_176, %c6_i32_174 : i32
    %c8_i32_177 = arith.constant 8 : i32
    %345 = arith.muli %344, %c8_i32_177 : i32
    %346 = tpu.assume_multiple %345, 8 : i32
    %347 = arith.index_cast %343 : i32 to index
    %c0_178 = arith.constant 0 : index
    %348 = vector.load %arg16[%347, %c0_178] : memref<64x256xf32, #tpu.memory_space<vmem>>, vector<8x256xf32>
    %c0_179 = arith.constant 0 : index
    %c0_180 = arith.constant 0 : index
    %349 = vector.load %arg21[%c0_179, %c0_180] : memref<8x64xf32, #tpu.memory_space<vmem>>, vector<8x64xf32>
    %350 = arith.truncf %349 : vector<8x64xf32> to vector<8x64xbf16>
    %cst_181 = arith.constant dense<0.000000e+00> : vector<8x256xf32>
    %351 = tpu.matmul %350, %89, %cst_181 {dimension_numbers = #tpu.dot_dimension_numbers<[1], [0], [0], [1], [0, 0, 1, 1], [], []>} : vector<8x64xbf16>, vector<64x256xbf16>, vector<8x256xf32> -> vector<8x256xf32>
    %352 = arith.addf %348, %351 : vector<8x256xf32>
    %353 = vector.extract_strided_slice %352 {offsets = [0, 0], sizes = [8, 192], strides = [1, 1]} : vector<8x256xf32> to vector<8x192xf32>
    %354 = arith.negf %353 : vector<8x192xf32>
    %355 = math.exp %354 : vector<8x192xf32>
    %cst_182 = arith.constant 1.000000e+00 : f32
    %356 = vector.broadcast %cst_182 : f32 to vector<8x192xf32>
    %357 = arith.addf %356, %355 : vector<8x192xf32>
    %358 = arith.divf %356, %357 : vector<8x192xf32>
    %359 = vector.extract_strided_slice %352 {offsets = [0, 192], sizes = [8, 64], strides = [1, 1]} : vector<8x256xf32> to vector<8x64xf32>
    %360 = math.tanh %359 : vector<8x64xf32>
    %361 = vector.extract_strided_slice %358 {offsets = [0, 64], sizes = [8, 64], strides = [1, 1]} : vector<8x192xf32> to vector<8x64xf32>
    %c0_183 = arith.constant 0 : index
    %c0_184 = arith.constant 0 : index
    %362 = vector.load %arg22[%c0_183, %c0_184] : memref<8x64xf32, #tpu.memory_space<vmem>>, vector<8x64xf32>
    %363 = arith.mulf %361, %362 : vector<8x64xf32>
    %364 = vector.extract_strided_slice %358 {offsets = [0, 0], sizes = [8, 64], strides = [1, 1]} : vector<8x192xf32> to vector<8x64xf32>
    %365 = arith.mulf %364, %360 : vector<8x64xf32>
    %366 = arith.addf %363, %365 : vector<8x64xf32>
    %367 = vector.extract_strided_slice %358 {offsets = [0, 128], sizes = [8, 64], strides = [1, 1]} : vector<8x192xf32> to vector<8x64xf32>
    %368 = math.tanh %366 : vector<8x64xf32>
    %369 = arith.mulf %367, %368 : vector<8x64xf32>
    %c0_185 = arith.constant 0 : index
    %c0_186 = arith.constant 0 : index
    %370 = vector.load %arg22[%c0_185, %c0_186] : memref<8x64xf32, #tpu.memory_space<vmem>>, vector<8x64xf32>
    tpu.vector_store %arg22[%c0_185, %c0_186], %366 {strides = array<i32>} : memref<8x64xf32, #tpu.memory_space<vmem>>, vector<8x64xf32>,
    %c0_187 = arith.constant 0 : index
    %c0_188 = arith.constant 0 : index
    %371 = vector.load %arg21[%c0_187, %c0_188] : memref<8x64xf32, #tpu.memory_space<vmem>>, vector<8x64xf32>
    tpu.vector_store %arg21[%c0_187, %c0_188], %369 {strides = array<i32>} : memref<8x64xf32, #tpu.memory_space<vmem>>, vector<8x64xf32>,
    %372 = vector.extract_strided_slice %369 {offsets = [0, 0], sizes = [8, 32], strides = [1, 1]} : vector<8x64xf32> to vector<8x32xf32>
    %373 = arith.index_cast %343 : i32 to index
    %c0_189 = arith.constant 0 : index
    %374 = vector.load %arg17[%373, %c0_189] : memref<64x32xf32, #tpu.memory_space<vmem>>, vector<8x32xf32>
    tpu.vector_store %arg17[%373, %c0_189], %372 {strides = array<i32>} : memref<64x32xf32, #tpu.memory_space<vmem>>, vector<8x32xf32>,
    %375 = vector.extract_strided_slice %369 {offsets = [0, 32], sizes = [8, 32], strides = [1, 1]} : vector<8x64xf32> to vector<8x32xf32>
    %376 = arith.index_cast %346 : i32 to index
    %c0_190 = arith.constant 0 : index
    %377 = vector.load %arg18[%376, %c0_190] : memref<64x32xf32, #tpu.memory_space<vmem>>, vector<8x32xf32>
    tpu.vector_store %arg18[%376, %c0_190], %375 {strides = array<i32>} : memref<64x32xf32, #tpu.memory_space<vmem>>, vector<8x32xf32>,
    %378 = vector.extract_strided_slice %369 {offsets = [0, 0], sizes = [8, 32], strides = [1, 1]} : vector<8x64xf32> to vector<8x32xf32>
    %379 = arith.index_cast %346 : i32 to index
    %c0_191 = arith.constant 0 : index
    %380 = vector.load %arg19[%379, %c0_191] : memref<64x32xf32, #tpu.memory_space<vmem>>, vector<8x32xf32>
    tpu.vector_store %arg19[%379, %c0_191], %378 {strides = array<i32>} : memref<64x32xf32, #tpu.memory_space<vmem>>, vector<8x32xf32>,
    %381 = vector.extract_strided_slice %369 {offsets = [0, 32], sizes = [8, 32], strides = [1, 1]} : vector<8x64xf32> to vector<8x32xf32>
    %382 = arith.index_cast %343 : i32 to index
    %c0_192 = arith.constant 0 : index
    %383 = vector.load %arg20[%382, %c0_192] : memref<64x32xf32, #tpu.memory_space<vmem>>, vector<8x32xf32>
    tpu.vector_store %arg20[%382, %c0_192], %381 {strides = array<i32>} : memref<64x32xf32, #tpu.memory_space<vmem>>, vector<8x32xf32>,
    %c7_i32_193 = arith.constant 7 : i32
    %c8_i32_194 = arith.constant 8 : i32
    %384 = arith.muli %c7_i32_193, %c8_i32_194 : i32
    %385 = tpu.assume_multiple %384, 8 : i32
    %c7_i32_195 = arith.constant 7 : i32
    %386 = arith.subi %c7_i32_195, %c7_i32_193 : i32
    %c8_i32_196 = arith.constant 8 : i32
    %387 = arith.muli %386, %c8_i32_196 : i32
    %388 = tpu.assume_multiple %387, 8 : i32
    %389 = arith.index_cast %385 : i32 to index
    %c0_197 = arith.constant 0 : index
    %390 = vector.load %arg16[%389, %c0_197] : memref<64x256xf32, #tpu.memory_space<vmem>>, vector<8x256xf32>
    %c0_198 = arith.constant 0 : index
    %c0_199 = arith.constant 0 : index
    %391 = vector.load %arg21[%c0_198, %c0_199] : memref<8x64xf32, #tpu.memory_space<vmem>>, vector<8x64xf32>
    %392 = arith.truncf %391 : vector<8x64xf32> to vector<8x64xbf16>
    %cst_200 = arith.constant dense<0.000000e+00> : vector<8x256xf32>
    %393 = tpu.matmul %392, %89, %cst_200 {dimension_numbers = #tpu.dot_dimension_numbers<[1], [0], [0], [1], [0, 0, 1, 1], [], []>} : vector<8x64xbf16>, vector<64x256xbf16>, vector<8x256xf32> -> vector<8x256xf32>
    %394 = arith.addf %390, %393 : vector<8x256xf32>
    %395 = vector.extract_strided_slice %394 {offsets = [0, 0], sizes = [8, 192], strides = [1, 1]} : vector<8x256xf32> to vector<8x192xf32>
    %396 = arith.negf %395 : vector<8x192xf32>
    %397 = math.exp %396 : vector<8x192xf32>
    %cst_201 = arith.constant 1.000000e+00 : f32
    %398 = vector.broadcast %cst_201 : f32 to vector<8x192xf32>
    %399 = arith.addf %398, %397 : vector<8x192xf32>
    %400 = arith.divf %398, %399 : vector<8x192xf32>
    %401 = vector.extract_strided_slice %394 {offsets = [0, 192], sizes = [8, 64], strides = [1, 1]} : vector<8x256xf32> to vector<8x64xf32>
    %402 = math.tanh %401 : vector<8x64xf32>
    %403 = vector.extract_strided_slice %400 {offsets = [0, 64], sizes = [8, 64], strides = [1, 1]} : vector<8x192xf32> to vector<8x64xf32>
    %c0_202 = arith.constant 0 : index
    %c0_203 = arith.constant 0 : index
    %404 = vector.load %arg22[%c0_202, %c0_203] : memref<8x64xf32, #tpu.memory_space<vmem>>, vector<8x64xf32>
    %405 = arith.mulf %403, %404 : vector<8x64xf32>
    %406 = vector.extract_strided_slice %400 {offsets = [0, 0], sizes = [8, 64], strides = [1, 1]} : vector<8x192xf32> to vector<8x64xf32>
    %407 = arith.mulf %406, %402 : vector<8x64xf32>
    %408 = arith.addf %405, %407 : vector<8x64xf32>
    %409 = vector.extract_strided_slice %400 {offsets = [0, 128], sizes = [8, 64], strides = [1, 1]} : vector<8x192xf32> to vector<8x64xf32>
    %410 = math.tanh %408 : vector<8x64xf32>
    %411 = arith.mulf %409, %410 : vector<8x64xf32>
    %c0_204 = arith.constant 0 : index
    %c0_205 = arith.constant 0 : index
    %412 = vector.load %arg22[%c0_204, %c0_205] : memref<8x64xf32, #tpu.memory_space<vmem>>, vector<8x64xf32>
    tpu.vector_store %arg22[%c0_204, %c0_205], %408 {strides = array<i32>} : memref<8x64xf32, #tpu.memory_space<vmem>>, vector<8x64xf32>,
    %c0_206 = arith.constant 0 : index
    %c0_207 = arith.constant 0 : index
    %413 = vector.load %arg21[%c0_206, %c0_207] : memref<8x64xf32, #tpu.memory_space<vmem>>, vector<8x64xf32>
    tpu.vector_store %arg21[%c0_206, %c0_207], %411 {strides = array<i32>} : memref<8x64xf32, #tpu.memory_space<vmem>>, vector<8x64xf32>,
    %414 = vector.extract_strided_slice %411 {offsets = [0, 0], sizes = [8, 32], strides = [1, 1]} : vector<8x64xf32> to vector<8x32xf32>
    %415 = arith.index_cast %385 : i32 to index
    %c0_208 = arith.constant 0 : index
    %416 = vector.load %arg17[%415, %c0_208] : memref<64x32xf32, #tpu.memory_space<vmem>>, vector<8x32xf32>
    tpu.vector_store %arg17[%415, %c0_208], %414 {strides = array<i32>} : memref<64x32xf32, #tpu.memory_space<vmem>>, vector<8x32xf32>,
    %417 = vector.extract_strided_slice %411 {offsets = [0, 32], sizes = [8, 32], strides = [1, 1]} : vector<8x64xf32> to vector<8x32xf32>
    %418 = arith.index_cast %388 : i32 to index
    %c0_209 = arith.constant 0 : index
    %419 = vector.load %arg18[%418, %c0_209] : memref<64x32xf32, #tpu.memory_space<vmem>>, vector<8x32xf32>
    tpu.vector_store %arg18[%418, %c0_209], %417 {strides = array<i32>} : memref<64x32xf32, #tpu.memory_space<vmem>>, vector<8x32xf32>,
    %420 = vector.extract_strided_slice %411 {offsets = [0, 0], sizes = [8, 32], strides = [1, 1]} : vector<8x64xf32> to vector<8x32xf32>
    %421 = arith.index_cast %388 : i32 to index
    %c0_210 = arith.constant 0 : index
    %422 = vector.load %arg19[%421, %c0_210] : memref<64x32xf32, #tpu.memory_space<vmem>>, vector<8x32xf32>
    tpu.vector_store %arg19[%421, %c0_210], %420 {strides = array<i32>} : memref<64x32xf32, #tpu.memory_space<vmem>>, vector<8x32xf32>,
    %423 = vector.extract_strided_slice %411 {offsets = [0, 32], sizes = [8, 32], strides = [1, 1]} : vector<8x64xf32> to vector<8x32xf32>
    %424 = arith.index_cast %385 : i32 to index
    %c0_211 = arith.constant 0 : index
    %425 = vector.load %arg20[%424, %c0_211] : memref<64x32xf32, #tpu.memory_space<vmem>>, vector<8x32xf32>
    tpu.vector_store %arg20[%424, %c0_211], %423 {strides = array<i32>} : memref<64x32xf32, #tpu.memory_space<vmem>>, vector<8x32xf32>,
    %c8_i32_212 = arith.constant 8 : i32
    %c0_213 = arith.constant 0 : index
    %c0_214 = arith.constant 0 : index
    %426 = vector.load %arg17[%c0_213, %c0_214] : memref<64x32xf32, #tpu.memory_space<vmem>>, vector<64x32xf32>
    %c0_215 = arith.constant 0 : index
    %c0_216 = arith.constant 0 : index
    %427 = vector.load %arg5[%c0_215, %c0_216] : memref<32x256xbf16, #tpu.memory_space<vmem>>, vector<32x256xbf16>
    %428 = arith.truncf %426 : vector<64x32xf32> to vector<64x32xbf16>
    %cst_217 = arith.constant dense<0.000000e+00> : vector<64x256xf32>
    %429 = tpu.matmul %428, %427, %cst_217 {dimension_numbers = #tpu.dot_dimension_numbers<[1], [0], [0], [1], [0, 0, 1, 1], [], []>} : vector<64x32xbf16>, vector<32x256xbf16>, vector<64x256xf32> -> vector<64x256xf32>
    %c0_218 = arith.constant 0 : index
    %c0_219 = arith.constant 0 : index
    %430 = vector.load %arg18[%c0_218, %c0_219] : memref<64x32xf32, #tpu.memory_space<vmem>>, vector<64x32xf32>
    %c0_220 = arith.constant 0 : index
    %c0_221 = arith.constant 0 : index
    %431 = vector.load %arg6[%c0_220, %c0_221] : memref<32x256xbf16, #tpu.memory_space<vmem>>, vector<32x256xbf16>
    %432 = arith.truncf %430 : vector<64x32xf32> to vector<64x32xbf16>
    %cst_222 = arith.constant dense<0.000000e+00> : vector<64x256xf32>
    %433 = tpu.matmul %432, %431, %cst_222 {dimension_numbers = #tpu.dot_dimension_numbers<[1], [0], [0], [1], [0, 0, 1, 1], [], []>} : vector<64x32xbf16>, vector<32x256xbf16>, vector<64x256xf32> -> vector<64x256xf32>
    %434 = arith.addf %429, %433 : vector<64x256xf32>
    %c0_223 = arith.constant 0 : index
    %c0_224 = arith.constant 0 : index
    %435 = vector.load %arg19[%c0_223, %c0_224] : memref<64x32xf32, #tpu.memory_space<vmem>>, vector<64x32xf32>
    %c0_225 = arith.constant 0 : index
    %c0_226 = arith.constant 0 : index
    %436 = vector.load %arg7[%c0_225, %c0_226] : memref<32x256xbf16, #tpu.memory_space<vmem>>, vector<32x256xbf16>
    %437 = arith.truncf %435 : vector<64x32xf32> to vector<64x32xbf16>
    %cst_227 = arith.constant dense<0.000000e+00> : vector<64x256xf32>
    %438 = tpu.matmul %437, %436, %cst_227 {dimension_numbers = #tpu.dot_dimension_numbers<[1], [0], [0], [1], [0, 0, 1, 1], [], []>} : vector<64x32xbf16>, vector<32x256xbf16>, vector<64x256xf32> -> vector<64x256xf32>
    %439 = arith.addf %434, %438 : vector<64x256xf32>
    %c0_228 = arith.constant 0 : index
    %c0_229 = arith.constant 0 : index
    %440 = vector.load %arg20[%c0_228, %c0_229] : memref<64x32xf32, #tpu.memory_space<vmem>>, vector<64x32xf32>
    %c0_230 = arith.constant 0 : index
    %c0_231 = arith.constant 0 : index
    %441 = vector.load %arg8[%c0_230, %c0_231] : memref<32x256xbf16, #tpu.memory_space<vmem>>, vector<32x256xbf16>
    %442 = arith.truncf %440 : vector<64x32xf32> to vector<64x32xbf16>
    %cst_232 = arith.constant dense<0.000000e+00> : vector<64x256xf32>
    %443 = tpu.matmul %442, %441, %cst_232 {dimension_numbers = #tpu.dot_dimension_numbers<[1], [0], [0], [1], [0, 0, 1, 1], [], []>} : vector<64x32xbf16>, vector<32x256xbf16>, vector<64x256xf32> -> vector<64x256xf32>
    %444 = arith.addf %439, %443 : vector<64x256xf32>
    %c0_233 = arith.constant 0 : index
    %c0_234 = arith.constant 0 : index
    %445 = vector.load %arg10[%c0_233, %c0_234] : memref<1x256xf32, #tpu.memory_space<vmem>>, vector<1x256xf32>
    %446 = vector.broadcast %445 : vector<1x256xf32> to vector<64x256xf32>
    %447 = arith.addf %444, %446 : vector<64x256xf32>
    %c0_235 = arith.constant 0 : index
    %c0_236 = arith.constant 0 : index
    %448 = vector.load %arg16[%c0_235, %c0_236] : memref<64x256xf32, #tpu.memory_space<vmem>>, vector<64x256xf32>
    tpu.vector_store %arg16[%c0_235, %c0_236], %447 {strides = array<i32>} : memref<64x256xf32, #tpu.memory_space<vmem>>, vector<64x256xf32>,
    %cst_237 = arith.constant 0.000000e+00 : f32
    %449 = vector.broadcast %cst_237 : f32 to vector<8x64xf32>
    %c0_238 = arith.constant 0 : index
    %c0_239 = arith.constant 0 : index
    %450 = vector.load %arg21[%c0_238, %c0_239] : memref<8x64xf32, #tpu.memory_space<vmem>>, vector<8x64xf32>
    tpu.vector_store %arg21[%c0_238, %c0_239], %449 {strides = array<i32>} : memref<8x64xf32, #tpu.memory_space<vmem>>, vector<8x64xf32>,
    %cst_240 = arith.constant 0.000000e+00 : f32
    %451 = vector.broadcast %cst_240 : f32 to vector<8x64xf32>
    %c0_241 = arith.constant 0 : index
    %c0_242 = arith.constant 0 : index
    %452 = vector.load %arg22[%c0_241, %c0_242] : memref<8x64xf32, #tpu.memory_space<vmem>>, vector<8x64xf32>
    tpu.vector_store %arg22[%c0_241, %c0_242], %451 {strides = array<i32>} : memref<8x64xf32, #tpu.memory_space<vmem>>, vector<8x64xf32>,
    %c0_243 = arith.constant 0 : index
    %c0_244 = arith.constant 0 : index
    %453 = vector.load %arg9[%c0_243, %c0_244] : memref<64x256xbf16, #tpu.memory_space<vmem>>, vector<64x256xbf16>
    %c0_i32_245 = arith.constant 0 : i32
    %c8_i32_246 = arith.constant 8 : i32
    %454 = arith.muli %c0_i32_245, %c8_i32_246 : i32
    %455 = tpu.assume_multiple %454, 8 : i32
    %c7_i32_247 = arith.constant 7 : i32
    %456 = arith.subi %c7_i32_247, %c0_i32_245 : i32
    %c8_i32_248 = arith.constant 8 : i32
    %457 = arith.muli %456, %c8_i32_248 : i32
    %458 = tpu.assume_multiple %457, 8 : i32
    %459 = arith.index_cast %455 : i32 to index
    %c0_249 = arith.constant 0 : index
    %460 = vector.load %arg16[%459, %c0_249] : memref<64x256xf32, #tpu.memory_space<vmem>>, vector<8x256xf32>
    %c0_250 = arith.constant 0 : index
    %c0_251 = arith.constant 0 : index
    %461 = vector.load %arg21[%c0_250, %c0_251] : memref<8x64xf32, #tpu.memory_space<vmem>>, vector<8x64xf32>
    %462 = arith.truncf %461 : vector<8x64xf32> to vector<8x64xbf16>
    %cst_252 = arith.constant dense<0.000000e+00> : vector<8x256xf32>
    %463 = tpu.matmul %462, %453, %cst_252 {dimension_numbers = #tpu.dot_dimension_numbers<[1], [0], [0], [1], [0, 0, 1, 1], [], []>} : vector<8x64xbf16>, vector<64x256xbf16>, vector<8x256xf32> -> vector<8x256xf32>
    %464 = arith.addf %460, %463 : vector<8x256xf32>
    %465 = vector.extract_strided_slice %464 {offsets = [0, 0], sizes = [8, 192], strides = [1, 1]} : vector<8x256xf32> to vector<8x192xf32>
    %466 = arith.negf %465 : vector<8x192xf32>
    %467 = math.exp %466 : vector<8x192xf32>
    %cst_253 = arith.constant 1.000000e+00 : f32
    %468 = vector.broadcast %cst_253 : f32 to vector<8x192xf32>
    %469 = arith.addf %468, %467 : vector<8x192xf32>
    %470 = arith.divf %468, %469 : vector<8x192xf32>
    %471 = vector.extract_strided_slice %464 {offsets = [0, 192], sizes = [8, 64], strides = [1, 1]} : vector<8x256xf32> to vector<8x64xf32>
    %472 = math.tanh %471 : vector<8x64xf32>
    %473 = vector.extract_strided_slice %470 {offsets = [0, 64], sizes = [8, 64], strides = [1, 1]} : vector<8x192xf32> to vector<8x64xf32>
    %c0_254 = arith.constant 0 : index
    %c0_255 = arith.constant 0 : index
    %474 = vector.load %arg22[%c0_254, %c0_255] : memref<8x64xf32, #tpu.memory_space<vmem>>, vector<8x64xf32>
    %475 = arith.mulf %473, %474 : vector<8x64xf32>
    %476 = vector.extract_strided_slice %470 {offsets = [0, 0], sizes = [8, 64], strides = [1, 1]} : vector<8x192xf32> to vector<8x64xf32>
    %477 = arith.mulf %476, %472 : vector<8x64xf32>
    %478 = arith.addf %475, %477 : vector<8x64xf32>
    %479 = vector.extract_strided_slice %470 {offsets = [0, 128], sizes = [8, 64], strides = [1, 1]} : vector<8x192xf32> to vector<8x64xf32>
    %480 = math.tanh %478 : vector<8x64xf32>
    %481 = arith.mulf %479, %480 : vector<8x64xf32>
    %c0_256 = arith.constant 0 : index
    %c0_257 = arith.constant 0 : index
    %482 = vector.load %arg22[%c0_256, %c0_257] : memref<8x64xf32, #tpu.memory_space<vmem>>, vector<8x64xf32>
    tpu.vector_store %arg22[%c0_256, %c0_257], %478 {strides = array<i32>} : memref<8x64xf32, #tpu.memory_space<vmem>>, vector<8x64xf32>,
    %c0_258 = arith.constant 0 : index
    %c0_259 = arith.constant 0 : index
    %483 = vector.load %arg21[%c0_258, %c0_259] : memref<8x64xf32, #tpu.memory_space<vmem>>, vector<8x64xf32>
    tpu.vector_store %arg21[%c0_258, %c0_259], %481 {strides = array<i32>} : memref<8x64xf32, #tpu.memory_space<vmem>>, vector<8x64xf32>,
    %484 = vector.extract_strided_slice %481 {offsets = [0, 0], sizes = [8, 32], strides = [1, 1]} : vector<8x64xf32> to vector<8x32xf32>
    %485 = arith.index_cast %455 : i32 to index
    %c0_260 = arith.constant 0 : index
    %486 = vector.load %arg17[%485, %c0_260] : memref<64x32xf32, #tpu.memory_space<vmem>>, vector<8x32xf32>
    tpu.vector_store %arg17[%485, %c0_260], %484 {strides = array<i32>} : memref<64x32xf32, #tpu.memory_space<vmem>>, vector<8x32xf32>,
    %487 = vector.extract_strided_slice %481 {offsets = [0, 32], sizes = [8, 32], strides = [1, 1]} : vector<8x64xf32> to vector<8x32xf32>
    %488 = arith.index_cast %458 : i32 to index
    %c0_261 = arith.constant 0 : index
    %489 = vector.load %arg18[%488, %c0_261] : memref<64x32xf32, #tpu.memory_space<vmem>>, vector<8x32xf32>
    tpu.vector_store %arg18[%488, %c0_261], %487 {strides = array<i32>} : memref<64x32xf32, #tpu.memory_space<vmem>>, vector<8x32xf32>,
    %c1_i32_262 = arith.constant 1 : i32
    %c8_i32_263 = arith.constant 8 : i32
    %490 = arith.muli %c1_i32_262, %c8_i32_263 : i32
    %491 = tpu.assume_multiple %490, 8 : i32
    %c7_i32_264 = arith.constant 7 : i32
    %492 = arith.subi %c7_i32_264, %c1_i32_262 : i32
    %c8_i32_265 = arith.constant 8 : i32
    %493 = arith.muli %492, %c8_i32_265 : i32
    %494 = tpu.assume_multiple %493, 8 : i32
    %495 = arith.index_cast %491 : i32 to index
    %c0_266 = arith.constant 0 : index
    %496 = vector.load %arg16[%495, %c0_266] : memref<64x256xf32, #tpu.memory_space<vmem>>, vector<8x256xf32>
    %c0_267 = arith.constant 0 : index
    %c0_268 = arith.constant 0 : index
    %497 = vector.load %arg21[%c0_267, %c0_268] : memref<8x64xf32, #tpu.memory_space<vmem>>, vector<8x64xf32>
    %498 = arith.truncf %497 : vector<8x64xf32> to vector<8x64xbf16>
    %cst_269 = arith.constant dense<0.000000e+00> : vector<8x256xf32>
    %499 = tpu.matmul %498, %453, %cst_269 {dimension_numbers = #tpu.dot_dimension_numbers<[1], [0], [0], [1], [0, 0, 1, 1], [], []>} : vector<8x64xbf16>, vector<64x256xbf16>, vector<8x256xf32> -> vector<8x256xf32>
    %500 = arith.addf %496, %499 : vector<8x256xf32>
    %501 = vector.extract_strided_slice %500 {offsets = [0, 0], sizes = [8, 192], strides = [1, 1]} : vector<8x256xf32> to vector<8x192xf32>
    %502 = arith.negf %501 : vector<8x192xf32>
    %503 = math.exp %502 : vector<8x192xf32>
    %cst_270 = arith.constant 1.000000e+00 : f32
    %504 = vector.broadcast %cst_270 : f32 to vector<8x192xf32>
    %505 = arith.addf %504, %503 : vector<8x192xf32>
    %506 = arith.divf %504, %505 : vector<8x192xf32>
    %507 = vector.extract_strided_slice %500 {offsets = [0, 192], sizes = [8, 64], strides = [1, 1]} : vector<8x256xf32> to vector<8x64xf32>
    %508 = math.tanh %507 : vector<8x64xf32>
    %509 = vector.extract_strided_slice %506 {offsets = [0, 64], sizes = [8, 64], strides = [1, 1]} : vector<8x192xf32> to vector<8x64xf32>
    %c0_271 = arith.constant 0 : index
    %c0_272 = arith.constant 0 : index
    %510 = vector.load %arg22[%c0_271, %c0_272] : memref<8x64xf32, #tpu.memory_space<vmem>>, vector<8x64xf32>
    %511 = arith.mulf %509, %510 : vector<8x64xf32>
    %512 = vector.extract_strided_slice %506 {offsets = [0, 0], sizes = [8, 64], strides = [1, 1]} : vector<8x192xf32> to vector<8x64xf32>
    %513 = arith.mulf %512, %508 : vector<8x64xf32>
    %514 = arith.addf %511, %513 : vector<8x64xf32>
    %515 = vector.extract_strided_slice %506 {offsets = [0, 128], sizes = [8, 64], strides = [1, 1]} : vector<8x192xf32> to vector<8x64xf32>
    %516 = math.tanh %514 : vector<8x64xf32>
    %517 = arith.mulf %515, %516 : vector<8x64xf32>
    %c0_273 = arith.constant 0 : index
    %c0_274 = arith.constant 0 : index
    %518 = vector.load %arg22[%c0_273, %c0_274] : memref<8x64xf32, #tpu.memory_space<vmem>>, vector<8x64xf32>
    tpu.vector_store %arg22[%c0_273, %c0_274], %514 {strides = array<i32>} : memref<8x64xf32, #tpu.memory_space<vmem>>, vector<8x64xf32>,
    %c0_275 = arith.constant 0 : index
    %c0_276 = arith.constant 0 : index
    %519 = vector.load %arg21[%c0_275, %c0_276] : memref<8x64xf32, #tpu.memory_space<vmem>>, vector<8x64xf32>
    tpu.vector_store %arg21[%c0_275, %c0_276], %517 {strides = array<i32>} : memref<8x64xf32, #tpu.memory_space<vmem>>, vector<8x64xf32>,
    %520 = vector.extract_strided_slice %517 {offsets = [0, 0], sizes = [8, 32], strides = [1, 1]} : vector<8x64xf32> to vector<8x32xf32>
    %521 = arith.index_cast %491 : i32 to index
    %c0_277 = arith.constant 0 : index
    %522 = vector.load %arg17[%521, %c0_277] : memref<64x32xf32, #tpu.memory_space<vmem>>, vector<8x32xf32>
    tpu.vector_store %arg17[%521, %c0_277], %520 {strides = array<i32>} : memref<64x32xf32, #tpu.memory_space<vmem>>, vector<8x32xf32>,
    %523 = vector.extract_strided_slice %517 {offsets = [0, 32], sizes = [8, 32], strides = [1, 1]} : vector<8x64xf32> to vector<8x32xf32>
    %524 = arith.index_cast %494 : i32 to index
    %c0_278 = arith.constant 0 : index
    %525 = vector.load %arg18[%524, %c0_278] : memref<64x32xf32, #tpu.memory_space<vmem>>, vector<8x32xf32>
    tpu.vector_store %arg18[%524, %c0_278], %523 {strides = array<i32>} : memref<64x32xf32, #tpu.memory_space<vmem>>, vector<8x32xf32>,
    %c2_i32_279 = arith.constant 2 : i32
    %c8_i32_280 = arith.constant 8 : i32
    %526 = arith.muli %c2_i32_279, %c8_i32_280 : i32
    %527 = tpu.assume_multiple %526, 8 : i32
    %c7_i32_281 = arith.constant 7 : i32
    %528 = arith.subi %c7_i32_281, %c2_i32_279 : i32
    %c8_i32_282 = arith.constant 8 : i32
    %529 = arith.muli %528, %c8_i32_282 : i32
    %530 = tpu.assume_multiple %529, 8 : i32
    %531 = arith.index_cast %527 : i32 to index
    %c0_283 = arith.constant 0 : index
    %532 = vector.load %arg16[%531, %c0_283] : memref<64x256xf32, #tpu.memory_space<vmem>>, vector<8x256xf32>
    %c0_284 = arith.constant 0 : index
    %c0_285 = arith.constant 0 : index
    %533 = vector.load %arg21[%c0_284, %c0_285] : memref<8x64xf32, #tpu.memory_space<vmem>>, vector<8x64xf32>
    %534 = arith.truncf %533 : vector<8x64xf32> to vector<8x64xbf16>
    %cst_286 = arith.constant dense<0.000000e+00> : vector<8x256xf32>
    %535 = tpu.matmul %534, %453, %cst_286 {dimension_numbers = #tpu.dot_dimension_numbers<[1], [0], [0], [1], [0, 0, 1, 1], [], []>} : vector<8x64xbf16>, vector<64x256xbf16>, vector<8x256xf32> -> vector<8x256xf32>
    %536 = arith.addf %532, %535 : vector<8x256xf32>
    %537 = vector.extract_strided_slice %536 {offsets = [0, 0], sizes = [8, 192], strides = [1, 1]} : vector<8x256xf32> to vector<8x192xf32>
    %538 = arith.negf %537 : vector<8x192xf32>
    %539 = math.exp %538 : vector<8x192xf32>
    %cst_287 = arith.constant 1.000000e+00 : f32
    %540 = vector.broadcast %cst_287 : f32 to vector<8x192xf32>
    %541 = arith.addf %540, %539 : vector<8x192xf32>
    %542 = arith.divf %540, %541 : vector<8x192xf32>
    %543 = vector.extract_strided_slice %536 {offsets = [0, 192], sizes = [8, 64], strides = [1, 1]} : vector<8x256xf32> to vector<8x64xf32>
    %544 = math.tanh %543 : vector<8x64xf32>
    %545 = vector.extract_strided_slice %542 {offsets = [0, 64], sizes = [8, 64], strides = [1, 1]} : vector<8x192xf32> to vector<8x64xf32>
    %c0_288 = arith.constant 0 : index
    %c0_289 = arith.constant 0 : index
    %546 = vector.load %arg22[%c0_288, %c0_289] : memref<8x64xf32, #tpu.memory_space<vmem>>, vector<8x64xf32>
    %547 = arith.mulf %545, %546 : vector<8x64xf32>
    %548 = vector.extract_strided_slice %542 {offsets = [0, 0], sizes = [8, 64], strides = [1, 1]} : vector<8x192xf32> to vector<8x64xf32>
    %549 = arith.mulf %548, %544 : vector<8x64xf32>
    %550 = arith.addf %547, %549 : vector<8x64xf32>
    %551 = vector.extract_strided_slice %542 {offsets = [0, 128], sizes = [8, 64], strides = [1, 1]} : vector<8x192xf32> to vector<8x64xf32>
    %552 = math.tanh %550 : vector<8x64xf32>
    %553 = arith.mulf %551, %552 : vector<8x64xf32>
    %c0_290 = arith.constant 0 : index
    %c0_291 = arith.constant 0 : index
    %554 = vector.load %arg22[%c0_290, %c0_291] : memref<8x64xf32, #tpu.memory_space<vmem>>, vector<8x64xf32>
    tpu.vector_store %arg22[%c0_290, %c0_291], %550 {strides = array<i32>} : memref<8x64xf32, #tpu.memory_space<vmem>>, vector<8x64xf32>,
    %c0_292 = arith.constant 0 : index
    %c0_293 = arith.constant 0 : index
    %555 = vector.load %arg21[%c0_292, %c0_293] : memref<8x64xf32, #tpu.memory_space<vmem>>, vector<8x64xf32>
    tpu.vector_store %arg21[%c0_292, %c0_293], %553 {strides = array<i32>} : memref<8x64xf32, #tpu.memory_space<vmem>>, vector<8x64xf32>,
    %556 = vector.extract_strided_slice %553 {offsets = [0, 0], sizes = [8, 32], strides = [1, 1]} : vector<8x64xf32> to vector<8x32xf32>
    %557 = arith.index_cast %527 : i32 to index
    %c0_294 = arith.constant 0 : index
    %558 = vector.load %arg17[%557, %c0_294] : memref<64x32xf32, #tpu.memory_space<vmem>>, vector<8x32xf32>
    tpu.vector_store %arg17[%557, %c0_294], %556 {strides = array<i32>} : memref<64x32xf32, #tpu.memory_space<vmem>>, vector<8x32xf32>,
    %559 = vector.extract_strided_slice %553 {offsets = [0, 32], sizes = [8, 32], strides = [1, 1]} : vector<8x64xf32> to vector<8x32xf32>
    %560 = arith.index_cast %530 : i32 to index
    %c0_295 = arith.constant 0 : index
    %561 = vector.load %arg18[%560, %c0_295] : memref<64x32xf32, #tpu.memory_space<vmem>>, vector<8x32xf32>
    tpu.vector_store %arg18[%560, %c0_295], %559 {strides = array<i32>} : memref<64x32xf32, #tpu.memory_space<vmem>>, vector<8x32xf32>,
    %c3_i32_296 = arith.constant 3 : i32
    %c8_i32_297 = arith.constant 8 : i32
    %562 = arith.muli %c3_i32_296, %c8_i32_297 : i32
    %563 = tpu.assume_multiple %562, 8 : i32
    %c7_i32_298 = arith.constant 7 : i32
    %564 = arith.subi %c7_i32_298, %c3_i32_296 : i32
    %c8_i32_299 = arith.constant 8 : i32
    %565 = arith.muli %564, %c8_i32_299 : i32
    %566 = tpu.assume_multiple %565, 8 : i32
    %567 = arith.index_cast %563 : i32 to index
    %c0_300 = arith.constant 0 : index
    %568 = vector.load %arg16[%567, %c0_300] : memref<64x256xf32, #tpu.memory_space<vmem>>, vector<8x256xf32>
    %c0_301 = arith.constant 0 : index
    %c0_302 = arith.constant 0 : index
    %569 = vector.load %arg21[%c0_301, %c0_302] : memref<8x64xf32, #tpu.memory_space<vmem>>, vector<8x64xf32>
    %570 = arith.truncf %569 : vector<8x64xf32> to vector<8x64xbf16>
    %cst_303 = arith.constant dense<0.000000e+00> : vector<8x256xf32>
    %571 = tpu.matmul %570, %453, %cst_303 {dimension_numbers = #tpu.dot_dimension_numbers<[1], [0], [0], [1], [0, 0, 1, 1], [], []>} : vector<8x64xbf16>, vector<64x256xbf16>, vector<8x256xf32> -> vector<8x256xf32>
    %572 = arith.addf %568, %571 : vector<8x256xf32>
    %573 = vector.extract_strided_slice %572 {offsets = [0, 0], sizes = [8, 192], strides = [1, 1]} : vector<8x256xf32> to vector<8x192xf32>
    %574 = arith.negf %573 : vector<8x192xf32>
    %575 = math.exp %574 : vector<8x192xf32>
    %cst_304 = arith.constant 1.000000e+00 : f32
    %576 = vector.broadcast %cst_304 : f32 to vector<8x192xf32>
    %577 = arith.addf %576, %575 : vector<8x192xf32>
    %578 = arith.divf %576, %577 : vector<8x192xf32>
    %579 = vector.extract_strided_slice %572 {offsets = [0, 192], sizes = [8, 64], strides = [1, 1]} : vector<8x256xf32> to vector<8x64xf32>
    %580 = math.tanh %579 : vector<8x64xf32>
    %581 = vector.extract_strided_slice %578 {offsets = [0, 64], sizes = [8, 64], strides = [1, 1]} : vector<8x192xf32> to vector<8x64xf32>
    %c0_305 = arith.constant 0 : index
    %c0_306 = arith.constant 0 : index
    %582 = vector.load %arg22[%c0_305, %c0_306] : memref<8x64xf32, #tpu.memory_space<vmem>>, vector<8x64xf32>
    %583 = arith.mulf %581, %582 : vector<8x64xf32>
    %584 = vector.extract_strided_slice %578 {offsets = [0, 0], sizes = [8, 64], strides = [1, 1]} : vector<8x192xf32> to vector<8x64xf32>
    %585 = arith.mulf %584, %580 : vector<8x64xf32>
    %586 = arith.addf %583, %585 : vector<8x64xf32>
    %587 = vector.extract_strided_slice %578 {offsets = [0, 128], sizes = [8, 64], strides = [1, 1]} : vector<8x192xf32> to vector<8x64xf32>
    %588 = math.tanh %586 : vector<8x64xf32>
    %589 = arith.mulf %587, %588 : vector<8x64xf32>
    %c0_307 = arith.constant 0 : index
    %c0_308 = arith.constant 0 : index
    %590 = vector.load %arg22[%c0_307, %c0_308] : memref<8x64xf32, #tpu.memory_space<vmem>>, vector<8x64xf32>
    tpu.vector_store %arg22[%c0_307, %c0_308], %586 {strides = array<i32>} : memref<8x64xf32, #tpu.memory_space<vmem>>, vector<8x64xf32>,
    %c0_309 = arith.constant 0 : index
    %c0_310 = arith.constant 0 : index
    %591 = vector.load %arg21[%c0_309, %c0_310] : memref<8x64xf32, #tpu.memory_space<vmem>>, vector<8x64xf32>
    tpu.vector_store %arg21[%c0_309, %c0_310], %589 {strides = array<i32>} : memref<8x64xf32, #tpu.memory_space<vmem>>, vector<8x64xf32>,
    %592 = vector.extract_strided_slice %589 {offsets = [0, 0], sizes = [8, 32], strides = [1, 1]} : vector<8x64xf32> to vector<8x32xf32>
    %593 = arith.index_cast %563 : i32 to index
    %c0_311 = arith.constant 0 : index
    %594 = vector.load %arg17[%593, %c0_311] : memref<64x32xf32, #tpu.memory_space<vmem>>, vector<8x32xf32>
    tpu.vector_store %arg17[%593, %c0_311], %592 {strides = array<i32>} : memref<64x32xf32, #tpu.memory_space<vmem>>, vector<8x32xf32>,
    %595 = vector.extract_strided_slice %589 {offsets = [0, 32], sizes = [8, 32], strides = [1, 1]} : vector<8x64xf32> to vector<8x32xf32>
    %596 = arith.index_cast %566 : i32 to index
    %c0_312 = arith.constant 0 : index
    %597 = vector.load %arg18[%596, %c0_312] : memref<64x32xf32, #tpu.memory_space<vmem>>, vector<8x32xf32>
    tpu.vector_store %arg18[%596, %c0_312], %595 {strides = array<i32>} : memref<64x32xf32, #tpu.memory_space<vmem>>, vector<8x32xf32>,
    %c4_i32_313 = arith.constant 4 : i32
    %c8_i32_314 = arith.constant 8 : i32
    %598 = arith.muli %c4_i32_313, %c8_i32_314 : i32
    %599 = tpu.assume_multiple %598, 8 : i32
    %c7_i32_315 = arith.constant 7 : i32
    %600 = arith.subi %c7_i32_315, %c4_i32_313 : i32
    %c8_i32_316 = arith.constant 8 : i32
    %601 = arith.muli %600, %c8_i32_316 : i32
    %602 = tpu.assume_multiple %601, 8 : i32
    %603 = arith.index_cast %599 : i32 to index
    %c0_317 = arith.constant 0 : index
    %604 = vector.load %arg16[%603, %c0_317] : memref<64x256xf32, #tpu.memory_space<vmem>>, vector<8x256xf32>
    %c0_318 = arith.constant 0 : index
    %c0_319 = arith.constant 0 : index
    %605 = vector.load %arg21[%c0_318, %c0_319] : memref<8x64xf32, #tpu.memory_space<vmem>>, vector<8x64xf32>
    %606 = arith.truncf %605 : vector<8x64xf32> to vector<8x64xbf16>
    %cst_320 = arith.constant dense<0.000000e+00> : vector<8x256xf32>
    %607 = tpu.matmul %606, %453, %cst_320 {dimension_numbers = #tpu.dot_dimension_numbers<[1], [0], [0], [1], [0, 0, 1, 1], [], []>} : vector<8x64xbf16>, vector<64x256xbf16>, vector<8x256xf32> -> vector<8x256xf32>
    %608 = arith.addf %604, %607 : vector<8x256xf32>
    %609 = vector.extract_strided_slice %608 {offsets = [0, 0], sizes = [8, 192], strides = [1, 1]} : vector<8x256xf32> to vector<8x192xf32>
    %610 = arith.negf %609 : vector<8x192xf32>
    %611 = math.exp %610 : vector<8x192xf32>
    %cst_321 = arith.constant 1.000000e+00 : f32
    %612 = vector.broadcast %cst_321 : f32 to vector<8x192xf32>
    %613 = arith.addf %612, %611 : vector<8x192xf32>
    %614 = arith.divf %612, %613 : vector<8x192xf32>
    %615 = vector.extract_strided_slice %608 {offsets = [0, 192], sizes = [8, 64], strides = [1, 1]} : vector<8x256xf32> to vector<8x64xf32>
    %616 = math.tanh %615 : vector<8x64xf32>
    %617 = vector.extract_strided_slice %614 {offsets = [0, 64], sizes = [8, 64], strides = [1, 1]} : vector<8x192xf32> to vector<8x64xf32>
    %c0_322 = arith.constant 0 : index
    %c0_323 = arith.constant 0 : index
    %618 = vector.load %arg22[%c0_322, %c0_323] : memref<8x64xf32, #tpu.memory_space<vmem>>, vector<8x64xf32>
    %619 = arith.mulf %617, %618 : vector<8x64xf32>
    %620 = vector.extract_strided_slice %614 {offsets = [0, 0], sizes = [8, 64], strides = [1, 1]} : vector<8x192xf32> to vector<8x64xf32>
    %621 = arith.mulf %620, %616 : vector<8x64xf32>
    %622 = arith.addf %619, %621 : vector<8x64xf32>
    %623 = vector.extract_strided_slice %614 {offsets = [0, 128], sizes = [8, 64], strides = [1, 1]} : vector<8x192xf32> to vector<8x64xf32>
    %624 = math.tanh %622 : vector<8x64xf32>
    %625 = arith.mulf %623, %624 : vector<8x64xf32>
    %c0_324 = arith.constant 0 : index
    %c0_325 = arith.constant 0 : index
    %626 = vector.load %arg22[%c0_324, %c0_325] : memref<8x64xf32, #tpu.memory_space<vmem>>, vector<8x64xf32>
    tpu.vector_store %arg22[%c0_324, %c0_325], %622 {strides = array<i32>} : memref<8x64xf32, #tpu.memory_space<vmem>>, vector<8x64xf32>,
    %c0_326 = arith.constant 0 : index
    %c0_327 = arith.constant 0 : index
    %627 = vector.load %arg21[%c0_326, %c0_327] : memref<8x64xf32, #tpu.memory_space<vmem>>, vector<8x64xf32>
    tpu.vector_store %arg21[%c0_326, %c0_327], %625 {strides = array<i32>} : memref<8x64xf32, #tpu.memory_space<vmem>>, vector<8x64xf32>,
    %628 = vector.extract_strided_slice %625 {offsets = [0, 0], sizes = [8, 32], strides = [1, 1]} : vector<8x64xf32> to vector<8x32xf32>
    %629 = arith.index_cast %599 : i32 to index
    %c0_328 = arith.constant 0 : index
    %630 = vector.load %arg17[%629, %c0_328] : memref<64x32xf32, #tpu.memory_space<vmem>>, vector<8x32xf32>
    tpu.vector_store %arg17[%629, %c0_328], %628 {strides = array<i32>} : memref<64x32xf32, #tpu.memory_space<vmem>>, vector<8x32xf32>,
    %631 = vector.extract_strided_slice %625 {offsets = [0, 32], sizes = [8, 32], strides = [1, 1]} : vector<8x64xf32> to vector<8x32xf32>
    %632 = arith.index_cast %602 : i32 to index
    %c0_329 = arith.constant 0 : index
    %633 = vector.load %arg18[%632, %c0_329] : memref<64x32xf32, #tpu.memory_space<vmem>>, vector<8x32xf32>
    tpu.vector_store %arg18[%632, %c0_329], %631 {strides = array<i32>} : memref<64x32xf32, #tpu.memory_space<vmem>>, vector<8x32xf32>,
    %c5_i32_330 = arith.constant 5 : i32
    %c8_i32_331 = arith.constant 8 : i32
    %634 = arith.muli %c5_i32_330, %c8_i32_331 : i32
    %635 = tpu.assume_multiple %634, 8 : i32
    %c7_i32_332 = arith.constant 7 : i32
    %636 = arith.subi %c7_i32_332, %c5_i32_330 : i32
    %c8_i32_333 = arith.constant 8 : i32
    %637 = arith.muli %636, %c8_i32_333 : i32
    %638 = tpu.assume_multiple %637, 8 : i32
    %639 = arith.index_cast %635 : i32 to index
    %c0_334 = arith.constant 0 : index
    %640 = vector.load %arg16[%639, %c0_334] : memref<64x256xf32, #tpu.memory_space<vmem>>, vector<8x256xf32>
    %c0_335 = arith.constant 0 : index
    %c0_336 = arith.constant 0 : index
    %641 = vector.load %arg21[%c0_335, %c0_336] : memref<8x64xf32, #tpu.memory_space<vmem>>, vector<8x64xf32>
    %642 = arith.truncf %641 : vector<8x64xf32> to vector<8x64xbf16>
    %cst_337 = arith.constant dense<0.000000e+00> : vector<8x256xf32>
    %643 = tpu.matmul %642, %453, %cst_337 {dimension_numbers = #tpu.dot_dimension_numbers<[1], [0], [0], [1], [0, 0, 1, 1], [], []>} : vector<8x64xbf16>, vector<64x256xbf16>, vector<8x256xf32> -> vector<8x256xf32>
    %644 = arith.addf %640, %643 : vector<8x256xf32>
    %645 = vector.extract_strided_slice %644 {offsets = [0, 0], sizes = [8, 192], strides = [1, 1]} : vector<8x256xf32> to vector<8x192xf32>
    %646 = arith.negf %645 : vector<8x192xf32>
    %647 = math.exp %646 : vector<8x192xf32>
    %cst_338 = arith.constant 1.000000e+00 : f32
    %648 = vector.broadcast %cst_338 : f32 to vector<8x192xf32>
    %649 = arith.addf %648, %647 : vector<8x192xf32>
    %650 = arith.divf %648, %649 : vector<8x192xf32>
    %651 = vector.extract_strided_slice %644 {offsets = [0, 192], sizes = [8, 64], strides = [1, 1]} : vector<8x256xf32> to vector<8x64xf32>
    %652 = math.tanh %651 : vector<8x64xf32>
    %653 = vector.extract_strided_slice %650 {offsets = [0, 64], sizes = [8, 64], strides = [1, 1]} : vector<8x192xf32> to vector<8x64xf32>
    %c0_339 = arith.constant 0 : index
    %c0_340 = arith.constant 0 : index
    %654 = vector.load %arg22[%c0_339, %c0_340] : memref<8x64xf32, #tpu.memory_space<vmem>>, vector<8x64xf32>
    %655 = arith.mulf %653, %654 : vector<8x64xf32>
    %656 = vector.extract_strided_slice %650 {offsets = [0, 0], sizes = [8, 64], strides = [1, 1]} : vector<8x192xf32> to vector<8x64xf32>
    %657 = arith.mulf %656, %652 : vector<8x64xf32>
    %658 = arith.addf %655, %657 : vector<8x64xf32>
    %659 = vector.extract_strided_slice %650 {offsets = [0, 128], sizes = [8, 64], strides = [1, 1]} : vector<8x192xf32> to vector<8x64xf32>
    %660 = math.tanh %658 : vector<8x64xf32>
    %661 = arith.mulf %659, %660 : vector<8x64xf32>
    %c0_341 = arith.constant 0 : index
    %c0_342 = arith.constant 0 : index
    %662 = vector.load %arg22[%c0_341, %c0_342] : memref<8x64xf32, #tpu.memory_space<vmem>>, vector<8x64xf32>
    tpu.vector_store %arg22[%c0_341, %c0_342], %658 {strides = array<i32>} : memref<8x64xf32, #tpu.memory_space<vmem>>, vector<8x64xf32>,
    %c0_343 = arith.constant 0 : index
    %c0_344 = arith.constant 0 : index
    %663 = vector.load %arg21[%c0_343, %c0_344] : memref<8x64xf32, #tpu.memory_space<vmem>>, vector<8x64xf32>
    tpu.vector_store %arg21[%c0_343, %c0_344], %661 {strides = array<i32>} : memref<8x64xf32, #tpu.memory_space<vmem>>, vector<8x64xf32>,
    %664 = vector.extract_strided_slice %661 {offsets = [0, 0], sizes = [8, 32], strides = [1, 1]} : vector<8x64xf32> to vector<8x32xf32>
    %665 = arith.index_cast %635 : i32 to index
    %c0_345 = arith.constant 0 : index
    %666 = vector.load %arg17[%665, %c0_345] : memref<64x32xf32, #tpu.memory_space<vmem>>, vector<8x32xf32>
    tpu.vector_store %arg17[%665, %c0_345], %664 {strides = array<i32>} : memref<64x32xf32, #tpu.memory_space<vmem>>, vector<8x32xf32>,
    %667 = vector.extract_strided_slice %661 {offsets = [0, 32], sizes = [8, 32], strides = [1, 1]} : vector<8x64xf32> to vector<8x32xf32>
    %668 = arith.index_cast %638 : i32 to index
    %c0_346 = arith.constant 0 : index
    %669 = vector.load %arg18[%668, %c0_346] : memref<64x32xf32, #tpu.memory_space<vmem>>, vector<8x32xf32>
    tpu.vector_store %arg18[%668, %c0_346], %667 {strides = array<i32>} : memref<64x32xf32, #tpu.memory_space<vmem>>, vector<8x32xf32>,
    %c6_i32_347 = arith.constant 6 : i32
    %c8_i32_348 = arith.constant 8 : i32
    %670 = arith.muli %c6_i32_347, %c8_i32_348 : i32
    %671 = tpu.assume_multiple %670, 8 : i32
    %c7_i32_349 = arith.constant 7 : i32
    %672 = arith.subi %c7_i32_349, %c6_i32_347 : i32
    %c8_i32_350 = arith.constant 8 : i32
    %673 = arith.muli %672, %c8_i32_350 : i32
    %674 = tpu.assume_multiple %673, 8 : i32
    %675 = arith.index_cast %671 : i32 to index
    %c0_351 = arith.constant 0 : index
    %676 = vector.load %arg16[%675, %c0_351] : memref<64x256xf32, #tpu.memory_space<vmem>>, vector<8x256xf32>
    %c0_352 = arith.constant 0 : index
    %c0_353 = arith.constant 0 : index
    %677 = vector.load %arg21[%c0_352, %c0_353] : memref<8x64xf32, #tpu.memory_space<vmem>>, vector<8x64xf32>
    %678 = arith.truncf %677 : vector<8x64xf32> to vector<8x64xbf16>
    %cst_354 = arith.constant dense<0.000000e+00> : vector<8x256xf32>
    %679 = tpu.matmul %678, %453, %cst_354 {dimension_numbers = #tpu.dot_dimension_numbers<[1], [0], [0], [1], [0, 0, 1, 1], [], []>} : vector<8x64xbf16>, vector<64x256xbf16>, vector<8x256xf32> -> vector<8x256xf32>
    %680 = arith.addf %676, %679 : vector<8x256xf32>
    %681 = vector.extract_strided_slice %680 {offsets = [0, 0], sizes = [8, 192], strides = [1, 1]} : vector<8x256xf32> to vector<8x192xf32>
    %682 = arith.negf %681 : vector<8x192xf32>
    %683 = math.exp %682 : vector<8x192xf32>
    %cst_355 = arith.constant 1.000000e+00 : f32
    %684 = vector.broadcast %cst_355 : f32 to vector<8x192xf32>
    %685 = arith.addf %684, %683 : vector<8x192xf32>
    %686 = arith.divf %684, %685 : vector<8x192xf32>
    %687 = vector.extract_strided_slice %680 {offsets = [0, 192], sizes = [8, 64], strides = [1, 1]} : vector<8x256xf32> to vector<8x64xf32>
    %688 = math.tanh %687 : vector<8x64xf32>
    %689 = vector.extract_strided_slice %686 {offsets = [0, 64], sizes = [8, 64], strides = [1, 1]} : vector<8x192xf32> to vector<8x64xf32>
    %c0_356 = arith.constant 0 : index
    %c0_357 = arith.constant 0 : index
    %690 = vector.load %arg22[%c0_356, %c0_357] : memref<8x64xf32, #tpu.memory_space<vmem>>, vector<8x64xf32>
    %691 = arith.mulf %689, %690 : vector<8x64xf32>
    %692 = vector.extract_strided_slice %686 {offsets = [0, 0], sizes = [8, 64], strides = [1, 1]} : vector<8x192xf32> to vector<8x64xf32>
    %693 = arith.mulf %692, %688 : vector<8x64xf32>
    %694 = arith.addf %691, %693 : vector<8x64xf32>
    %695 = vector.extract_strided_slice %686 {offsets = [0, 128], sizes = [8, 64], strides = [1, 1]} : vector<8x192xf32> to vector<8x64xf32>
    %696 = math.tanh %694 : vector<8x64xf32>
    %697 = arith.mulf %695, %696 : vector<8x64xf32>
    %c0_358 = arith.constant 0 : index
    %c0_359 = arith.constant 0 : index
    %698 = vector.load %arg22[%c0_358, %c0_359] : memref<8x64xf32, #tpu.memory_space<vmem>>, vector<8x64xf32>
    tpu.vector_store %arg22[%c0_358, %c0_359], %694 {strides = array<i32>} : memref<8x64xf32, #tpu.memory_space<vmem>>, vector<8x64xf32>,
    %c0_360 = arith.constant 0 : index
    %c0_361 = arith.constant 0 : index
    %699 = vector.load %arg21[%c0_360, %c0_361] : memref<8x64xf32, #tpu.memory_space<vmem>>, vector<8x64xf32>
    tpu.vector_store %arg21[%c0_360, %c0_361], %697 {strides = array<i32>} : memref<8x64xf32, #tpu.memory_space<vmem>>, vector<8x64xf32>,
    %700 = vector.extract_strided_slice %697 {offsets = [0, 0], sizes = [8, 32], strides = [1, 1]} : vector<8x64xf32> to vector<8x32xf32>
    %701 = arith.index_cast %671 : i32 to index
    %c0_362 = arith.constant 0 : index
    %702 = vector.load %arg17[%701, %c0_362] : memref<64x32xf32, #tpu.memory_space<vmem>>, vector<8x32xf32>
    tpu.vector_store %arg17[%701, %c0_362], %700 {strides = array<i32>} : memref<64x32xf32, #tpu.memory_space<vmem>>, vector<8x32xf32>,
    %703 = vector.extract_strided_slice %697 {offsets = [0, 32], sizes = [8, 32], strides = [1, 1]} : vector<8x64xf32> to vector<8x32xf32>
    %704 = arith.index_cast %674 : i32 to index
    %c0_363 = arith.constant 0 : index
    %705 = vector.load %arg18[%704, %c0_363] : memref<64x32xf32, #tpu.memory_space<vmem>>, vector<8x32xf32>
    tpu.vector_store %arg18[%704, %c0_363], %703 {strides = array<i32>} : memref<64x32xf32, #tpu.memory_space<vmem>>, vector<8x32xf32>,
    %c7_i32_364 = arith.constant 7 : i32
    %c8_i32_365 = arith.constant 8 : i32
    %706 = arith.muli %c7_i32_364, %c8_i32_365 : i32
    %707 = tpu.assume_multiple %706, 8 : i32
    %c7_i32_366 = arith.constant 7 : i32
    %708 = arith.subi %c7_i32_366, %c7_i32_364 : i32
    %c8_i32_367 = arith.constant 8 : i32
    %709 = arith.muli %708, %c8_i32_367 : i32
    %710 = tpu.assume_multiple %709, 8 : i32
    %711 = arith.index_cast %707 : i32 to index
    %c0_368 = arith.constant 0 : index
    %712 = vector.load %arg16[%711, %c0_368] : memref<64x256xf32, #tpu.memory_space<vmem>>, vector<8x256xf32>
    %c0_369 = arith.constant 0 : index
    %c0_370 = arith.constant 0 : index
    %713 = vector.load %arg21[%c0_369, %c0_370] : memref<8x64xf32, #tpu.memory_space<vmem>>, vector<8x64xf32>
    %714 = arith.truncf %713 : vector<8x64xf32> to vector<8x64xbf16>
    %cst_371 = arith.constant dense<0.000000e+00> : vector<8x256xf32>
    %715 = tpu.matmul %714, %453, %cst_371 {dimension_numbers = #tpu.dot_dimension_numbers<[1], [0], [0], [1], [0, 0, 1, 1], [], []>} : vector<8x64xbf16>, vector<64x256xbf16>, vector<8x256xf32> -> vector<8x256xf32>
    %716 = arith.addf %712, %715 : vector<8x256xf32>
    %717 = vector.extract_strided_slice %716 {offsets = [0, 0], sizes = [8, 192], strides = [1, 1]} : vector<8x256xf32> to vector<8x192xf32>
    %718 = arith.negf %717 : vector<8x192xf32>
    %719 = math.exp %718 : vector<8x192xf32>
    %cst_372 = arith.constant 1.000000e+00 : f32
    %720 = vector.broadcast %cst_372 : f32 to vector<8x192xf32>
    %721 = arith.addf %720, %719 : vector<8x192xf32>
    %722 = arith.divf %720, %721 : vector<8x192xf32>
    %723 = vector.extract_strided_slice %716 {offsets = [0, 192], sizes = [8, 64], strides = [1, 1]} : vector<8x256xf32> to vector<8x64xf32>
    %724 = math.tanh %723 : vector<8x64xf32>
    %725 = vector.extract_strided_slice %722 {offsets = [0, 64], sizes = [8, 64], strides = [1, 1]} : vector<8x192xf32> to vector<8x64xf32>
    %c0_373 = arith.constant 0 : index
    %c0_374 = arith.constant 0 : index
    %726 = vector.load %arg22[%c0_373, %c0_374] : memref<8x64xf32, #tpu.memory_space<vmem>>, vector<8x64xf32>
    %727 = arith.mulf %725, %726 : vector<8x64xf32>
    %728 = vector.extract_strided_slice %722 {offsets = [0, 0], sizes = [8, 64], strides = [1, 1]} : vector<8x192xf32> to vector<8x64xf32>
    %729 = arith.mulf %728, %724 : vector<8x64xf32>
    %730 = arith.addf %727, %729 : vector<8x64xf32>
    %731 = vector.extract_strided_slice %722 {offsets = [0, 128], sizes = [8, 64], strides = [1, 1]} : vector<8x192xf32> to vector<8x64xf32>
    %732 = math.tanh %730 : vector<8x64xf32>
    %733 = arith.mulf %731, %732 : vector<8x64xf32>
    %c0_375 = arith.constant 0 : index
    %c0_376 = arith.constant 0 : index
    %734 = vector.load %arg22[%c0_375, %c0_376] : memref<8x64xf32, #tpu.memory_space<vmem>>, vector<8x64xf32>
    tpu.vector_store %arg22[%c0_375, %c0_376], %730 {strides = array<i32>} : memref<8x64xf32, #tpu.memory_space<vmem>>, vector<8x64xf32>,
    %c0_377 = arith.constant 0 : index
    %c0_378 = arith.constant 0 : index
    %735 = vector.load %arg21[%c0_377, %c0_378] : memref<8x64xf32, #tpu.memory_space<vmem>>, vector<8x64xf32>
    tpu.vector_store %arg21[%c0_377, %c0_378], %733 {strides = array<i32>} : memref<8x64xf32, #tpu.memory_space<vmem>>, vector<8x64xf32>,
    %736 = vector.extract_strided_slice %733 {offsets = [0, 0], sizes = [8, 32], strides = [1, 1]} : vector<8x64xf32> to vector<8x32xf32>
    %737 = arith.index_cast %707 : i32 to index
    %c0_379 = arith.constant 0 : index
    %738 = vector.load %arg17[%737, %c0_379] : memref<64x32xf32, #tpu.memory_space<vmem>>, vector<8x32xf32>
    tpu.vector_store %arg17[%737, %c0_379], %736 {strides = array<i32>} : memref<64x32xf32, #tpu.memory_space<vmem>>, vector<8x32xf32>,
    %739 = vector.extract_strided_slice %733 {offsets = [0, 32], sizes = [8, 32], strides = [1, 1]} : vector<8x64xf32> to vector<8x32xf32>
    %740 = arith.index_cast %710 : i32 to index
    %c0_380 = arith.constant 0 : index
    %741 = vector.load %arg18[%740, %c0_380] : memref<64x32xf32, #tpu.memory_space<vmem>>, vector<8x32xf32>
    tpu.vector_store %arg18[%740, %c0_380], %739 {strides = array<i32>} : memref<64x32xf32, #tpu.memory_space<vmem>>, vector<8x32xf32>,
    %c8_i32_381 = arith.constant 8 : i32
    %c0_382 = arith.constant 0 : index
    %c0_383 = arith.constant 0 : index
    %742 = vector.load %arg17[%c0_382, %c0_383] : memref<64x32xf32, #tpu.memory_space<vmem>>, vector<64x32xf32>
    %c0_384 = arith.constant 0 : index
    %c0_385 = arith.constant 0 : index
    %743 = vector.load %arg11[%c0_384, %c0_385] : memref<32x128xbf16, #tpu.memory_space<vmem>>, vector<32x128xbf16>
    %744 = arith.truncf %742 : vector<64x32xf32> to vector<64x32xbf16>
    %cst_386 = arith.constant dense<0.000000e+00> : vector<64x128xf32>
    %745 = tpu.matmul %744, %743, %cst_386 {dimension_numbers = #tpu.dot_dimension_numbers<[1], [0], [0], [1], [0, 0, 1, 1], [], []>} : vector<64x32xbf16>, vector<32x128xbf16>, vector<64x128xf32> -> vector<64x128xf32>
    %c0_387 = arith.constant 0 : index
    %c0_388 = arith.constant 0 : index
    %746 = vector.load %arg18[%c0_387, %c0_388] : memref<64x32xf32, #tpu.memory_space<vmem>>, vector<64x32xf32>
    %c0_389 = arith.constant 0 : index
    %c0_390 = arith.constant 0 : index
    %747 = vector.load %arg12[%c0_389, %c0_390] : memref<32x128xbf16, #tpu.memory_space<vmem>>, vector<32x128xbf16>
    %748 = arith.truncf %746 : vector<64x32xf32> to vector<64x32xbf16>
    %cst_391 = arith.constant dense<0.000000e+00> : vector<64x128xf32>
    %749 = tpu.matmul %748, %747, %cst_391 {dimension_numbers = #tpu.dot_dimension_numbers<[1], [0], [0], [1], [0, 0, 1, 1], [], []>} : vector<64x32xbf16>, vector<32x128xbf16>, vector<64x128xf32> -> vector<64x128xf32>
    %750 = arith.addf %745, %749 : vector<64x128xf32>
    %c0_392 = arith.constant 0 : index
    %c0_393 = arith.constant 0 : index
    %751 = vector.load %arg13[%c0_392, %c0_393] : memref<1x128xf32, #tpu.memory_space<vmem>>, vector<1x128xf32>
    %752 = vector.broadcast %751 : vector<1x128xf32> to vector<64x128xf32>
    %753 = arith.addf %750, %752 : vector<64x128xf32>
    %c0_394 = arith.constant 0 : index
    %c0_395 = arith.constant 0 : index
    %754 = vector.load %arg14[%c0_394, %c0_395] : memref<64x128xf32, #tpu.memory_space<vmem>>, vector<64x128xf32>
    tpu.vector_store %arg14[%c0_394, %c0_395], %753 {strides = array<i32>} : memref<64x128xf32, #tpu.memory_space<vmem>>, vector<64x128xf32>,
    return
  }
}

</mosaic_0001>

<llo_original>
// kernel: lstm_tagger_forward.1
$region0: #{lstm_tagger_forward.1}
  #allocation0 [shape = 'u32[]', space=smem, size = 0x4, offset = 0x4, fixed_abs, tag = 'smem constant byte address 0x4 - core index']
  #allocation1 [shape = 'u32[144,128]{1,0:T(1,128)}', space=vmem, size = 0x12000, scoped, tag = 'internal scratch']
  #allocation2 [shape = 'f32[64,24]{1,0:T(8,128)}', space=vmem, size = 0x8000, scoped, tag = 'scratch operand']
  #allocation3 [shape = 'f32[64,256]{1,0:T(8,128)}', space=vmem, size = 0x10000, scoped, tag = 'scratch operand']
  #allocation4 [shape = 'f32[64,32]{1,0:T(8,128)}', space=vmem, size = 0x8000, scoped, tag = 'scratch operand']
  #allocation5 [shape = 'f32[64,32]{1,0:T(8,128)}', space=vmem, size = 0x8000, scoped, tag = 'scratch operand']
  #allocation6 [shape = 'f32[64,32]{1,0:T(8,128)}', space=vmem, size = 0x8000, scoped, tag = 'scratch operand']
  #allocation7 [shape = 'f32[64,32]{1,0:T(8,128)}', space=vmem, size = 0x8000, scoped, tag = 'scratch operand']
  #allocation8 [shape = 'f32[8,64]{1,0:T(8,128)}', space=vmem, size = 0x1000, scoped, tag = 'scratch operand']
  #allocation9 [shape = 'f32[8,64]{1,0:T(8,128)}', space=vmem, size = 0x1000, scoped, tag = 'scratch operand']
  %s0 = inlined_call_operand.vmem [shape: f32[64,24], index: 0, kind: input, shape index: {}]
  %s1 = inlined_call_operand.vmem [shape: bf16[24,256], index: 1, kind: input, shape index: {}]
  %s2 = inlined_call_operand.vmem [shape: bf16[24,256], index: 2, kind: input, shape index: {}]
  %s3 = inlined_call_operand.vmem [shape: bf16[64,256], index: 3, kind: input, shape index: {}]
  %s4 = inlined_call_operand.vmem [shape: f32[1,256], index: 4, kind: input, shape index: {}]
  %s5 = inlined_call_operand.vmem [shape: bf16[32,256], index: 5, kind: input, shape index: {}]
  %s6 = inlined_call_operand.vmem [shape: bf16[32,256], index: 6, kind: input, shape index: {}]
  %s7 = inlined_call_operand.vmem [shape: bf16[32,256], index: 7, kind: input, shape index: {}]
  %s8 = inlined_call_operand.vmem [shape: bf16[32,256], index: 8, kind: input, shape index: {}]
  %s9 = inlined_call_operand.vmem [shape: bf16[64,256], index: 9, kind: input, shape index: {}]
  %s10 = inlined_call_operand.vmem [shape: f32[1,256], index: 10, kind: input, shape index: {}]
  %s11 = inlined_call_operand.vmem [shape: bf16[32,128], index: 11, kind: input, shape index: {}]
  %s12 = inlined_call_operand.vmem [shape: bf16[32,128], index: 12, kind: input, shape index: {}]
  %s13 = inlined_call_operand.vmem [shape: f32[1,128], index: 13, kind: input, shape index: {}]
  %s14 = inlined_call_operand.vmem [shape: f32[64,128], index: 14, kind: output, shape index: {}]
  %s15 = sld [smem:[#allocation0]]
  $region66: #{lstm_tagger_forward.1} parent=0
    _
  %s17 = ssub.s32 1, %s15
  %s18 = scalar_select 0, %s17, %s15
  // Predicated region
  $region2: #{lstm_tagger_forward.1} parent=0 // pred_check
    _
  $region3: #{lstm_tagger_forward.1} parent=0 // pred_check_branch
    %20 = sbr.rel (0) target = $region5
  $region4: #{lstm_tagger_forward.1} parent=0 // pred_region
    _
  $region5: #{lstm_tagger_forward.1} parent=0 // pred_fallthru
    _
  // Predicated region
  $region6: #{lstm_tagger_forward.1} parent=0 // pred_check
    _
  $region7: #{lstm_tagger_forward.1} parent=0 // pred_check_branch
    %22 = sbr.rel (0) target = $region9
  $region8: #{lstm_tagger_forward.1} parent=0 // pred_region
    _
  $region9: #{lstm_tagger_forward.1} parent=0 // pred_fallthru
    _
  // Predicated region
  $region10: #{lstm_tagger_forward.1} parent=0 // pred_check
    _
  $region11: #{lstm_tagger_forward.1} parent=0 // pred_check_branch
    %24 = sbr.rel (0) target = $region13
  $region12: #{lstm_tagger_forward.1} parent=0 // pred_region
    _
  $region13: #{lstm_tagger_forward.1} parent=0 // pred_fallthru
    _
  // Predicated region
  $region14: #{lstm_tagger_forward.1} parent=0 // pred_check
    _
  $region15: #{lstm_tagger_forward.1} parent=0 // pred_check_branch
    %26 = sbr.rel (0) target = $region17
  $region16: #{lstm_tagger_forward.1} parent=0 // pred_region
    _
  $region17: #{lstm_tagger_forward.1} parent=0 // pred_fallthru
    _
  // Predicated region
  $region18: #{lstm_tagger_forward.1} parent=0 // pred_check
    _
  $region19: #{lstm_tagger_forward.1} parent=0 // pred_check_branch
    %28 = sbr.rel (0) target = $region21
  $region20: #{lstm_tagger_forward.1} parent=0 // pred_region
    _
  $region21: #{lstm_tagger_forward.1} parent=0 // pred_fallthru
    _
  // Predicated region
  $region22: #{lstm_tagger_forward.1} parent=0 // pred_check
    _
  $region23: #{lstm_tagger_forward.1} parent=0 // pred_check_branch
    %30 = sbr.rel (0) target = $region25
  $region24: #{lstm_tagger_forward.1} parent=0 // pred_region
    _
  $region25: #{lstm_tagger_forward.1} parent=0 // pred_fallthru
    _
  // Predicated region
  $region26: #{lstm_tagger_forward.1} parent=0 // pred_check
    _
  $region27: #{lstm_tagger_forward.1} parent=0 // pred_check_branch
    %32 = sbr.rel (0) target = $region29
  $region28: #{lstm_tagger_forward.1} parent=0 // pred_region
    _
  $region29: #{lstm_tagger_forward.1} parent=0 // pred_fallthru
    _
  // Predicated region
  $region30: #{lstm_tagger_forward.1} parent=0 // pred_check
    _
  $region31: #{lstm_tagger_forward.1} parent=0 // pred_check_branch
    %34 = sbr.rel (0) target = $region33
  $region32: #{lstm_tagger_forward.1} parent=0 // pred_region
    _
  $region33: #{lstm_tagger_forward.1} parent=0 // pred_fallthru
    _
  // Predicated region
  $region34: #{lstm_tagger_forward.1} parent=0 // pred_check
    _
  $region35: #{lstm_tagger_forward.1} parent=0 // pred_check_branch
    %36 = sbr.rel (0) target = $region37
  $region36: #{lstm_tagger_forward.1} parent=0 // pred_region
    _
  $region37: #{lstm_tagger_forward.1} parent=0 // pred_fallthru
    _
  // Predicated region
  $region38: #{lstm_tagger_forward.1} parent=0 // pred_check
    _
  $region39: #{lstm_tagger_forward.1} parent=0 // pred_check_branch
    %38 = sbr.rel (0) target = $region41
  $region40: #{lstm_tagger_forward.1} parent=0 // pred_region
    _
  $region41: #{lstm_tagger_forward.1} parent=0 // pred_fallthru
    _
  // Predicated region
  $region42: #{lstm_tagger_forward.1} parent=0 // pred_check
    _
  $region43: #{lstm_tagger_forward.1} parent=0 // pred_check_branch
    %40 = sbr.rel (0) target = $region45
  $region44: #{lstm_tagger_forward.1} parent=0 // pred_region
    _
  $region45: #{lstm_tagger_forward.1} parent=0 // pred_fallthru
    _
  // Predicated region
  $region46: #{lstm_tagger_forward.1} parent=0 // pred_check
    _
  $region47: #{lstm_tagger_forward.1} parent=0 // pred_check_branch
    %42 = sbr.rel (0) target = $region49
  $region48: #{lstm_tagger_forward.1} parent=0 // pred_region
    _
  $region49: #{lstm_tagger_forward.1} parent=0 // pred_fallthru
    _
  // Predicated region
  $region50: #{lstm_tagger_forward.1} parent=0 // pred_check
    _
  $region51: #{lstm_tagger_forward.1} parent=0 // pred_check_branch
    %44 = sbr.rel (0) target = $region53
  $region52: #{lstm_tagger_forward.1} parent=0 // pred_region
    _
  $region53: #{lstm_tagger_forward.1} parent=0 // pred_fallthru
    _
  // Predicated region
  $region54: #{lstm_tagger_forward.1} parent=0 // pred_check
    _
  $region55: #{lstm_tagger_forward.1} parent=0 // pred_check_branch
    %46 = sbr.rel (0) target = $region57
  $region56: #{lstm_tagger_forward.1} parent=0 // pred_region
    _
  $region57: #{lstm_tagger_forward.1} parent=0 // pred_fallthru
    _
  %v48 = vld [vmem:[%s0] sm:$0xff]
  %s49 = scalar_lea.vmem [#allocation2], 56
  %vm50 = vcmask 195584
  %51 = vst.msk [vmem:[%s49] sm:$0xff] %vm50, %v48
  %s52 = scalar_lea.vmem %s0, 8
  %v53 = vld [vmem:[%s52] sm:$0xff]
  %s54 = scalar_lea.vmem [#allocation2], 48
  %55 = vst.msk [vmem:[%s54] sm:$0xff] %vm50, %v53
  %s56 = scalar_lea.vmem %s0, 16
  %v57 = vld [vmem:[%s56] sm:$0xff]
  %s58 = scalar_lea.vmem [#allocation2], 40
  %59 = vst.msk [vmem:[%s58] sm:$0xff] %vm50, %v57
  %s60 = scalar_lea.vmem %s0, 24
  %v61 = vld [vmem:[%s60] sm:$0xff]
  %s62 = scalar_lea.vmem [#allocation2], 32
  %63 = vst.msk [vmem:[%s62] sm:$0xff] %vm50, %v61
  %s64 = scalar_lea.vmem %s0, 32
  %v65 = vld [vmem:[%s64] sm:$0xff]
  %s66 = scalar_lea.vmem [#allocation2], 24
  %67 = vst.msk [vmem:[%s66] sm:$0xff] %vm50, %v65
  %s68 = scalar_lea.vmem %s0, 40
  %v69 = vld [vmem:[%s68] sm:$0xff]
  %s70 = scalar_lea.vmem [#allocation2], 16
  %71 = vst.msk [vmem:[%s70] sm:$0xff] %vm50, %v69
  %s72 = scalar_lea.vmem %s0, 48
  %v73 = vld [vmem:[%s72] sm:$0xff]
  %s74 = scalar_lea.vmem [#allocation2], 8
  %75 = vst.msk [vmem:[%s74] sm:$0xff] %vm50, %v73
  %s76 = scalar_lea.vmem %s0, 56
  %v77 = vld [vmem:[%s76] sm:$0xff]
  %78 = vst.msk [vmem:[#allocation2] sm:$0xff] %vm50, %v77
  %v79 = vld [vmem:[%s0] sm:$0xff]
  %v80 = vld [vmem:[%s0 + $0x8] sm:$0xff]
  %v81 = vld [vmem:[%s0 + $0x10] sm:$0xff]
  %v82 = vld [vmem:[%s0 + $0x18] sm:$0xff]
  %v83 = vld [vmem:[%s0 + $0x20] sm:$0xff]
  %v84 = vld [vmem:[%s0 + $0x28] sm:$0xff]
  %v85 = vld [vmem:[%s0 + $0x30] sm:$0xff]
  %v86 = vld [vmem:[%s0 + $0x38] sm:$0xff]
  %v87 = vld [vmem:[%s1] sm:$0xff]
  %v88 = vld [vmem:[%s1 + $0x8] sm:$0xff]
  %v89 = vld [vmem:[%s1 + $0x10] sm:$0xff]
  %v90 = vpack.c.bf16 %v80, %v79
  %v91 = vpack.c.bf16 %v82, %v81
  %v92 = vpack.c.bf16 %v84, %v83
  %v93 = vpack.c.bf16 %v86, %v85
  %v94 = vld [vmem:[#allocation2] sm:$0xff]
  %v95 = vld [vmem:[#allocation2 + $0x8] sm:$0xff]
  %v96 = vld [vmem:[#allocation2 + $0x10] sm:$0xff]
  %v97 = vld [vmem:[#allocation2 + $0x18] sm:$0xff]
  %v98 = vld [vmem:[#allocation2 + $0x20] sm:$0xff]
  %v99 = vld [vmem:[#allocation2 + $0x28] sm:$0xff]
  %v100 = vld [vmem:[#allocation2 + $0x30] sm:$0xff]
  %v101 = vld [vmem:[#allocation2 + $0x38] sm:$0xff]
  %v102 = vld [vmem:[%s2] sm:$0xff]
  %v103 = vld [vmem:[%s2 + $0x8] sm:$0xff]
  %v104 = vld [vmem:[%s2 + $0x10] sm:$0xff]
  %v105 = vpack.c.bf16 %v95, %v94
  %v106 = vpack.c.bf16 %v97, %v96
  %v107 = vpack.c.bf16 %v99, %v98
  %v108 = vpack.c.bf16 %v101, %v100
  %v112 = vunpack.c.l.b16 %v102
  %v113 = vunpack.c.h.b16 %v102
  %v114 = vunpack.c.l.b16 %v103
  %v115 = vunpack.c.h.b16 %v103
  %v116 = vunpack.c.l.b16 %v104
  %v117 = vunpack.c.h.b16 %v104
  %v118 = vpack.c.b16 %v114, %v112
  %v119 = vpack.c.b16 %v115, %v113
  %v120 = vpack.c.b16 %v116, %v116
  %v121 = vpack.c.b16 %v117, %v117
  %v125 = vsel %vm50, %v105, 0
  %v128 = vsel %vm50, %v106, 0
  %v131 = vsel %vm50, %v107, 0
  %v134 = vsel %vm50, %v108, 0
  %vm136 = vcmask 1043456
  %v138 = vsel %vm136, %v120, 0
  %v141 = vsel %vm136, %v121, 0
  %143 = vmatprep.subr.bf16.mxu0 %v119
  %144 = vmatpush1.bf16.msra.mxu0 %v118
  %145 = vmatprep.subr.bf16.mxu0 %v141
  %146 = vmatpush1.bf16.msra.mxu0 %v138
  %147 = vmatprep.subr.bf16.mxu0 0
  %148 = vmatpush1.bf16.msra.mxu0 0
  %149 = vmatprep.subr.bf16.mxu0 0
  %150 = vmatpush1.bf16.msra.mxu0 0
  %151 = vmatprep.subr.bf16.mxu0 0
  %152 = vmatpush1.bf16.msra.mxu0 0
  %153 = vmatprep.subr.bf16.mxu0 0
  %154 = vmatpush1.bf16.msra.mxu0 0
  %155 = vmatprep.subr.bf16.mxu0 0
  %156 = vmatpush1.bf16.msra.mxu0 0
  %157 = vmatprep.subr.bf16.mxu0 0
  %158 = vmatpush1.bf16.msra.mxu0 0
  %159 = vmatprep.subr.bf16.mxu0 0
  %160 = vmatpush1.bf16.msra.mxu0 0
  %161 = vmatprep.subr.bf16.mxu0 0
  %162 = vmatpush1.bf16.msra.mxu0 0
  %163 = vmatprep.subr.bf16.mxu0 0
  %164 = vmatpush1.bf16.msra.mxu0 0
  %165 = vmatprep.subr.bf16.mxu0 0
  %166 = vmatpush1.bf16.msra.mxu0 0
  %167 = vmatprep.subr.bf16.mxu0 0
  %168 = vmatpush1.bf16.msra.mxu0 0
  %169 = vmatprep.subr.bf16.mxu0 0
  %170 = vmatpush1.bf16.msra.mxu0 0
  %171 = vmatprep.subr.bf16.mxu0 0
  %172 = vmatpush1.bf16.msra.mxu0 0
  %173 = vmatprep.subr.bf16.mxu0 0
  %174 = vmatpush1.bf16.msra.mxu0 0
  %175 = vmatprep.mubr.bf16.mxu0 0
  %176 = vmatmul.mubr.bf16.gmra.mrb[0].mxu0 %v125
  %v177 = vpop.f32.mrb[0].mxu0
  %v178 = vadd.f32 0.0, %v177
  %v179 = vpop.f32.mrb[0].mxu0
  %v180 = vadd.f32 0.0, %v179
  %v181 = vpop.f32.mrb[0].mxu0
  %v182 = vadd.f32 0.0, %v181
  %v183 = vpop.f32.mrb[0].mxu0
  %v184 = vadd.f32 0.0, %v183
  %185 = vmatprep.mubr.bf16.mxu0 0
  %186 = vmatmul.mubr.bf16.gmra.mrb[0].mxu0 %v128
  %v187 = vpop.f32.mrb[0].mxu0
  %v188 = vadd.f32 0.0, %v187
  %v189 = vpop.f32.mrb[0].mxu0
  %v190 = vadd.f32 0.0, %v189
  %v191 = vpop.f32.mrb[0].mxu0
  %v192 = vadd.f32 0.0, %v191
  %v193 = vpop.f32.mrb[0].mxu0
  %v194 = vadd.f32 0.0, %v193
  %195 = vmatprep.mubr.bf16.mxu0 0
  %196 = vmatmul.mubr.bf16.gmra.mrb[0].mxu0 %v131
  %v197 = vpop.f32.mrb[0].mxu0
  %v198 = vadd.f32 0.0, %v197
  %v199 = vpop.f32.mrb[0].mxu0
  %v200 = vadd.f32 0.0, %v199
  %v201 = vpop.f32.mrb[0].mxu0
  %v202 = vadd.f32 0.0, %v201
  %v203 = vpop.f32.mrb[0].mxu0
  %v204 = vadd.f32 0.0, %v203
  %205 = vmatprep.mubr.bf16.mxu0 0
  %206 = vmatmul.mubr.bf16.gmra.mrb[0].mxu0 %v134
  %v207 = vpop.f32.mrb[0].mxu0
  %v208 = vadd.f32 0.0, %v207
  %v209 = vpop.f32.mrb[0].mxu0
  %v210 = vadd.f32 0.0, %v209
  %v211 = vpop.f32.mrb[0].mxu0
  %v212 = vadd.f32 0.0, %v211
  %v213 = vpop.f32.mrb[0].mxu0
  %v214 = vadd.f32 0.0, %v213
  %215 = vdwg.mxu0
  %v219 = vunpack.c.l.b16 %v87
  %v220 = vunpack.c.h.b16 %v87
  %v221 = vunpack.c.l.b16 %v88
  %v222 = vunpack.c.h.b16 %v88
  %v223 = vunpack.c.l.b16 %v89
  %v224 = vunpack.c.h.b16 %v89
  %v225 = vpack.c.b16 %v221, %v219
  %v226 = vpack.c.b16 %v222, %v220
  %v227 = vpack.c.b16 %v223, %v223
  %v228 = vpack.c.b16 %v224, %v224
  %v232 = vsel %vm50, %v90, 0
  %v235 = vsel %vm50, %v91, 0
  %v238 = vsel %vm50, %v92, 0
  %v241 = vsel %vm50, %v93, 0
  %v244 = vsel %vm136, %v227, 0
  %v247 = vsel %vm136, %v228, 0
  %249 = vmatprep.subr.bf16.mxu0 %v226
  %250 = vmatpush1.bf16.msra.mxu0 %v225
  %251 = vmatprep.subr.bf16.mxu0 %v247
  %252 = vmatpush1.bf16.msra.mxu0 %v244
  %253 = vmatprep.subr.bf16.mxu0 0
  %254 = vmatpush1.bf16.msra.mxu0 0
  %255 = vmatprep.subr.bf16.mxu0 0
  %256 = vmatpush1.bf16.msra.mxu0 0
  %257 = vmatprep.subr.bf16.mxu0 0
  %258 = vmatpush1.bf16.msra.mxu0 0
  %259 = vmatprep.subr.bf16.mxu0 0
  %260 = vmatpush1.bf16.msra.mxu0 0
  %261 = vmatprep.subr.bf16.mxu0 0
  %262 = vmatpush1.bf16.msra.mxu0 0
  %263 = vmatprep.subr.bf16.mxu0 0
  %264 = vmatpush1.bf16.msra.mxu0 0
  %265 = vmatprep.subr.bf16.mxu0 0
  %266 = vmatpush1.bf16.msra.mxu0 0
  %267 = vmatprep.subr.bf16.mxu0 0
  %268 = vmatpush1.bf16.msra.mxu0 0
  %269 = vmatprep.subr.bf16.mxu0 0
  %270 = vmatpush1.bf16.msra.mxu0 0
  %271 = vmatprep.subr.bf16.mxu0 0
  %272 = vmatpush1.bf16.msra.mxu0 0
  %273 = vmatprep.subr.bf16.mxu0 0
  %274 = vmatpush1.bf16.msra.mxu0 0
  %275 = vmatprep.subr.bf16.mxu0 0
  %276 = vmatpush1.bf16.msra.mxu0 0
  %277 = vmatprep.subr.bf16.mxu0 0
  %278 = vmatpush1.bf16.msra.mxu0 0
  %279 = vmatprep.subr.bf16.mxu0 0
  %280 = vmatpush1.bf16.msra.mxu0 0
  %281 = vmatprep.mubr.bf16.mxu0 0
  %282 = vmatmul.mubr.bf16.gmra.mrb[0].mxu0 %v232
  %v283 = vpop.f32.mrb[0].mxu0
  %v284 = vadd.f32 %v178, %v283
  %v285 = vpop.f32.mrb[0].mxu0
  %v286 = vadd.f32 %v180, %v285
  %v287 = vpop.f32.mrb[0].mxu0
  %v288 = vadd.f32 %v182, %v287
  %v289 = vpop.f32.mrb[0].mxu0
  %v290 = vadd.f32 %v184, %v289
  %291 = vmatprep.mubr.bf16.mxu0 0
  %292 = vmatmul.mubr.bf16.gmra.mrb[0].mxu0 %v235
  %v293 = vpop.f32.mrb[0].mxu0
  %v294 = vadd.f32 %v188, %v293
  %v295 = vpop.f32.mrb[0].mxu0
  %v296 = vadd.f32 %v190, %v295
  %v297 = vpop.f32.mrb[0].mxu0
  %v298 = vadd.f32 %v192, %v297
  %v299 = vpop.f32.mrb[0].mxu0
  %v300 = vadd.f32 %v194, %v299
  %301 = vmatprep.mubr.bf16.mxu0 0
  %302 = vmatmul.mubr.bf16.gmra.mrb[0].mxu0 %v238
  %v303 = vpop.f32.mrb[0].mxu0
  %v304 = vadd.f32 %v198, %v303
  %v305 = vpop.f32.mrb[0].mxu0
  %v306 = vadd.f32 %v200, %v305
  %v307 = vpop.f32.mrb[0].mxu0
  %v308 = vadd.f32 %v202, %v307
  %v309 = vpop.f32.mrb[0].mxu0
  %v310 = vadd.f32 %v204, %v309
  %311 = vmatprep.mubr.bf16.mxu0 0
  %312 = vmatmul.mubr.bf16.gmra.mrb[0].mxu0 %v241
  %v313 = vpop.f32.mrb[0].mxu0
  %v314 = vadd.f32 %v208, %v313
  %v315 = vpop.f32.mrb[0].mxu0
  %v316 = vadd.f32 %v210, %v315
  %v317 = vpop.f32.mrb[0].mxu0
  %v318 = vadd.f32 %v212, %v317
  %v319 = vpop.f32.mrb[0].mxu0
  %v320 = vadd.f32 %v214, %v319
  %321 = vdwg.mxu0
  %v322 = vld [vmem:[%s4] sm:$0x3]
  %v324 = vlaneseq
  %v325 = vshrl.u32 %v324, 7
  %v326 = vsub.s32 0, %v325
  %v327 = vrot.slane %v322, %v326
  %v328 = vlaneseq
  %v329 = vshrl.u32 %v328, 7
  %v330 = vsub.s32 1, %v329
  %v331 = vrot.slane %v322, %v330
  %v334 = vadd.f32 %v284, %v327
  %v335 = vadd.f32 %v286, %v331
  %v336 = vadd.f32 %v288, %v327
  %v337 = vadd.f32 %v290, %v331
  %v338 = vadd.f32 %v294, %v327
  %v339 = vadd.f32 %v296, %v331
  %v340 = vadd.f32 %v298, %v327
  %v341 = vadd.f32 %v300, %v331
  %v342 = vadd.f32 %v304, %v327
  %v343 = vadd.f32 %v306, %v331
  %v344 = vadd.f32 %v308, %v327
  %v345 = vadd.f32 %v310, %v331
  %v346 = vadd.f32 %v314, %v327
  %v347 = vadd.f32 %v316, %v331
  %v348 = vadd.f32 %v318, %v327
  %v349 = vadd.f32 %v320, %v331
  %350 = vst [vmem:[#allocation3] sm:$0xff] %v334
  %351 = vst [vmem:[#allocation3 + $0x8] sm:$0xff] %v335
  %352 = vst [vmem:[#allocation3 + $0x10] sm:$0xff] %v336
  %353 = vst [vmem:[#allocation3 + $0x18] sm:$0xff] %v337
  %354 = vst [vmem:[#allocation3 + $0x20] sm:$0xff] %v338
  %355 = vst [vmem:[#allocation3 + $0x28] sm:$0xff] %v339
  %356 = vst [vmem:[#allocation3 + $0x30] sm:$0xff] %v340
  %357 = vst [vmem:[#allocation3 + $0x38] sm:$0xff] %v341
  %358 = vst [vmem:[#allocation3 + $0x40] sm:$0xff] %v342
  %359 = vst [vmem:[#allocation3 + $0x48] sm:$0xff] %v343
  %360 = vst [vmem:[#allocation3 + $0x50] sm:$0xff] %v344
  %361 = vst [vmem:[#allocation3 + $0x58] sm:$0xff] %v345
  %362 = vst [vmem:[#allocation3 + $0x60] sm:$0xff] %v346
  %363 = vst [vmem:[#allocation3 + $0x68] sm:$0xff] %v347
  %364 = vst [vmem:[#allocation3 + $0x70] sm:$0xff] %v348
  %365 = vst [vmem:[#allocation3 + $0x78] sm:$0xff] %v349
  %vm366 = vcmask 523264
  %367 = vst.msk [vmem:[#allocation8] sm:$0xff] %vm366, 0.0
  %368 = vst.msk [vmem:[#allocation9] sm:$0xff] %vm366, 0.0
  %v369 = vld [vmem:[%s3] sm:$0xff]
  %v370 = vld [vmem:[%s3 + $0x8] sm:$0xff]
  %v371 = vld [vmem:[%s3 + $0x10] sm:$0xff]
  %v372 = vld [vmem:[%s3 + $0x18] sm:$0xff]
  %v373 = vld [vmem:[%s3 + $0x20] sm:$0xff]
  %v374 = vld [vmem:[%s3 + $0x28] sm:$0xff]
  %v375 = vld [vmem:[%s3 + $0x30] sm:$0xff]
  %v376 = vld [vmem:[%s3 + $0x38] sm:$0xff]
  %s377 = smul.u32 0, 2
  %s378 = smul.addr %s377, 8
  %s379 = scalar_lea.vmem [#allocation3], %s378
  %v380 = vld [vmem:[%s379] sm:$0xff]
  %v381 = vld [vmem:[%s379 + $0x8] sm:$0xff]
  %v382 = vld [vmem:[#allocation8] sm:$0xff]
  %v383 = vpack.c.bf16 %v382, %v382
  %v392 = vunpack.c.l.b16 %v369
  %v393 = vunpack.c.h.b16 %v369
  %v394 = vunpack.c.l.b16 %v370
  %v395 = vunpack.c.h.b16 %v370
  %v396 = vunpack.c.l.b16 %v371
  %v397 = vunpack.c.h.b16 %v371
  %v398 = vunpack.c.l.b16 %v372
  %v399 = vunpack.c.h.b16 %v372
  %v400 = vunpack.c.l.b16 %v373
  %v401 = vunpack.c.h.b16 %v373
  %v402 = vunpack.c.l.b16 %v374
  %v403 = vunpack.c.h.b16 %v374
  %v404 = vunpack.c.l.b16 %v375
  %v405 = vunpack.c.h.b16 %v375
  %v406 = vunpack.c.l.b16 %v376
  %v407 = vunpack.c.h.b16 %v376
  %v408 = vpack.c.b16 %v394, %v392
  %v409 = vpack.c.b16 %v395, %v393
  %v410 = vpack.c.b16 %v398, %v396
  %v411 = vpack.c.b16 %v399, %v397
  %v412 = vpack.c.b16 %v402, %v400
  %v413 = vpack.c.b16 %v403, %v401
  %v414 = vpack.c.b16 %v406, %v404
  %v415 = vpack.c.b16 %v407, %v405
  %v425 = vsel %vm366, %v383, 0
  %427 = vmatprep.subr.bf16.mxu0 %v409
  %428 = vmatpush1.bf16.msra.mxu0 %v408
  %429 = vmatprep.subr.bf16.mxu0 %v411
  %430 = vmatpush1.bf16.msra.mxu0 %v410
  %431 = vmatprep.subr.bf16.mxu0 %v413
  %432 = vmatpush1.bf16.msra.mxu0 %v412
  %433 = vmatprep.subr.bf16.mxu0 %v415
  %434 = vmatpush1.bf16.msra.mxu0 %v414
  %435 = vmatprep.subr.bf16.mxu0 0
  %436 = vmatpush1.bf16.msra.mxu0 0
  %437 = vmatprep.subr.bf16.mxu0 0
  %438 = vmatpush1.bf16.msra.mxu0 0
  %439 = vmatprep.subr.bf16.mxu0 0
  %440 = vmatpush1.bf16.msra.mxu0 0
  %441 = vmatprep.subr.bf16.mxu0 0
  %442 = vmatpush1.bf16.msra.mxu0 0
  %443 = vmatprep.subr.bf16.mxu0 0
  %444 = vmatpush1.bf16.msra.mxu0 0
  %445 = vmatprep.subr.bf16.mxu0 0
  %446 = vmatpush1.bf16.msra.mxu0 0
  %447 = vmatprep.subr.bf16.mxu0 0
  %448 = vmatpush1.bf16.msra.mxu0 0
  %449 = vmatprep.subr.bf16.mxu0 0
  %450 = vmatpush1.bf16.msra.mxu0 0
  %451 = vmatprep.subr.bf16.mxu0 0
  %452 = vmatpush1.bf16.msra.mxu0 0
  %453 = vmatprep.subr.bf16.mxu0 0
  %454 = vmatpush1.bf16.msra.mxu0 0
  %455 = vmatprep.subr.bf16.mxu0 0
  %456 = vmatpush1.bf16.msra.mxu0 0
  %457 = vmatprep.subr.bf16.mxu0 0
  %458 = vmatpush1.bf16.msra.mxu0 0
  %459 = vmatprep.mubr.bf16.mxu0 0
  %460 = vmatmul.mubr.bf16.gmra.mrb[0].mxu0 %v425
  %v461 = vpop.f32.mrb[0].mxu0
  %v462 = vadd.f32 0.0, %v461
  %v463 = vpop.f32.mrb[0].mxu0
  %v464 = vadd.f32 0.0, %v463
  %v465 = vpop.f32.mrb[0].mxu0
  %v466 = vpop.f32.mrb[0].mxu0
  %467 = vdwg.mxu0
  %v468 = vadd.f32 %v380, %v462
  %v469 = vadd.f32 %v381, %v464
  %v470 = vxor.u32 %v468, 2147483648
  %v471 = vxor.u32 %v469, 2147483648
  %v472 = vmul.f32 %v470, 1.442695
  %v473 = vpow.pop %v472
  %v474 = vmul.f32 %v471, 1.442695
  %v475 = vpow.pop %v474
  %v476 = vadd.f32 %v473, 1.0
  %v477 = vadd.f32 %v475, 1.0
  %v478 = vrcp.pop %v476
  %v479 = vmul.f32 1.0, %v478
  %v480 = vrcp.pop %v477
  %v481 = vmul.f32 1.0, %v480
  %v482 = vtanh.pop %v469
  %v483 = vld [vmem:[#allocation9] sm:$0xff]
  %485 = vrot.lane.b32.xlu0 %v483, 64
  %v486 = vpop.permute.xlu0 %485
  %v488 = vmul.f32 %v479, %v486
  %490 = vrot.lane.b32.xlu0 %v482, 64
  %v491 = vpop.permute.xlu0 %490
  %v493 = vmul.f32 %v479, %v491
  %495 = vrot.lane.b32.xlu0 %v493, 64
  %v496 = vpop.permute.xlu0 %495
  %v498 = vadd.f32 %v488, %v496
  %v499 = vtanh.pop %v498
  %501 = vrot.lane.b32.xlu0 %v499, 64
  %v502 = vpop.permute.xlu0 %501
  %v504 = vmul.f32 %v481, %v502
  %506 = vrot.lane.b32.xlu0 %v498, 64
  %v507 = vpop.permute.xlu0 %506
  %509 = vst.msk [vmem:[#allocation9] sm:$0xff] %vm366, %v507
  %510 = vst.msk [vmem:[#allocation8] sm:$0xff] %vm366, %v504
  %vm511 = vcmask 261120
  %512 = vst.msk [vmem:[#allocation4] sm:$0xff] %vm511, %v504
  %514 = vrot.lane.b32.xlu0 %v504, 96
  %v515 = vpop.permute.xlu0 %514
  %s517 = scalar_lea.vmem [#allocation5], 56
  %518 = vst.msk [vmem:[%s517] sm:$0xff] %vm511, %v515
  %s519 = scalar_lea.vmem [#allocation6], 56
  %520 = vst.msk [vmem:[%s519] sm:$0xff] %vm511, %v504
  %521 = vst.msk [vmem:[#allocation7] sm:$0xff] %vm511, %v515
  %s522 = smul.u32 1, 2
  %s523 = smul.addr %s522, 8
  %s524 = scalar_lea.vmem [#allocation3], %s523
  %v525 = vld [vmem:[%s524] sm:$0xff]
  %v526 = vld [vmem:[%s524 + $0x8] sm:$0xff]
  %v527 = vld [vmem:[#allocation8] sm:$0xff]
  %v528 = vpack.c.bf16 %v527, %v527
  %v530 = vsel %vm366, %v528, 0
  %532 = vmatprep.subr.bf16.mxu0 %v409
  %533 = vmatpush1.bf16.msra.mxu0 %v408
  %534 = vmatprep.subr.bf16.mxu0 %v411
  %535 = vmatpush1.bf16.msra.mxu0 %v410
  %536 = vmatprep.subr.bf16.mxu0 %v413
  %537 = vmatpush1.bf16.msra.mxu0 %v412
  %538 = vmatprep.subr.bf16.mxu0 %v415
  %539 = vmatpush1.bf16.msra.mxu0 %v414
  %540 = vmatprep.subr.bf16.mxu0 0
  %541 = vmatpush1.bf16.msra.mxu0 0
  %542 = vmatprep.subr.bf16.mxu0 0
  %543 = vmatpush1.bf16.msra.mxu0 0
  %544 = vmatprep.subr.bf16.mxu0 0
  %545 = vmatpush1.bf16.msra.mxu0 0
  %546 = vmatprep.subr.bf16.mxu0 0
  %547 = vmatpush1.bf16.msra.mxu0 0
  %548 = vmatprep.subr.bf16.mxu0 0
  %549 = vmatpush1.bf16.msra.mxu0 0
  %550 = vmatprep.subr.bf16.mxu0 0
  %551 = vmatpush1.bf16.msra.mxu0 0
  %552 = vmatprep.subr.bf16.mxu0 0
  %553 = vmatpush1.bf16.msra.mxu0 0
  %554 = vmatprep.subr.bf16.mxu0 0
  %555 = vmatpush1.bf16.msra.mxu0 0
  %556 = vmatprep.subr.bf16.mxu0 0
  %557 = vmatpush1.bf16.msra.mxu0 0
  %558 = vmatprep.subr.bf16.mxu0 0
  %559 = vmatpush1.bf16.msra.mxu0 0
  %560 = vmatprep.subr.bf16.mxu0 0
  %561 = vmatpush1.bf16.msra.mxu0 0
  %562 = vmatprep.subr.bf16.mxu0 0
  %563 = vmatpush1.bf16.msra.mxu0 0
  %564 = vmatprep.mubr.bf16.mxu0 0
  %565 = vmatmul.mubr.bf16.gmra.mrb[0].mxu0 %v530
  %v566 = vpop.f32.mrb[0].mxu0
  %v567 = vadd.f32 0.0, %v566
  %v568 = vpop.f32.mrb[0].mxu0
  %v569 = vadd.f32 0.0, %v568
  %v570 = vpop.f32.mrb[0].mxu0
  %v571 = vpop.f32.mrb[0].mxu0
  %572 = vdwg.mxu0
  %v573 = vadd.f32 %v525, %v567
  %v574 = vadd.f32 %v526, %v569
  %v575 = vxor.u32 %v573, 2147483648
  %v576 = vxor.u32 %v574, 2147483648
  %v577 = vmul.f32 %v575, 1.442695
  %v578 = vpow.pop %v577
  %v579 = vmul.f32 %v576, 1.442695
  %v580 = vpow.pop %v579
  %v581 = vadd.f32 %v578, 1.0
  %v582 = vadd.f32 %v580, 1.0
  %v583 = vrcp.pop %v581
  %v584 = vmul.f32 1.0, %v583
  %v585 = vrcp.pop %v582
  %v586 = vmul.f32 1.0, %v585
  %v587 = vtanh.pop %v574
  %v588 = vld [vmem:[#allocation9] sm:$0xff]
  %590 = vrot.lane.b32.xlu0 %v588, 64
  %v591 = vpop.permute.xlu0 %590
  %v593 = vmul.f32 %v584, %v591
  %595 = vrot.lane.b32.xlu0 %v587, 64
  %v596 = vpop.permute.xlu0 %595
  %v598 = vmul.f32 %v584, %v596
  %600 = vrot.lane.b32.xlu0 %v598, 64
  %v601 = vpop.permute.xlu0 %600
  %v603 = vadd.f32 %v593, %v601
  %v604 = vtanh.pop %v603
  %606 = vrot.lane.b32.xlu0 %v604, 64
  %v607 = vpop.permute.xlu0 %606
  %v609 = vmul.f32 %v586, %v607
  %611 = vrot.lane.b32.xlu0 %v603, 64
  %v612 = vpop.permute.xlu0 %611
  %614 = vst.msk [vmem:[#allocation9] sm:$0xff] %vm366, %v612
  %615 = vst.msk [vmem:[#allocation8] sm:$0xff] %vm366, %v609
  %s616 = scalar_lea.vmem [#allocation4], 8
  %617 = vst.msk [vmem:[%s616] sm:$0xff] %vm511, %v609
  %619 = vrot.lane.b32.xlu0 %v609, 96
  %v620 = vpop.permute.xlu0 %619
  %s622 = scalar_lea.vmem [#allocation5], 48
  %623 = vst.msk [vmem:[%s622] sm:$0xff] %vm511, %v620
  %s624 = scalar_lea.vmem [#allocation6], 48
  %625 = vst.msk [vmem:[%s624] sm:$0xff] %vm511, %v609
  %s626 = scalar_lea.vmem [#allocation7], 8
  %627 = vst.msk [vmem:[%s626] sm:$0xff] %vm511, %v620
  %s628 = smul.u32 2, 2
  %s629 = smul.addr %s628, 8
  %s630 = scalar_lea.vmem [#allocation3], %s629
  %v631 = vld [vmem:[%s630] sm:$0xff]
  %v632 = vld [vmem:[%s630 + $0x8] sm:$0xff]
  %v633 = vld [vmem:[#allocation8] sm:$0xff]
  %v634 = vpack.c.bf16 %v633, %v633
  %v636 = vsel %vm366, %v634, 0
  %638 = vmatprep.subr.bf16.mxu0 %v409
  %639 = vmatpush1.bf16.msra.mxu0 %v408
  %640 = vmatprep.subr.bf16.mxu0 %v411
  %641 = vmatpush1.bf16.msra.mxu0 %v410
  %642 = vmatprep.subr.bf16.mxu0 %v413
  %643 = vmatpush1.bf16.msra.mxu0 %v412
  %644 = vmatprep.subr.bf16.mxu0 %v415
  %645 = vmatpush1.bf16.msra.mxu0 %v414
  %646 = vmatprep.subr.bf16.mxu0 0
  %647 = vmatpush1.bf16.msra.mxu0 0
  %648 = vmatprep.subr.bf16.mxu0 0
  %649 = vmatpush1.bf16.msra.mxu0 0
  %650 = vmatprep.subr.bf16.mxu0 0
  %651 = vmatpush1.bf16.msra.mxu0 0
  %652 = vmatprep.subr.bf16.mxu0 0
  %653 = vmatpush1.bf16.msra.mxu0 0
  %654 = vmatprep.subr.bf16.mxu0 0
  %655 = vmatpush1.bf16.msra.mxu0 0
  %656 = vmatprep.subr.bf16.mxu0 0
  %657 = vmatpush1.bf16.msra.mxu0 0
  %658 = vmatprep.subr.bf16.mxu0 0
  %659 = vmatpush1.bf16.msra.mxu0 0
  %660 = vmatprep.subr.bf16.mxu0 0
  %661 = vmatpush1.bf16.msra.mxu0 0
  %662 = vmatprep.subr.bf16.mxu0 0
  %663 = vmatpush1.bf16.msra.mxu0 0
  %664 = vmatprep.subr.bf16.mxu0 0
  %665 = vmatpush1.bf16.msra.mxu0 0
  %666 = vmatprep.subr.bf16.mxu0 0
  %667 = vmatpush1.bf16.msra.mxu0 0
  %668 = vmatprep.subr.bf16.mxu0 0
  %669 = vmatpush1.bf16.msra.mxu0 0
  %670 = vmatprep.mubr.bf16.mxu0 0
  %671 = vmatmul.mubr.bf16.gmra.mrb[0].mxu0 %v636
  %v672 = vpop.f32.mrb[0].mxu0
  %v673 = vadd.f32 0.0, %v672
  %v674 = vpop.f32.mrb[0].mxu0
  %v675 = vadd.f32 0.0, %v674
  %v676 = vpop.f32.mrb[0].mxu0
  %v677 = vpop.f32.mrb[0].mxu0
  %678 = vdwg.mxu0
  %v679 = vadd.f32 %v631, %v673
  %v680 = vadd.f32 %v632, %v675
  %v681 = vxor.u32 %v679, 2147483648
  %v682 = vxor.u32 %v680, 2147483648
  %v683 = vmul.f32 %v681, 1.442695
  %v684 = vpow.pop %v683
  %v685 = vmul.f32 %v682, 1.442695
  %v686 = vpow.pop %v685
  %v687 = vadd.f32 %v684, 1.0
  %v688 = vadd.f32 %v686, 1.0
  %v689 = vrcp.pop %v687
  %v690 = vmul.f32 1.0, %v689
  %v691 = vrcp.pop %v688
  %v692 = vmul.f32 1.0, %v691
  %v693 = vtanh.pop %v680
  %v694 = vld [vmem:[#allocation9] sm:$0xff]
  %696 = vrot.lane.b32.xlu0 %v694, 64
  %v697 = vpop.permute.xlu0 %696
  %v699 = vmul.f32 %v690, %v697
  %701 = vrot.lane.b32.xlu0 %v693, 64
  %v702 = vpop.permute.xlu0 %701
  %v704 = vmul.f32 %v690, %v702
  %706 = vrot.lane.b32.xlu0 %v704, 64
  %v707 = vpop.permute.xlu0 %706
  %v709 = vadd.f32 %v699, %v707
  %v710 = vtanh.pop %v709
  %712 = vrot.lane.b32.xlu0 %v710, 64
  %v713 = vpop.permute.xlu0 %712
  %v715 = vmul.f32 %v692, %v713
  %717 = vrot.lane.b32.xlu0 %v709, 64
  %v718 = vpop.permute.xlu0 %717
  %720 = vst.msk [vmem:[#allocation9] sm:$0xff] %vm366, %v718
  %721 = vst.msk [vmem:[#allocation8] sm:$0xff] %vm366, %v715
  %s722 = scalar_lea.vmem [#allocation4], 16
  %723 = vst.msk [vmem:[%s722] sm:$0xff] %vm511, %v715
  %725 = vrot.lane.b32.xlu0 %v715, 96
  %v726 = vpop.permute.xlu0 %725
  %s728 = scalar_lea.vmem [#allocation5], 40
  %729 = vst.msk [vmem:[%s728] sm:$0xff] %vm511, %v726
  %s730 = scalar_lea.vmem [#allocation6], 40
  %731 = vst.msk [vmem:[%s730] sm:$0xff] %vm511, %v715
  %s732 = scalar_lea.vmem [#allocation7], 16
  %733 = vst.msk [vmem:[%s732] sm:$0xff] %vm511, %v726
  %s734 = smul.u32 3, 2
  %s735 = smul.addr %s734, 8
  %s736 = scalar_lea.vmem [#allocation3], %s735
  %v737 = vld [vmem:[%s736] sm:$0xff]
  %v738 = vld [vmem:[%s736 + $0x8] sm:$0xff]
  %v739 = vld [vmem:[#allocation8] sm:$0xff]
  %v740 = vpack.c.bf16 %v739, %v739
  %v742 = vsel %vm366, %v740, 0
  %744 = vmatprep.subr.bf16.mxu0 %v409
  %745 = vmatpush1.bf16.msra.mxu0 %v408
  %746 = vmatprep.subr.bf16.mxu0 %v411
  %747 = vmatpush1.bf16.msra.mxu0 %v410
  %748 = vmatprep.subr.bf16.mxu0 %v413
  %749 = vmatpush1.bf16.msra.mxu0 %v412
  %750 = vmatprep.subr.bf16.mxu0 %v415
  %751 = vmatpush1.bf16.msra.mxu0 %v414
  %752 = vmatprep.subr.bf16.mxu0 0
  %753 = vmatpush1.bf16.msra.mxu0 0
  %754 = vmatprep.subr.bf16.mxu0 0
  %755 = vmatpush1.bf16.msra.mxu0 0
  %756 = vmatprep.subr.bf16.mxu0 0
  %757 = vmatpush1.bf16.msra.mxu0 0
  %758 = vmatprep.subr.bf16.mxu0 0
  %759 = vmatpush1.bf16.msra.mxu0 0
  %760 = vmatprep.subr.bf16.mxu0 0
  %761 = vmatpush1.bf16.msra.mxu0 0
  %762 = vmatprep.subr.bf16.mxu0 0
  %763 = vmatpush1.bf16.msra.mxu0 0
  %764 = vmatprep.subr.bf16.mxu0 0
  %765 = vmatpush1.bf16.msra.mxu0 0
  %766 = vmatprep.subr.bf16.mxu0 0
  %767 = vmatpush1.bf16.msra.mxu0 0
  %768 = vmatprep.subr.bf16.mxu0 0
  %769 = vmatpush1.bf16.msra.mxu0 0
  %770 = vmatprep.subr.bf16.mxu0 0
  %771 = vmatpush1.bf16.msra.mxu0 0
  %772 = vmatprep.subr.bf16.mxu0 0
  %773 = vmatpush1.bf16.msra.mxu0 0
  %774 = vmatprep.subr.bf16.mxu0 0
  %775 = vmatpush1.bf16.msra.mxu0 0
  %776 = vmatprep.mubr.bf16.mxu0 0
  %777 = vmatmul.mubr.bf16.gmra.mrb[0].mxu0 %v742
  %v778 = vpop.f32.mrb[0].mxu0
  %v779 = vadd.f32 0.0, %v778
  %v780 = vpop.f32.mrb[0].mxu0
  %v781 = vadd.f32 0.0, %v780
  %v782 = vpop.f32.mrb[0].mxu0
  %v783 = vpop.f32.mrb[0].mxu0
  %784 = vdwg.mxu0
  %v785 = vadd.f32 %v737, %v779
  %v786 = vadd.f32 %v738, %v781
  %v787 = vxor.u32 %v785, 2147483648
  %v788 = vxor.u32 %v786, 2147483648
  %v789 = vmul.f32 %v787, 1.442695
  %v790 = vpow.pop %v789
  %v791 = vmul.f32 %v788, 1.442695
  %v792 = vpow.pop %v791
  %v793 = vadd.f32 %v790, 1.0
  %v794 = vadd.f32 %v792, 1.0
  %v795 = vrcp.pop %v793
  %v796 = vmul.f32 1.0, %v795
  %v797 = vrcp.pop %v794
  %v798 = vmul.f32 1.0, %v797
  %v799 = vtanh.pop %v786
  %v800 = vld [vmem:[#allocation9] sm:$0xff]
  %802 = vrot.lane.b32.xlu0 %v800, 64
  %v803 = vpop.permute.xlu0 %802
  %v805 = vmul.f32 %v796, %v803
  %807 = vrot.lane.b32.xlu0 %v799, 64
  %v808 = vpop.permute.xlu0 %807
  %v810 = vmul.f32 %v796, %v808
  %812 = vrot.lane.b32.xlu0 %v810, 64
  %v813 = vpop.permute.xlu0 %812
  %v815 = vadd.f32 %v805, %v813
  %v816 = vtanh.pop %v815
  %818 = vrot.lane.b32.xlu0 %v816, 64
  %v819 = vpop.permute.xlu0 %818
  %v821 = vmul.f32 %v798, %v819
  %823 = vrot.lane.b32.xlu0 %v815, 64
  %v824 = vpop.permute.xlu0 %823
  %826 = vst.msk [vmem:[#allocation9] sm:$0xff] %vm366, %v824
  %827 = vst.msk [vmem:[#allocation8] sm:$0xff] %vm366, %v821
  %s828 = scalar_lea.vmem [#allocation4], 24
  %829 = vst.msk [vmem:[%s828] sm:$0xff] %vm511, %v821
  %831 = vrot.lane.b32.xlu0 %v821, 96
  %v832 = vpop.permute.xlu0 %831
  %s834 = scalar_lea.vmem [#allocation5], 32
  %835 = vst.msk [vmem:[%s834] sm:$0xff] %vm511, %v832
  %s836 = scalar_lea.vmem [#allocation6], 32
  %837 = vst.msk [vmem:[%s836] sm:$0xff] %vm511, %v821
  %s838 = scalar_lea.vmem [#allocation7], 24
  %839 = vst.msk [vmem:[%s838] sm:$0xff] %vm511, %v832
  %s840 = smul.u32 4, 2
  %s841 = smul.addr %s840, 8
  %s842 = scalar_lea.vmem [#allocation3], %s841
  %v843 = vld [vmem:[%s842] sm:$0xff]
  %v844 = vld [vmem:[%s842 + $0x8] sm:$0xff]
  %v845 = vld [vmem:[#allocation8] sm:$0xff]
  %v846 = vpack.c.bf16 %v845, %v845
  %v848 = vsel %vm366, %v846, 0
  %850 = vmatprep.subr.bf16.mxu0 %v409
  %851 = vmatpush1.bf16.msra.mxu0 %v408
  %852 = vmatprep.subr.bf16.mxu0 %v411
  %853 = vmatpush1.bf16.msra.mxu0 %v410
  %854 = vmatprep.subr.bf16.mxu0 %v413
  %855 = vmatpush1.bf16.msra.mxu0 %v412
  %856 = vmatprep.subr.bf16.mxu0 %v415
  %857 = vmatpush1.bf16.msra.mxu0 %v414
  %858 = vmatprep.subr.bf16.mxu0 0
  %859 = vmatpush1.bf16.msra.mxu0 0
  %860 = vmatprep.subr.bf16.mxu0 0
  %861 = vmatpush1.bf16.msra.mxu0 0
  %862 = vmatprep.subr.bf16.mxu0 0
  %863 = vmatpush1.bf16.msra.mxu0 0
  %864 = vmatprep.subr.bf16.mxu0 0
  %865 = vmatpush1.bf16.msra.mxu0 0
  %866 = vmatprep.subr.bf16.mxu0 0
  %867 = vmatpush1.bf16.msra.mxu0 0
  %868 = vmatprep.subr.bf16.mxu0 0
  %869 = vmatpush1.bf16.msra.mxu0 0
  %870 = vmatprep.subr.bf16.mxu0 0
  %871 = vmatpush1.bf16.msra.mxu0 0
  %872 = vmatprep.subr.bf16.mxu0 0
  %873 = vmatpush1.bf16.msra.mxu0 0
  %874 = vmatprep.subr.bf16.mxu0 0
  %875 = vmatpush1.bf16.msra.mxu0 0
  %876 = vmatprep.subr.bf16.mxu0 0
  %877 = vmatpush1.bf16.msra.mxu0 0
  %878 = vmatprep.subr.bf16.mxu0 0
  %879 = vmatpush1.bf16.msra.mxu0 0
  %880 = vmatprep.subr.bf16.mxu0 0
  %881 = vmatpush1.bf16.msra.mxu0 0
  %882 = vmatprep.mubr.bf16.mxu0 0
  %883 = vmatmul.mubr.bf16.gmra.mrb[0].mxu0 %v848
  %v884 = vpop.f32.mrb[0].mxu0
  %v885 = vadd.f32 0.0, %v884
  %v886 = vpop.f32.mrb[0].mxu0
  %v887 = vadd.f32 0.0, %v886
  %v888 = vpop.f32.mrb[0].mxu0
  %v889 = vpop.f32.mrb[0].mxu0
  %890 = vdwg.mxu0
  %v891 = vadd.f32 %v843, %v885
  %v892 = vadd.f32 %v844, %v887
  %v893 = vxor.u32 %v891, 2147483648
  %v894 = vxor.u32 %v892, 2147483648
  %v895 = vmul.f32 %v893, 1.442695
  %v896 = vpow.pop %v895
  %v897 = vmul.f32 %v894, 1.442695
  %v898 = vpow.pop %v897
  %v899 = vadd.f32 %v896, 1.0
  %v900 = vadd.f32 %v898, 1.0
  %v901 = vrcp.pop %v899
  %v902 = vmul.f32 1.0, %v901
  %v903 = vrcp.pop %v900
  %v904 = vmul.f32 1.0, %v903
  %v905 = vtanh.pop %v892
  %v906 = vld [vmem:[#allocation9] sm:$0xff]
  %908 = vrot.lane.b32.xlu0 %v906, 64
  %v909 = vpop.permute.xlu0 %908
  %v911 = vmul.f32 %v902, %v909
  %913 = vrot.lane.b32.xlu0 %v905, 64
  %v914 = vpop.permute.xlu0 %913
  %v916 = vmul.f32 %v902, %v914
  %918 = vrot.lane.b32.xlu0 %v916, 64
  %v919 = vpop.permute.xlu0 %918
  %v921 = vadd.f32 %v911, %v919
  %v922 = vtanh.pop %v921
  %924 = vrot.lane.b32.xlu0 %v922, 64
  %v925 = vpop.permute.xlu0 %924
  %v927 = vmul.f32 %v904, %v925
  %929 = vrot.lane.b32.xlu0 %v921, 64
  %v930 = vpop.permute.xlu0 %929
  %932 = vst.msk [vmem:[#allocation9] sm:$0xff] %vm366, %v930
  %933 = vst.msk [vmem:[#allocation8] sm:$0xff] %vm366, %v927
  %s934 = scalar_lea.vmem [#allocation4], 32
  %935 = vst.msk [vmem:[%s934] sm:$0xff] %vm511, %v927
  %937 = vrot.lane.b32.xlu0 %v927, 96
  %v938 = vpop.permute.xlu0 %937
  %s940 = scalar_lea.vmem [#allocation5], 24
  %941 = vst.msk [vmem:[%s940] sm:$0xff] %vm511, %v938
  %s942 = scalar_lea.vmem [#allocation6], 24
  %943 = vst.msk [vmem:[%s942] sm:$0xff] %vm511, %v927
  %s944 = scalar_lea.vmem [#allocation7], 32
  %945 = vst.msk [vmem:[%s944] sm:$0xff] %vm511, %v938
  %s946 = smul.u32 5, 2
  %s947 = smul.addr %s946, 8
  %s948 = scalar_lea.vmem [#allocation3], %s947
  %v949 = vld [vmem:[%s948] sm:$0xff]
  %v950 = vld [vmem:[%s948 + $0x8] sm:$0xff]
  %v951 = vld [vmem:[#allocation8] sm:$0xff]
  %v952 = vpack.c.bf16 %v951, %v951
  %v954 = vsel %vm366, %v952, 0
  %956 = vmatprep.subr.bf16.mxu0 %v409
  %957 = vmatpush1.bf16.msra.mxu0 %v408
  %958 = vmatprep.subr.bf16.mxu0 %v411
  %959 = vmatpush1.bf16.msra.mxu0 %v410
  %960 = vmatprep.subr.bf16.mxu0 %v413
  %961 = vmatpush1.bf16.msra.mxu0 %v412
  %962 = vmatprep.subr.bf16.mxu0 %v415
  %963 = vmatpush1.bf16.msra.mxu0 %v414
  %964 = vmatprep.subr.bf16.mxu0 0
  %965 = vmatpush1.bf16.msra.mxu0 0
  %966 = vmatprep.subr.bf16.mxu0 0
  %967 = vmatpush1.bf16.msra.mxu0 0
  %968 = vmatprep.subr.bf16.mxu0 0
  %969 = vmatpush1.bf16.msra.mxu0 0
  %970 = vmatprep.subr.bf16.mxu0 0
  %971 = vmatpush1.bf16.msra.mxu0 0
  %972 = vmatprep.subr.bf16.mxu0 0
  %973 = vmatpush1.bf16.msra.mxu0 0
  %974 = vmatprep.subr.bf16.mxu0 0
  %975 = vmatpush1.bf16.msra.mxu0 0
  %976 = vmatprep.subr.bf16.mxu0 0
  %977 = vmatpush1.bf16.msra.mxu0 0
  %978 = vmatprep.subr.bf16.mxu0 0
  %979 = vmatpush1.bf16.msra.mxu0 0
  %980 = vmatprep.subr.bf16.mxu0 0
  %981 = vmatpush1.bf16.msra.mxu0 0
  %982 = vmatprep.subr.bf16.mxu0 0
  %983 = vmatpush1.bf16.msra.mxu0 0
  %984 = vmatprep.subr.bf16.mxu0 0
  %985 = vmatpush1.bf16.msra.mxu0 0
  %986 = vmatprep.subr.bf16.mxu0 0
  %987 = vmatpush1.bf16.msra.mxu0 0
  %988 = vmatprep.mubr.bf16.mxu0 0
  %989 = vmatmul.mubr.bf16.gmra.mrb[0].mxu0 %v954
  %v990 = vpop.f32.mrb[0].mxu0
  %v991 = vadd.f32 0.0, %v990
  %v992 = vpop.f32.mrb[0].mxu0
  %v993 = vadd.f32 0.0, %v992
  %v994 = vpop.f32.mrb[0].mxu0
  %v995 = vpop.f32.mrb[0].mxu0
  %996 = vdwg.mxu0
  %v997 = vadd.f32 %v949, %v991
  %v998 = vadd.f32 %v950, %v993
  %v999 = vxor.u32 %v997, 2147483648
  %v1000 = vxor.u32 %v998, 2147483648
  %v1001 = vmul.f32 %v999, 1.442695
  %v1002 = vpow.pop %v1001
  %v1003 = vmul.f32 %v1000, 1.442695
  %v1004 = vpow.pop %v1003
  %v1005 = vadd.f32 %v1002, 1.0
  %v1006 = vadd.f32 %v1004, 1.0
  %v1007 = vrcp.pop %v1005
  %v1008 = vmul.f32 1.0, %v1007
  %v1009 = vrcp.pop %v1006
  %v1010 = vmul.f32 1.0, %v1009
  %v1011 = vtanh.pop %v998
  %v1012 = vld [vmem:[#allocation9] sm:$0xff]
  %1014 = vrot.lane.b32.xlu0 %v1012, 64
  %v1015 = vpop.permute.xlu0 %1014
  %v1017 = vmul.f32 %v1008, %v1015
  %1019 = vrot.lane.b32.xlu0 %v1011, 64
  %v1020 = vpop.permute.xlu0 %1019
  %v1022 = vmul.f32 %v1008, %v1020
  %1024 = vrot.lane.b32.xlu0 %v1022, 64
  %v1025 = vpop.permute.xlu0 %1024
  %v1027 = vadd.f32 %v1017, %v1025
  %v1028 = vtanh.pop %v1027
  %1030 = vrot.lane.b32.xlu0 %v1028, 64
  %v1031 = vpop.permute.xlu0 %1030
  %v1033 = vmul.f32 %v1010, %v1031
  %1035 = vrot.lane.b32.xlu0 %v1027, 64
  %v1036 = vpop.permute.xlu0 %1035
  %1038 = vst.msk [vmem:[#allocation9] sm:$0xff] %vm366, %v1036
  %1039 = vst.msk [vmem:[#allocation8] sm:$0xff] %vm366, %v1033
  %s1040 = scalar_lea.vmem [#allocation4], 40
  %1041 = vst.msk [vmem:[%s1040] sm:$0xff] %vm511, %v1033
  %1043 = vrot.lane.b32.xlu0 %v1033, 96
  %v1044 = vpop.permute.xlu0 %1043
  %s1046 = scalar_lea.vmem [#allocation5], 16
  %1047 = vst.msk [vmem:[%s1046] sm:$0xff] %vm511, %v1044
  %s1048 = scalar_lea.vmem [#allocation6], 16
  %1049 = vst.msk [vmem:[%s1048] sm:$0xff] %vm511, %v1033
  %s1050 = scalar_lea.vmem [#allocation7], 40
  %1051 = vst.msk [vmem:[%s1050] sm:$0xff] %vm511, %v1044
  %s1052 = smul.u32 6, 2
  %s1053 = smul.addr %s1052, 8
  %s1054 = scalar_lea.vmem [#allocation3], %s1053
  %v1055 = vld [vmem:[%s1054] sm:$0xff]
  %v1056 = vld [vmem:[%s1054 + $0x8] sm:$0xff]
  %v1057 = vld [vmem:[#allocation8] sm:$0xff]
  %v1058 = vpack.c.bf16 %v1057, %v1057
  %v1060 = vsel %vm366, %v1058, 0
  %1062 = vmatprep.subr.bf16.mxu0 %v409
  %1063 = vmatpush1.bf16.msra.mxu0 %v408
  %1064 = vmatprep.subr.bf16.mxu0 %v411
  %1065 = vmatpush1.bf16.msra.mxu0 %v410
  %1066 = vmatprep.subr.bf16.mxu0 %v413
  %1067 = vmatpush1.bf16.msra.mxu0 %v412
  %1068 = vmatprep.subr.bf16.mxu0 %v415
  %1069 = vmatpush1.bf16.msra.mxu0 %v414
  %1070 = vmatprep.subr.bf16.mxu0 0
  %1071 = vmatpush1.bf16.msra.mxu0 0
  %1072 = vmatprep.subr.bf16.mxu0 0
  %1073 = vmatpush1.bf16.msra.mxu0 0
  %1074 = vmatprep.subr.bf16.mxu0 0
  %1075 = vmatpush1.bf16.msra.mxu0 0
  %1076 = vmatprep.subr.bf16.mxu0 0
  %1077 = vmatpush1.bf16.msra.mxu0 0
  %1078 = vmatprep.subr.bf16.mxu0 0
  %1079 = vmatpush1.bf16.msra.mxu0 0
  %1080 = vmatprep.subr.bf16.mxu0 0
  %1081 = vmatpush1.bf16.msra.mxu0 0
  %1082 = vmatprep.subr.bf16.mxu0 0
  %1083 = vmatpush1.bf16.msra.mxu0 0
  %1084 = vmatprep.subr.bf16.mxu0 0
  %1085 = vmatpush1.bf16.msra.mxu0 0
  %1086 = vmatprep.subr.bf16.mxu0 0
  %1087 = vmatpush1.bf16.msra.mxu0 0
  %1088 = vmatprep.subr.bf16.mxu0 0
  %1089 = vmatpush1.bf16.msra.mxu0 0
  %1090 = vmatprep.subr.bf16.mxu0 0
  %1091 = vmatpush1.bf16.msra.mxu0 0
  %1092 = vmatprep.subr.bf16.mxu0 0
  %1093 = vmatpush1.bf16.msra.mxu0 0
  %1094 = vmatprep.mubr.bf16.mxu0 0
  %1095 = vmatmul.mubr.bf16.gmra.mrb[0].mxu0 %v1060
  %v1096 = vpop.f32.mrb[0].mxu0
  %v1097 = vadd.f32 0.0, %v1096
  %v1098 = vpop.f32.mrb[0].mxu0
  %v1099 = vadd.f32 0.0, %v1098
  %v1100 = vpop.f32.mrb[0].mxu0
  %v1101 = vpop.f32.mrb[0].mxu0
  %1102 = vdwg.mxu0
  %v1103 = vadd.f32 %v1055, %v1097
  %v1104 = vadd.f32 %v1056, %v1099
  %v1105 = vxor.u32 %v1103, 2147483648
  %v1106 = vxor.u32 %v1104, 2147483648
  %v1107 = vmul.f32 %v1105, 1.442695
  %v1108 = vpow.pop %v1107
  %v1109 = vmul.f32 %v1106, 1.442695
  %v1110 = vpow.pop %v1109
  %v1111 = vadd.f32 %v1108, 1.0
  %v1112 = vadd.f32 %v1110, 1.0
  %v1113 = vrcp.pop %v1111
  %v1114 = vmul.f32 1.0, %v1113
  %v1115 = vrcp.pop %v1112
  %v1116 = vmul.f32 1.0, %v1115
  %v1117 = vtanh.pop %v1104
  %v1118 = vld [vmem:[#allocation9] sm:$0xff]
  %1120 = vrot.lane.b32.xlu0 %v1118, 64
  %v1121 = vpop.permute.xlu0 %1120
  %v1123 = vmul.f32 %v1114, %v1121
  %1125 = vrot.lane.b32.xlu0 %v1117, 64
  %v1126 = vpop.permute.xlu0 %1125
  %v1128 = vmul.f32 %v1114, %v1126
  %1130 = vrot.lane.b32.xlu0 %v1128, 64
  %v1131 = vpop.permute.xlu0 %1130
  %v1133 = vadd.f32 %v1123, %v1131
  %v1134 = vtanh.pop %v1133
  %1136 = vrot.lane.b32.xlu0 %v1134, 64
  %v1137 = vpop.permute.xlu0 %1136
  %v1139 = vmul.f32 %v1116, %v1137
  %1141 = vrot.lane.b32.xlu0 %v1133, 64
  %v1142 = vpop.permute.xlu0 %1141
  %1144 = vst.msk [vmem:[#allocation9] sm:$0xff] %vm366, %v1142
  %1145 = vst.msk [vmem:[#allocation8] sm:$0xff] %vm366, %v1139
  %s1146 = scalar_lea.vmem [#allocation4], 48
  %1147 = vst.msk [vmem:[%s1146] sm:$0xff] %vm511, %v1139
  %1149 = vrot.lane.b32.xlu0 %v1139, 96
  %v1150 = vpop.permute.xlu0 %1149
  %s1152 = scalar_lea.vmem [#allocation5], 8
  %1153 = vst.msk [vmem:[%s1152] sm:$0xff] %vm511, %v1150
  %s1154 = scalar_lea.vmem [#allocation6], 8
  %1155 = vst.msk [vmem:[%s1154] sm:$0xff] %vm511, %v1139
  %s1156 = scalar_lea.vmem [#allocation7], 48
  %1157 = vst.msk [vmem:[%s1156] sm:$0xff] %vm511, %v1150
  %s1158 = smul.u32 7, 2
  %s1159 = smul.addr %s1158, 8
  %s1160 = scalar_lea.vmem [#allocation3], %s1159
  %v1161 = vld [vmem:[%s1160] sm:$0xff]
  %v1162 = vld [vmem:[%s1160 + $0x8] sm:$0xff]
  %v1163 = vld [vmem:[#allocation8] sm:$0xff]
  %v1164 = vpack.c.bf16 %v1163, %v1163
  %v1166 = vsel %vm366, %v1164, 0
  %1168 = vmatprep.subr.bf16.mxu0 %v409
  %1169 = vmatpush1.bf16.msra.mxu0 %v408
  %1170 = vmatprep.subr.bf16.mxu0 %v411
  %1171 = vmatpush1.bf16.msra.mxu0 %v410
  %1172 = vmatprep.subr.bf16.mxu0 %v413
  %1173 = vmatpush1.bf16.msra.mxu0 %v412
  %1174 = vmatprep.subr.bf16.mxu0 %v415
  %1175 = vmatpush1.bf16.msra.mxu0 %v414
  %1176 = vmatprep.subr.bf16.mxu0 0
  %1177 = vmatpush1.bf16.msra.mxu0 0
  %1178 = vmatprep.subr.bf16.mxu0 0
  %1179 = vmatpush1.bf16.msra.mxu0 0
  %1180 = vmatprep.subr.bf16.mxu0 0
  %1181 = vmatpush1.bf16.msra.mxu0 0
  %1182 = vmatprep.subr.bf16.mxu0 0
  %1183 = vmatpush1.bf16.msra.mxu0 0
  %1184 = vmatprep.subr.bf16.mxu0 0
  %1185 = vmatpush1.bf16.msra.mxu0 0
  %1186 = vmatprep.subr.bf16.mxu0 0
  %1187 = vmatpush1.bf16.msra.mxu0 0
  %1188 = vmatprep.subr.bf16.mxu0 0
  %1189 = vmatpush1.bf16.msra.mxu0 0
  %1190 = vmatprep.subr.bf16.mxu0 0
  %1191 = vmatpush1.bf16.msra.mxu0 0
  %1192 = vmatprep.subr.bf16.mxu0 0
  %1193 = vmatpush1.bf16.msra.mxu0 0
  %1194 = vmatprep.subr.bf16.mxu0 0
  %1195 = vmatpush1.bf16.msra.mxu0 0
  %1196 = vmatprep.subr.bf16.mxu0 0
  %1197 = vmatpush1.bf16.msra.mxu0 0
  %1198 = vmatprep.subr.bf16.mxu0 0
  %1199 = vmatpush1.bf16.msra.mxu0 0
  %1200 = vmatprep.mubr.bf16.mxu0 0
  %1201 = vmatmul.mubr.bf16.gmra.mrb[0].mxu0 %v1166
  %v1202 = vpop.f32.mrb[0].mxu0
  %v1203 = vadd.f32 0.0, %v1202
  %v1204 = vpop.f32.mrb[0].mxu0
  %v1205 = vadd.f32 0.0, %v1204
  %v1206 = vpop.f32.mrb[0].mxu0
  %v1207 = vpop.f32.mrb[0].mxu0
  %1208 = vdwg.mxu0
  %v1209 = vadd.f32 %v1161, %v1203
  %v1210 = vadd.f32 %v1162, %v1205
  %v1211 = vxor.u32 %v1209, 2147483648
  %v1212 = vxor.u32 %v1210, 2147483648
  %v1213 = vmul.f32 %v1211, 1.442695
  %v1214 = vpow.pop %v1213
  %v1215 = vmul.f32 %v1212, 1.442695
  %v1216 = vpow.pop %v1215
  %v1217 = vadd.f32 %v1214, 1.0
  %v1218 = vadd.f32 %v1216, 1.0
  %v1219 = vrcp.pop %v1217
  %v1220 = vmul.f32 1.0, %v1219
  %v1221 = vrcp.pop %v1218
  %v1222 = vmul.f32 1.0, %v1221
  %v1223 = vtanh.pop %v1210
  %v1224 = vld [vmem:[#allocation9] sm:$0xff]
  %1226 = vrot.lane.b32.xlu0 %v1224, 64
  %v1227 = vpop.permute.xlu0 %1226
  %v1229 = vmul.f32 %v1220, %v1227
  %1231 = vrot.lane.b32.xlu0 %v1223, 64
  %v1232 = vpop.permute.xlu0 %1231
  %v1234 = vmul.f32 %v1220, %v1232
  %1236 = vrot.lane.b32.xlu0 %v1234, 64
  %v1237 = vpop.permute.xlu0 %1236
  %v1239 = vadd.f32 %v1229, %v1237
  %v1240 = vtanh.pop %v1239
  %1242 = vrot.lane.b32.xlu0 %v1240, 64
  %v1243 = vpop.permute.xlu0 %1242
  %v1245 = vmul.f32 %v1222, %v1243
  %1247 = vrot.lane.b32.xlu0 %v1239, 64
  %v1248 = vpop.permute.xlu0 %1247
  %1250 = vst.msk [vmem:[#allocation9] sm:$0xff] %vm366, %v1248
  %1251 = vst.msk [vmem:[#allocation8] sm:$0xff] %vm366, %v1245
  %s1252 = scalar_lea.vmem [#allocation4], 56
  %1253 = vst.msk [vmem:[%s1252] sm:$0xff] %vm511, %v1245
  %1255 = vrot.lane.b32.xlu0 %v1245, 96
  %v1256 = vpop.permute.xlu0 %1255
  %1258 = vst.msk [vmem:[#allocation5] sm:$0xff] %vm511, %v1256
  %1259 = vst.msk [vmem:[#allocation6] sm:$0xff] %vm511, %v1245
  %s1260 = scalar_lea.vmem [#allocation7], 56
  %1261 = vst.msk [vmem:[%s1260] sm:$0xff] %vm511, %v1256
  %v1262 = vld [vmem:[#allocation4] sm:$0xff]
  %v1263 = vld [vmem:[#allocation4 + $0x8] sm:$0xff]
  %v1264 = vld [vmem:[#allocation4 + $0x10] sm:$0xff]
  %v1265 = vld [vmem:[#allocation4 + $0x18] sm:$0xff]
  %v1266 = vld [vmem:[#allocation4 + $0x20] sm:$0xff]
  %v1267 = vld [vmem:[#allocation4 + $0x28] sm:$0xff]
  %v1268 = vld [vmem:[#allocation4 + $0x30] sm:$0xff]
  %v1269 = vld [vmem:[#allocation4 + $0x38] sm:$0xff]
  %v1270 = vld [vmem:[%s5] sm:$0xff]
  %v1271 = vld [vmem:[%s5 + $0x8] sm:$0xff]
  %v1272 = vld [vmem:[%s5 + $0x10] sm:$0xff]
  %v1273 = vld [vmem:[%s5 + $0x18] sm:$0xff]
  %v1274 = vpack.c.bf16 %v1263, %v1262
  %v1275 = vpack.c.bf16 %v1265, %v1264
  %v1276 = vpack.c.bf16 %v1267, %v1266
  %v1277 = vpack.c.bf16 %v1269, %v1268
  %v1278 = vld [vmem:[#allocation5] sm:$0xff]
  %v1279 = vld [vmem:[#allocation5 + $0x8] sm:$0xff]
  %v1280 = vld [vmem:[#allocation5 + $0x10] sm:$0xff]
  %v1281 = vld [vmem:[#allocation5 + $0x18] sm:$0xff]
  %v1282 = vld [vmem:[#allocation5 + $0x20] sm:$0xff]
  %v1283 = vld [vmem:[#allocation5 + $0x28] sm:$0xff]
  %v1284 = vld [vmem:[#allocation5 + $0x30] sm:$0xff]
  %v1285 = vld [vmem:[#allocation5 + $0x38] sm:$0xff]
  %v1286 = vld [vmem:[%s6] sm:$0xff]
  %v1287 = vld [vmem:[%s6 + $0x8] sm:$0xff]
  %v1288 = vld [vmem:[%s6 + $0x10] sm:$0xff]
  %v1289 = vld [vmem:[%s6 + $0x18] sm:$0xff]
  %v1290 = vpack.c.bf16 %v1279, %v1278
  %v1291 = vpack.c.bf16 %v1281, %v1280
  %v1292 = vpack.c.bf16 %v1283, %v1282
  %v1293 = vpack.c.bf16 %v1285, %v1284
  %v1298 = vunpack.c.l.b16 %v1286
  %v1299 = vunpack.c.h.b16 %v1286
  %v1300 = vunpack.c.l.b16 %v1287
  %v1301 = vunpack.c.h.b16 %v1287
  %v1302 = vunpack.c.l.b16 %v1288
  %v1303 = vunpack.c.h.b16 %v1288
  %v1304 = vunpack.c.l.b16 %v1289
  %v1305 = vunpack.c.h.b16 %v1289
  %v1306 = vpack.c.b16 %v1300, %v1298
  %v1307 = vpack.c.b16 %v1301, %v1299
  %v1308 = vpack.c.b16 %v1304, %v1302
  %v1309 = vpack.c.b16 %v1305, %v1303
  %v1315 = vsel %vm511, %v1290, 0
  %v1318 = vsel %vm511, %v1291, 0
  %v1321 = vsel %vm511, %v1292, 0
  %v1324 = vsel %vm511, %v1293, 0
  %1326 = vmatprep.subr.bf16.mxu0 %v1307
  %1327 = vmatpush1.bf16.msra.mxu0 %v1306
  %1328 = vmatprep.subr.bf16.mxu0 %v1309
  %1329 = vmatpush1.bf16.msra.mxu0 %v1308
  %1330 = vmatprep.subr.bf16.mxu0 0
  %1331 = vmatpush1.bf16.msra.mxu0 0
  %1332 = vmatprep.subr.bf16.mxu0 0
  %1333 = vmatpush1.bf16.msra.mxu0 0
  %1334 = vmatprep.subr.bf16.mxu0 0
  %1335 = vmatpush1.bf16.msra.mxu0 0
  %1336 = vmatprep.subr.bf16.mxu0 0
  %1337 = vmatpush1.bf16.msra.mxu0 0
  %1338 = vmatprep.subr.bf16.mxu0 0
  %1339 = vmatpush1.bf16.msra.mxu0 0
  %1340 = vmatprep.subr.bf16.mxu0 0
  %1341 = vmatpush1.bf16.msra.mxu0 0
  %1342 = vmatprep.subr.bf16.mxu0 0
  %1343 = vmatpush1.bf16.msra.mxu0 0
  %1344 = vmatprep.subr.bf16.mxu0 0
  %1345 = vmatpush1.bf16.msra.mxu0 0
  %1346 = vmatprep.subr.bf16.mxu0 0
  %1347 = vmatpush1.bf16.msra.mxu0 0
  %1348 = vmatprep.subr.bf16.mxu0 0
  %1349 = vmatpush1.bf16.msra.mxu0 0
  %1350 = vmatprep.subr.bf16.mxu0 0
  %1351 = vmatpush1.bf16.msra.mxu0 0
  %1352 = vmatprep.subr.bf16.mxu0 0
  %1353 = vmatpush1.bf16.msra.mxu0 0
  %1354 = vmatprep.subr.bf16.mxu0 0
  %1355 = vmatpush1.bf16.msra.mxu0 0
  %1356 = vmatprep.subr.bf16.mxu0 0
  %1357 = vmatpush1.bf16.msra.mxu0 0
  %1358 = vmatprep.mubr.bf16.mxu0 0
  %1359 = vmatmul.mubr.bf16.gmra.mrb[0].mxu0 %v1315
  %v1360 = vpop.f32.mrb[0].mxu0
  %v1361 = vadd.f32 0.0, %v1360
  %v1362 = vpop.f32.mrb[0].mxu0
  %v1363 = vadd.f32 0.0, %v1362
  %v1364 = vpop.f32.mrb[0].mxu0
  %v1365 = vadd.f32 0.0, %v1364
  %v1366 = vpop.f32.mrb[0].mxu0
  %v1367 = vadd.f32 0.0, %v1366
  %1368 = vmatprep.mubr.bf16.mxu0 0
  %1369 = vmatmul.mubr.bf16.gmra.mrb[0].mxu0 %v1318
  %v1370 = vpop.f32.mrb[0].mxu0
  %v1371 = vadd.f32 0.0, %v1370
  %v1372 = vpop.f32.mrb[0].mxu0
  %v1373 = vadd.f32 0.0, %v1372
  %v1374 = vpop.f32.mrb[0].mxu0
  %v1375 = vadd.f32 0.0, %v1374
  %v1376 = vpop.f32.mrb[0].mxu0
  %v1377 = vadd.f32 0.0, %v1376
  %1378 = vmatprep.mubr.bf16.mxu0 0
  %1379 = vmatmul.mubr.bf16.gmra.mrb[0].mxu0 %v1321
  %v1380 = vpop.f32.mrb[0].mxu0
  %v1381 = vadd.f32 0.0, %v1380
  %v1382 = vpop.f32.mrb[0].mxu0
  %v1383 = vadd.f32 0.0, %v1382
  %v1384 = vpop.f32.mrb[0].mxu0
  %v1385 = vadd.f32 0.0, %v1384
  %v1386 = vpop.f32.mrb[0].mxu0
  %v1387 = vadd.f32 0.0, %v1386
  %1388 = vmatprep.mubr.bf16.mxu0 0
  %1389 = vmatmul.mubr.bf16.gmra.mrb[0].mxu0 %v1324
  %v1390 = vpop.f32.mrb[0].mxu0
  %v1391 = vadd.f32 0.0, %v1390
  %v1392 = vpop.f32.mrb[0].mxu0
  %v1393 = vadd.f32 0.0, %v1392
  %v1394 = vpop.f32.mrb[0].mxu0
  %v1395 = vadd.f32 0.0, %v1394
  %v1396 = vpop.f32.mrb[0].mxu0
  %v1397 = vadd.f32 0.0, %v1396
  %1398 = vdwg.mxu0
  %v1403 = vunpack.c.l.b16 %v1270
  %v1404 = vunpack.c.h.b16 %v1270
  %v1405 = vunpack.c.l.b16 %v1271
  %v1406 = vunpack.c.h.b16 %v1271
  %v1407 = vunpack.c.l.b16 %v1272
  %v1408 = vunpack.c.h.b16 %v1272
  %v1409 = vunpack.c.l.b16 %v1273
  %v1410 = vunpack.c.h.b16 %v1273
  %v1411 = vpack.c.b16 %v1405, %v1403
  %v1412 = vpack.c.b16 %v1406, %v1404
  %v1413 = vpack.c.b16 %v1409, %v1407
  %v1414 = vpack.c.b16 %v1410, %v1408
  %v1420 = vsel %vm511, %v1274, 0
  %v1423 = vsel %vm511, %v1275, 0
  %v1426 = vsel %vm511, %v1276, 0
  %v1429 = vsel %vm511, %v1277, 0
  %1431 = vmatprep.subr.bf16.mxu0 %v1412
  %1432 = vmatpush1.bf16.msra.mxu0 %v1411
  %1433 = vmatprep.subr.bf16.mxu0 %v1414
  %1434 = vmatpush1.bf16.msra.mxu0 %v1413
  %1435 = vmatprep.subr.bf16.mxu0 0
  %1436 = vmatpush1.bf16.msra.mxu0 0
  %1437 = vmatprep.subr.bf16.mxu0 0
  %1438 = vmatpush1.bf16.msra.mxu0 0
  %1439 = vmatprep.subr.bf16.mxu0 0
  %1440 = vmatpush1.bf16.msra.mxu0 0
  %1441 = vmatprep.subr.bf16.mxu0 0
  %1442 = vmatpush1.bf16.msra.mxu0 0
  %1443 = vmatprep.subr.bf16.mxu0 0
  %1444 = vmatpush1.bf16.msra.mxu0 0
  %1445 = vmatprep.subr.bf16.mxu0 0
  %1446 = vmatpush1.bf16.msra.mxu0 0
  %1447 = vmatprep.subr.bf16.mxu0 0
  %1448 = vmatpush1.bf16.msra.mxu0 0
  %1449 = vmatprep.subr.bf16.mxu0 0
  %1450 = vmatpush1.bf16.msra.mxu0 0
  %1451 = vmatprep.subr.bf16.mxu0 0
  %1452 = vmatpush1.bf16.msra.mxu0 0
  %1453 = vmatprep.subr.bf16.mxu0 0
  %1454 = vmatpush1.bf16.msra.mxu0 0
  %1455 = vmatprep.subr.bf16.mxu0 0
  %1456 = vmatpush1.bf16.msra.mxu0 0
  %1457 = vmatprep.subr.bf16.mxu0 0
  %1458 = vmatpush1.bf16.msra.mxu0 0
  %1459 = vmatprep.subr.bf16.mxu0 0
  %1460 = vmatpush1.bf16.msra.mxu0 0
  %1461 = vmatprep.subr.bf16.mxu0 0
  %1462 = vmatpush1.bf16.msra.mxu0 0
  %1463 = vmatprep.mubr.bf16.mxu0 0
  %1464 = vmatmul.mubr.bf16.gmra.mrb[0].mxu0 %v1420
  %v1465 = vpop.f32.mrb[0].mxu0
  %v1466 = vadd.f32 %v1361, %v1465
  %v1467 = vpop.f32.mrb[0].mxu0
  %v1468 = vadd.f32 %v1363, %v1467
  %v1469 = vpop.f32.mrb[0].mxu0
  %v1470 = vadd.f32 %v1365, %v1469
  %v1471 = vpop.f32.mrb[0].mxu0
  %v1472 = vadd.f32 %v1367, %v1471
  %1473 = vmatprep.mubr.bf16.mxu0 0
  %1474 = vmatmul.mubr.bf16.gmra.mrb[0].mxu0 %v1423
  %v1475 = vpop.f32.mrb[0].mxu0
  %v1476 = vadd.f32 %v1371, %v1475
  %v1477 = vpop.f32.mrb[0].mxu0
  %v1478 = vadd.f32 %v1373, %v1477
  %v1479 = vpop.f32.mrb[0].mxu0
  %v1480 = vadd.f32 %v1375, %v1479
  %v1481 = vpop.f32.mrb[0].mxu0
  %v1482 = vadd.f32 %v1377, %v1481
  %1483 = vmatprep.mubr.bf16.mxu0 0
  %1484 = vmatmul.mubr.bf16.gmra.mrb[0].mxu0 %v1426
  %v1485 = vpop.f32.mrb[0].mxu0
  %v1486 = vadd.f32 %v1381, %v1485
  %v1487 = vpop.f32.mrb[0].mxu0
  %v1488 = vadd.f32 %v1383, %v1487
  %v1489 = vpop.f32.mrb[0].mxu0
  %v1490 = vadd.f32 %v1385, %v1489
  %v1491 = vpop.f32.mrb[0].mxu0
  %v1492 = vadd.f32 %v1387, %v1491
  %1493 = vmatprep.mubr.bf16.mxu0 0
  %1494 = vmatmul.mubr.bf16.gmra.mrb[0].mxu0 %v1429
  %v1495 = vpop.f32.mrb[0].mxu0
  %v1496 = vadd.f32 %v1391, %v1495
  %v1497 = vpop.f32.mrb[0].mxu0
  %v1498 = vadd.f32 %v1393, %v1497
  %v1499 = vpop.f32.mrb[0].mxu0
  %v1500 = vadd.f32 %v1395, %v1499
  %v1501 = vpop.f32.mrb[0].mxu0
  %v1502 = vadd.f32 %v1397, %v1501
  %1503 = vdwg.mxu0
  %v1504 = vld [vmem:[#allocation6] sm:$0xff]
  %v1505 = vld [vmem:[#allocation6 + $0x8] sm:$0xff]
  %v1506 = vld [vmem:[#allocation6 + $0x10] sm:$0xff]
  %v1507 = vld [vmem:[#allocation6 + $0x18] sm:$0xff]
  %v1508 = vld [vmem:[#allocation6 + $0x20] sm:$0xff]
  %v1509 = vld [vmem:[#allocation6 + $0x28] sm:$0xff]
  %v1510 = vld [vmem:[#allocation6 + $0x30] sm:$0xff]
  %v1511 = vld [vmem:[#allocation6 + $0x38] sm:$0xff]
  %v1512 = vld [vmem:[%s7] sm:$0xff]
  %v1513 = vld [vmem:[%s7 + $0x8] sm:$0xff]
  %v1514 = vld [vmem:[%s7 + $0x10] sm:$0xff]
  %v1515 = vld [vmem:[%s7 + $0x18] sm:$0xff]
  %v1516 = vpack.c.bf16 %v1505, %v1504
  %v1517 = vpack.c.bf16 %v1507, %v1506
  %v1518 = vpack.c.bf16 %v1509, %v1508
  %v1519 = vpack.c.bf16 %v1511, %v1510
  %v1524 = vunpack.c.l.b16 %v1512
  %v1525 = vunpack.c.h.b16 %v1512
  %v1526 = vunpack.c.l.b16 %v1513
  %v1527 = vunpack.c.h.b16 %v1513
  %v1528 = vunpack.c.l.b16 %v1514
  %v1529 = vunpack.c.h.b16 %v1514
  %v1530 = vunpack.c.l.b16 %v1515
  %v1531 = vunpack.c.h.b16 %v1515
  %v1532 = vpack.c.b16 %v1526, %v1524
  %v1533 = vpack.c.b16 %v1527, %v1525
  %v1534 = vpack.c.b16 %v1530, %v1528
  %v1535 = vpack.c.b16 %v1531, %v1529
  %v1541 = vsel %vm511, %v1516, 0
  %v1544 = vsel %vm511, %v1517, 0
  %v1547 = vsel %vm511, %v1518, 0
  %v1550 = vsel %vm511, %v1519, 0
  %1552 = vmatprep.subr.bf16.mxu0 %v1533
  %1553 = vmatpush1.bf16.msra.mxu0 %v1532
  %1554 = vmatprep.subr.bf16.mxu0 %v1535
  %1555 = vmatpush1.bf16.msra.mxu0 %v1534
  %1556 = vmatprep.subr.bf16.mxu0 0
  %1557 = vmatpush1.bf16.msra.mxu0 0
  %1558 = vmatprep.subr.bf16.mxu0 0
  %1559 = vmatpush1.bf16.msra.mxu0 0
  %1560 = vmatprep.subr.bf16.mxu0 0
  %1561 = vmatpush1.bf16.msra.mxu0 0
  %1562 = vmatprep.subr.bf16.mxu0 0
  %1563 = vmatpush1.bf16.msra.mxu0 0
  %1564 = vmatprep.subr.bf16.mxu0 0
  %1565 = vmatpush1.bf16.msra.mxu0 0
  %1566 = vmatprep.subr.bf16.mxu0 0
  %1567 = vmatpush1.bf16.msra.mxu0 0
  %1568 = vmatprep.subr.bf16.mxu0 0
  %1569 = vmatpush1.bf16.msra.mxu0 0
  %1570 = vmatprep.subr.bf16.mxu0 0
  %1571 = vmatpush1.bf16.msra.mxu0 0
  %1572 = vmatprep.subr.bf16.mxu0 0
  %1573 = vmatpush1.bf16.msra.mxu0 0
  %1574 = vmatprep.subr.bf16.mxu0 0
  %1575 = vmatpush1.bf16.msra.mxu0 0
  %1576 = vmatprep.subr.bf16.mxu0 0
  %1577 = vmatpush1.bf16.msra.mxu0 0
  %1578 = vmatprep.subr.bf16.mxu0 0
  %1579 = vmatpush1.bf16.msra.mxu0 0
  %1580 = vmatprep.subr.bf16.mxu0 0
  %1581 = vmatpush1.bf16.msra.mxu0 0
  %1582 = vmatprep.subr.bf16.mxu0 0
  %1583 = vmatpush1.bf16.msra.mxu0 0
  %1584 = vmatprep.mubr.bf16.mxu0 0
  %1585 = vmatmul.mubr.bf16.gmra.mrb[0].mxu0 %v1541
  %v1586 = vpop.f32.mrb[0].mxu0
  %v1587 = vadd.f32 0.0, %v1586
  %v1588 = vpop.f32.mrb[0].mxu0
  %v1589 = vadd.f32 0.0, %v1588
  %v1590 = vpop.f32.mrb[0].mxu0
  %v1591 = vadd.f32 0.0, %v1590
  %v1592 = vpop.f32.mrb[0].mxu0
  %v1593 = vadd.f32 0.0, %v1592
  %1594 = vmatprep.mubr.bf16.mxu0 0
  %1595 = vmatmul.mubr.bf16.gmra.mrb[0].mxu0 %v1544
  %v1596 = vpop.f32.mrb[0].mxu0
  %v1597 = vadd.f32 0.0, %v1596
  %v1598 = vpop.f32.mrb[0].mxu0
  %v1599 = vadd.f32 0.0, %v1598
  %v1600 = vpop.f32.mrb[0].mxu0
  %v1601 = vadd.f32 0.0, %v1600
  %v1602 = vpop.f32.mrb[0].mxu0
  %v1603 = vadd.f32 0.0, %v1602
  %1604 = vmatprep.mubr.bf16.mxu0 0
  %1605 = vmatmul.mubr.bf16.gmra.mrb[0].mxu0 %v1547
  %v1606 = vpop.f32.mrb[0].mxu0
  %v1607 = vadd.f32 0.0, %v1606
  %v1608 = vpop.f32.mrb[0].mxu0
  %v1609 = vadd.f32 0.0, %v1608
  %v1610 = vpop.f32.mrb[0].mxu0
  %v1611 = vadd.f32 0.0, %v1610
  %v1612 = vpop.f32.mrb[0].mxu0
  %v1613 = vadd.f32 0.0, %v1612
  %1614 = vmatprep.mubr.bf16.mxu0 0
  %1615 = vmatmul.mubr.bf16.gmra.mrb[0].mxu0 %v1550
  %v1616 = vpop.f32.mrb[0].mxu0
  %v1617 = vadd.f32 0.0, %v1616
  %v1618 = vpop.f32.mrb[0].mxu0
  %v1619 = vadd.f32 0.0, %v1618
  %v1620 = vpop.f32.mrb[0].mxu0
  %v1621 = vadd.f32 0.0, %v1620
  %v1622 = vpop.f32.mrb[0].mxu0
  %v1623 = vadd.f32 0.0, %v1622
  %1624 = vdwg.mxu0
  %v1625 = vadd.f32 %v1466, %v1587
  %v1626 = vadd.f32 %v1468, %v1589
  %v1627 = vadd.f32 %v1470, %v1591
  %v1628 = vadd.f32 %v1472, %v1593
  %v1629 = vadd.f32 %v1476, %v1597
  %v1630 = vadd.f32 %v1478, %v1599
  %v1631 = vadd.f32 %v1480, %v1601
  %v1632 = vadd.f32 %v1482, %v1603
  %v1633 = vadd.f32 %v1486, %v1607
  %v1634 = vadd.f32 %v1488, %v1609
  %v1635 = vadd.f32 %v1490, %v1611
  %v1636 = vadd.f32 %v1492, %v1613
  %v1637 = vadd.f32 %v1496, %v1617
  %v1638 = vadd.f32 %v1498, %v1619
  %v1639 = vadd.f32 %v1500, %v1621
  %v1640 = vadd.f32 %v1502, %v1623
  %v1641 = vld [vmem:[#allocation7] sm:$0xff]
  %v1642 = vld [vmem:[#allocation7 + $0x8] sm:$0xff]
  %v1643 = vld [vmem:[#allocation7 + $0x10] sm:$0xff]
  %v1644 = vld [vmem:[#allocation7 + $0x18] sm:$0xff]
  %v1645 = vld [vmem:[#allocation7 + $0x20] sm:$0xff]
  %v1646 = vld [vmem:[#allocation7 + $0x28] sm:$0xff]
  %v1647 = vld [vmem:[#allocation7 + $0x30] sm:$0xff]
  %v1648 = vld [vmem:[#allocation7 + $0x38] sm:$0xff]
  %v1649 = vld [vmem:[%s8] sm:$0xff]
  %v1650 = vld [vmem:[%s8 + $0x8] sm:$0xff]
  %v1651 = vld [vmem:[%s8 + $0x10] sm:$0xff]
  %v1652 = vld [vmem:[%s8 + $0x18] sm:$0xff]
  %v1653 = vpack.c.bf16 %v1642, %v1641
  %v1654 = vpack.c.bf16 %v1644, %v1643
  %v1655 = vpack.c.bf16 %v1646, %v1645
  %v1656 = vpack.c.bf16 %v1648, %v1647
  %v1661 = vunpack.c.l.b16 %v1649
  %v1662 = vunpack.c.h.b16 %v1649
  %v1663 = vunpack.c.l.b16 %v1650
  %v1664 = vunpack.c.h.b16 %v1650
  %v1665 = vunpack.c.l.b16 %v1651
  %v1666 = vunpack.c.h.b16 %v1651
  %v1667 = vunpack.c.l.b16 %v1652
  %v1668 = vunpack.c.h.b16 %v1652
  %v1669 = vpack.c.b16 %v1663, %v1661
  %v1670 = vpack.c.b16 %v1664, %v1662
  %v1671 = vpack.c.b16 %v1667, %v1665
  %v1672 = vpack.c.b16 %v1668, %v1666
  %v1678 = vsel %vm511, %v1653, 0
  %v1681 = vsel %vm511, %v1654, 0
  %v1684 = vsel %vm511, %v1655, 0
  %v1687 = vsel %vm511, %v1656, 0
  %1689 = vmatprep.subr.bf16.mxu0 %v1670
  %1690 = vmatpush1.bf16.msra.mxu0 %v1669
  %1691 = vmatprep.subr.bf16.mxu0 %v1672
  %1692 = vmatpush1.bf16.msra.mxu0 %v1671
  %1693 = vmatprep.subr.bf16.mxu0 0
  %1694 = vmatpush1.bf16.msra.mxu0 0
  %1695 = vmatprep.subr.bf16.mxu0 0
  %1696 = vmatpush1.bf16.msra.mxu0 0
  %1697 = vmatprep.subr.bf16.mxu0 0
  %1698 = vmatpush1.bf16.msra.mxu0 0
  %1699 = vmatprep.subr.bf16.mxu0 0
  %1700 = vmatpush1.bf16.msra.mxu0 0
  %1701 = vmatprep.subr.bf16.mxu0 0
  %1702 = vmatpush1.bf16.msra.mxu0 0
  %1703 = vmatprep.subr.bf16.mxu0 0
  %1704 = vmatpush1.bf16.msra.mxu0 0
  %1705 = vmatprep.subr.bf16.mxu0 0
  %1706 = vmatpush1.bf16.msra.mxu0 0
  %1707 = vmatprep.subr.bf16.mxu0 0
  %1708 = vmatpush1.bf16.msra.mxu0 0
  %1709 = vmatprep.subr.bf16.mxu0 0
  %1710 = vmatpush1.bf16.msra.mxu0 0
  %1711 = vmatprep.subr.bf16.mxu0 0
  %1712 = vmatpush1.bf16.msra.mxu0 0
  %1713 = vmatprep.subr.bf16.mxu0 0
  %1714 = vmatpush1.bf16.msra.mxu0 0
  %1715 = vmatprep.subr.bf16.mxu0 0
  %1716 = vmatpush1.bf16.msra.mxu0 0
  %1717 = vmatprep.subr.bf16.mxu0 0
  %1718 = vmatpush1.bf16.msra.mxu0 0
  %1719 = vmatprep.subr.bf16.mxu0 0
  %1720 = vmatpush1.bf16.msra.mxu0 0
  %1721 = vmatprep.mubr.bf16.mxu0 0
  %1722 = vmatmul.mubr.bf16.gmra.mrb[0].mxu0 %v1678
  %v1723 = vpop.f32.mrb[0].mxu0
  %v1724 = vadd.f32 0.0, %v1723
  %v1725 = vpop.f32.mrb[0].mxu0
  %v1726 = vadd.f32 0.0, %v1725
  %v1727 = vpop.f32.mrb[0].mxu0
  %v1728 = vadd.f32 0.0, %v1727
  %v1729 = vpop.f32.mrb[0].mxu0
  %v1730 = vadd.f32 0.0, %v1729
  %1731 = vmatprep.mubr.bf16.mxu0 0
  %1732 = vmatmul.mubr.bf16.gmra.mrb[0].mxu0 %v1681
  %v1733 = vpop.f32.mrb[0].mxu0
  %v1734 = vadd.f32 0.0, %v1733
  %v1735 = vpop.f32.mrb[0].mxu0
  %v1736 = vadd.f32 0.0, %v1735
  %v1737 = vpop.f32.mrb[0].mxu0
  %v1738 = vadd.f32 0.0, %v1737
  %v1739 = vpop.f32.mrb[0].mxu0
  %v1740 = vadd.f32 0.0, %v1739
  %1741 = vmatprep.mubr.bf16.mxu0 0
  %1742 = vmatmul.mubr.bf16.gmra.mrb[0].mxu0 %v1684
  %v1743 = vpop.f32.mrb[0].mxu0
  %v1744 = vadd.f32 0.0, %v1743
  %v1745 = vpop.f32.mrb[0].mxu0
  %v1746 = vadd.f32 0.0, %v1745
  %v1747 = vpop.f32.mrb[0].mxu0
  %v1748 = vadd.f32 0.0, %v1747
  %v1749 = vpop.f32.mrb[0].mxu0
  %v1750 = vadd.f32 0.0, %v1749
  %1751 = vmatprep.mubr.bf16.mxu0 0
  %1752 = vmatmul.mubr.bf16.gmra.mrb[0].mxu0 %v1687
  %v1753 = vpop.f32.mrb[0].mxu0
  %v1754 = vadd.f32 0.0, %v1753
  %v1755 = vpop.f32.mrb[0].mxu0
  %v1756 = vadd.f32 0.0, %v1755
  %v1757 = vpop.f32.mrb[0].mxu0
  %v1758 = vadd.f32 0.0, %v1757
  %v1759 = vpop.f32.mrb[0].mxu0
  %v1760 = vadd.f32 0.0, %v1759
  %1761 = vdwg.mxu0
  %v1762 = vadd.f32 %v1625, %v1724
  %v1763 = vadd.f32 %v1626, %v1726
  %v1764 = vadd.f32 %v1627, %v1728
  %v1765 = vadd.f32 %v1628, %v1730
  %v1766 = vadd.f32 %v1629, %v1734
  %v1767 = vadd.f32 %v1630, %v1736
  %v1768 = vadd.f32 %v1631, %v1738
  %v1769 = vadd.f32 %v1632, %v1740
  %v1770 = vadd.f32 %v1633, %v1744
  %v1771 = vadd.f32 %v1634, %v1746
  %v1772 = vadd.f32 %v1635, %v1748
  %v1773 = vadd.f32 %v1636, %v1750
  %v1774 = vadd.f32 %v1637, %v1754
  %v1775 = vadd.f32 %v1638, %v1756
  %v1776 = vadd.f32 %v1639, %v1758
  %v1777 = vadd.f32 %v1640, %v1760
  %v1778 = vld [vmem:[%s10] sm:$0x3]
  %v1780 = vlaneseq
  %v1781 = vshrl.u32 %v1780, 7
  %v1782 = vsub.s32 0, %v1781
  %v1783 = vrot.slane %v1778, %v1782
  %v1784 = vlaneseq
  %v1785 = vshrl.u32 %v1784, 7
  %v1786 = vsub.s32 1, %v1785
  %v1787 = vrot.slane %v1778, %v1786
  %v1790 = vadd.f32 %v1762, %v1783
  %v1791 = vadd.f32 %v1763, %v1787
  %v1792 = vadd.f32 %v1764, %v1783
  %v1793 = vadd.f32 %v1765, %v1787
  %v1794 = vadd.f32 %v1766, %v1783
  %v1795 = vadd.f32 %v1767, %v1787
  %v1796 = vadd.f32 %v1768, %v1783
  %v1797 = vadd.f32 %v1769, %v1787
  %v1798 = vadd.f32 %v1770, %v1783
  %v1799 = vadd.f32 %v1771, %v1787
  %v1800 = vadd.f32 %v1772, %v1783
  %v1801 = vadd.f32 %v1773, %v1787
  %v1802 = vadd.f32 %v1774, %v1783
  %v1803 = vadd.f32 %v1775, %v1787
  %v1804 = vadd.f32 %v1776, %v1783
  %v1805 = vadd.f32 %v1777, %v1787
  %1806 = vst [vmem:[#allocation3] sm:$0xff] %v1790
  %1807 = vst [vmem:[#allocation3 + $0x8] sm:$0xff] %v1791
  %1808 = vst [vmem:[#allocation3 + $0x10] sm:$0xff] %v1792
  %1809 = vst [vmem:[#allocation3 + $0x18] sm:$0xff] %v1793
  %1810 = vst [vmem:[#allocation3 + $0x20] sm:$0xff] %v1794
  %1811 = vst [vmem:[#allocation3 + $0x28] sm:$0xff] %v1795
  %1812 = vst [vmem:[#allocation3 + $0x30] sm:$0xff] %v1796
  %1813 = vst [vmem:[#allocation3 + $0x38] sm:$0xff] %v1797
  %1814 = vst [vmem:[#allocation3 + $0x40] sm:$0xff] %v1798
  %1815 = vst [vmem:[#allocation3 + $0x48] sm:$0xff] %v1799
  %1816 = vst [vmem:[#allocation3 + $0x50] sm:$0xff] %v1800
  %1817 = vst [vmem:[#allocation3 + $0x58] sm:$0xff] %v1801
  %1818 = vst [vmem:[#allocation3 + $0x60] sm:$0xff] %v1802
  %1819 = vst [vmem:[#allocation3 + $0x68] sm:$0xff] %v1803
  %1820 = vst [vmem:[#allocation3 + $0x70] sm:$0xff] %v1804
  %1821 = vst [vmem:[#allocation3 + $0x78] sm:$0xff] %v1805
  %1822 = vst.msk [vmem:[#allocation8] sm:$0xff] %vm366, 0.0
  %1823 = vst.msk [vmem:[#allocation9] sm:$0xff] %vm366, 0.0
  %v1824 = vld [vmem:[%s9] sm:$0xff]
  %v1825 = vld [vmem:[%s9 + $0x8] sm:$0xff]
  %v1826 = vld [vmem:[%s9 + $0x10] sm:$0xff]
  %v1827 = vld [vmem:[%s9 + $0x18] sm:$0xff]
  %v1828 = vld [vmem:[%s9 + $0x20] sm:$0xff]
  %v1829 = vld [vmem:[%s9 + $0x28] sm:$0xff]
  %v1830 = vld [vmem:[%s9 + $0x30] sm:$0xff]
  %v1831 = vld [vmem:[%s9 + $0x38] sm:$0xff]
  %v1832 = vld [vmem:[%s379] sm:$0xff]
  %v1833 = vld [vmem:[%s379 + $0x8] sm:$0xff]
  %v1834 = vld [vmem:[#allocation8] sm:$0xff]
  %v1835 = vpack.c.bf16 %v1834, %v1834
  %v1844 = vunpack.c.l.b16 %v1824
  %v1845 = vunpack.c.h.b16 %v1824
  %v1846 = vunpack.c.l.b16 %v1825
  %v1847 = vunpack.c.h.b16 %v1825
  %v1848 = vunpack.c.l.b16 %v1826
  %v1849 = vunpack.c.h.b16 %v1826
  %v1850 = vunpack.c.l.b16 %v1827
  %v1851 = vunpack.c.h.b16 %v1827
  %v1852 = vunpack.c.l.b16 %v1828
  %v1853 = vunpack.c.h.b16 %v1828
  %v1854 = vunpack.c.l.b16 %v1829
  %v1855 = vunpack.c.h.b16 %v1829
  %v1856 = vunpack.c.l.b16 %v1830
  %v1857 = vunpack.c.h.b16 %v1830
  %v1858 = vunpack.c.l.b16 %v1831
  %v1859 = vunpack.c.h.b16 %v1831
  %v1860 = vpack.c.b16 %v1846, %v1844
  %v1861 = vpack.c.b16 %v1847, %v1845
  %v1862 = vpack.c.b16 %v1850, %v1848
  %v1863 = vpack.c.b16 %v1851, %v1849
  %v1864 = vpack.c.b16 %v1854, %v1852
  %v1865 = vpack.c.b16 %v1855, %v1853
  %v1866 = vpack.c.b16 %v1858, %v1856
  %v1867 = vpack.c.b16 %v1859, %v1857
  %v1877 = vsel %vm366, %v1835, 0
  %1879 = vmatprep.subr.bf16.mxu0 %v1861
  %1880 = vmatpush1.bf16.msra.mxu0 %v1860
  %1881 = vmatprep.subr.bf16.mxu0 %v1863
  %1882 = vmatpush1.bf16.msra.mxu0 %v1862
  %1883 = vmatprep.subr.bf16.mxu0 %v1865
  %1884 = vmatpush1.bf16.msra.mxu0 %v1864
  %1885 = vmatprep.subr.bf16.mxu0 %v1867
  %1886 = vmatpush1.bf16.msra.mxu0 %v1866
  %1887 = vmatprep.subr.bf16.mxu0 0
  %1888 = vmatpush1.bf16.msra.mxu0 0
  %1889 = vmatprep.subr.bf16.mxu0 0
  %1890 = vmatpush1.bf16.msra.mxu0 0
  %1891 = vmatprep.subr.bf16.mxu0 0
  %1892 = vmatpush1.bf16.msra.mxu0 0
  %1893 = vmatprep.subr.bf16.mxu0 0
  %1894 = vmatpush1.bf16.msra.mxu0 0
  %1895 = vmatprep.subr.bf16.mxu0 0
  %1896 = vmatpush1.bf16.msra.mxu0 0
  %1897 = vmatprep.subr.bf16.mxu0 0
  %1898 = vmatpush1.bf16.msra.mxu0 0
  %1899 = vmatprep.subr.bf16.mxu0 0
  %1900 = vmatpush1.bf16.msra.mxu0 0
  %1901 = vmatprep.subr.bf16.mxu0 0
  %1902 = vmatpush1.bf16.msra.mxu0 0
  %1903 = vmatprep.subr.bf16.mxu0 0
  %1904 = vmatpush1.bf16.msra.mxu0 0
  %1905 = vmatprep.subr.bf16.mxu0 0
  %1906 = vmatpush1.bf16.msra.mxu0 0
  %1907 = vmatprep.subr.bf16.mxu0 0
  %1908 = vmatpush1.bf16.msra.mxu0 0
  %1909 = vmatprep.subr.bf16.mxu0 0
  %1910 = vmatpush1.bf16.msra.mxu0 0
  %1911 = vmatprep.mubr.bf16.mxu0 0
  %1912 = vmatmul.mubr.bf16.gmra.mrb[0].mxu0 %v1877
  %v1913 = vpop.f32.mrb[0].mxu0
  %v1914 = vadd.f32 0.0, %v1913
  %v1915 = vpop.f32.mrb[0].mxu0
  %v1916 = vadd.f32 0.0, %v1915
  %v1917 = vpop.f32.mrb[0].mxu0
  %v1918 = vpop.f32.mrb[0].mxu0
  %1919 = vdwg.mxu0
  %v1920 = vadd.f32 %v1832, %v1914
  %v1921 = vadd.f32 %v1833, %v1916
  %v1922 = vxor.u32 %v1920, 2147483648
  %v1923 = vxor.u32 %v1921, 2147483648
  %v1924 = vmul.f32 %v1922, 1.442695
  %v1925 = vpow.pop %v1924
  %v1926 = vmul.f32 %v1923, 1.442695
  %v1927 = vpow.pop %v1926
  %v1928 = vadd.f32 %v1925, 1.0
  %v1929 = vadd.f32 %v1927, 1.0
  %v1930 = vrcp.pop %v1928
  %v1931 = vmul.f32 1.0, %v1930
  %v1932 = vrcp.pop %v1929
  %v1933 = vmul.f32 1.0, %v1932
  %v1934 = vtanh.pop %v1921
  %v1935 = vld [vmem:[#allocation9] sm:$0xff]
  %1937 = vrot.lane.b32.xlu0 %v1935, 64
  %v1938 = vpop.permute.xlu0 %1937
  %v1940 = vmul.f32 %v1931, %v1938
  %1942 = vrot.lane.b32.xlu0 %v1934, 64
  %v1943 = vpop.permute.xlu0 %1942
  %v1945 = vmul.f32 %v1931, %v1943
  %1947 = vrot.lane.b32.xlu0 %v1945, 64
  %v1948 = vpop.permute.xlu0 %1947
  %v1950 = vadd.f32 %v1940, %v1948
  %v1951 = vtanh.pop %v1950
  %1953 = vrot.lane.b32.xlu0 %v1951, 64
  %v1954 = vpop.permute.xlu0 %1953
  %v1956 = vmul.f32 %v1933, %v1954
  %1958 = vrot.lane.b32.xlu0 %v1950, 64
  %v1959 = vpop.permute.xlu0 %1958
  %1961 = vst.msk [vmem:[#allocation9] sm:$0xff] %vm366, %v1959
  %1962 = vst.msk [vmem:[#allocation8] sm:$0xff] %vm366, %v1956
  %1963 = vst.msk [vmem:[#allocation4] sm:$0xff] %vm511, %v1956
  %1965 = vrot.lane.b32.xlu0 %v1956, 96
  %v1966 = vpop.permute.xlu0 %1965
  %1968 = vst.msk [vmem:[%s517] sm:$0xff] %vm511, %v1966
  %v1969 = vld [vmem:[%s524] sm:$0xff]
  %v1970 = vld [vmem:[%s524 + $0x8] sm:$0xff]
  %v1971 = vld [vmem:[#allocation8] sm:$0xff]
  %v1972 = vpack.c.bf16 %v1971, %v1971
  %v1974 = vsel %vm366, %v1972, 0
  %1976 = vmatprep.subr.bf16.mxu0 %v1861
  %1977 = vmatpush1.bf16.msra.mxu0 %v1860
  %1978 = vmatprep.subr.bf16.mxu0 %v1863
  %1979 = vmatpush1.bf16.msra.mxu0 %v1862
  %1980 = vmatprep.subr.bf16.mxu0 %v1865
  %1981 = vmatpush1.bf16.msra.mxu0 %v1864
  %1982 = vmatprep.subr.bf16.mxu0 %v1867
  %1983 = vmatpush1.bf16.msra.mxu0 %v1866
  %1984 = vmatprep.subr.bf16.mxu0 0
  %1985 = vmatpush1.bf16.msra.mxu0 0
  %1986 = vmatprep.subr.bf16.mxu0 0
  %1987 = vmatpush1.bf16.msra.mxu0 0
  %1988 = vmatprep.subr.bf16.mxu0 0
  %1989 = vmatpush1.bf16.msra.mxu0 0
  %1990 = vmatprep.subr.bf16.mxu0 0
  %1991 = vmatpush1.bf16.msra.mxu0 0
  %1992 = vmatprep.subr.bf16.mxu0 0
  %1993 = vmatpush1.bf16.msra.mxu0 0
  %1994 = vmatprep.subr.bf16.mxu0 0
  %1995 = vmatpush1.bf16.msra.mxu0 0
  %1996 = vmatprep.subr.bf16.mxu0 0
  %1997 = vmatpush1.bf16.msra.mxu0 0
  %1998 = vmatprep.subr.bf16.mxu0 0
  %1999 = vmatpush1.bf16.msra.mxu0 0
  %2000 = vmatprep.subr.bf16.mxu0 0
  %2001 = vmatpush1.bf16.msra.mxu0 0
  %2002 = vmatprep.subr.bf16.mxu0 0
  %2003 = vmatpush1.bf16.msra.mxu0 0
  %2004 = vmatprep.subr.bf16.mxu0 0
  %2005 = vmatpush1.bf16.msra.mxu0 0
  %2006 = vmatprep.subr.bf16.mxu0 0
  %2007 = vmatpush1.bf16.msra.mxu0 0
  %2008 = vmatprep.mubr.bf16.mxu0 0
  %2009 = vmatmul.mubr.bf16.gmra.mrb[0].mxu0 %v1974
  %v2010 = vpop.f32.mrb[0].mxu0
  %v2011 = vadd.f32 0.0, %v2010
  %v2012 = vpop.f32.mrb[0].mxu0
  %v2013 = vadd.f32 0.0, %v2012
  %v2014 = vpop.f32.mrb[0].mxu0
  %v2015 = vpop.f32.mrb[0].mxu0
  %2016 = vdwg.mxu0
  %v2017 = vadd.f32 %v1969, %v2011
  %v2018 = vadd.f32 %v1970, %v2013
  %v2019 = vxor.u32 %v2017, 2147483648
  %v2020 = vxor.u32 %v2018, 2147483648
  %v2021 = vmul.f32 %v2019, 1.442695
  %v2022 = vpow.pop %v2021
  %v2023 = vmul.f32 %v2020, 1.442695
  %v2024 = vpow.pop %v2023
  %v2025 = vadd.f32 %v2022, 1.0
  %v2026 = vadd.f32 %v2024, 1.0
  %v2027 = vrcp.pop %v2025
  %v2028 = vmul.f32 1.0, %v2027
  %v2029 = vrcp.pop %v2026
  %v2030 = vmul.f32 1.0, %v2029
  %v2031 = vtanh.pop %v2018
  %v2032 = vld [vmem:[#allocation9] sm:$0xff]
  %2034 = vrot.lane.b32.xlu0 %v2032, 64
  %v2035 = vpop.permute.xlu0 %2034
  %v2037 = vmul.f32 %v2028, %v2035
  %2039 = vrot.lane.b32.xlu0 %v2031, 64
  %v2040 = vpop.permute.xlu0 %2039
  %v2042 = vmul.f32 %v2028, %v2040
  %2044 = vrot.lane.b32.xlu0 %v2042, 64
  %v2045 = vpop.permute.xlu0 %2044
  %v2047 = vadd.f32 %v2037, %v2045
  %v2048 = vtanh.pop %v2047
  %2050 = vrot.lane.b32.xlu0 %v2048, 64
  %v2051 = vpop.permute.xlu0 %2050
  %v2053 = vmul.f32 %v2030, %v2051
  %2055 = vrot.lane.b32.xlu0 %v2047, 64
  %v2056 = vpop.permute.xlu0 %2055
  %2058 = vst.msk [vmem:[#allocation9] sm:$0xff] %vm366, %v2056
  %2059 = vst.msk [vmem:[#allocation8] sm:$0xff] %vm366, %v2053
  %2060 = vst.msk [vmem:[%s616] sm:$0xff] %vm511, %v2053
  %2062 = vrot.lane.b32.xlu0 %v2053, 96
  %v2063 = vpop.permute.xlu0 %2062
  %2065 = vst.msk [vmem:[%s622] sm:$0xff] %vm511, %v2063
  %v2066 = vld [vmem:[%s630] sm:$0xff]
  %v2067 = vld [vmem:[%s630 + $0x8] sm:$0xff]
  %v2068 = vld [vmem:[#allocation8] sm:$0xff]
  %v2069 = vpack.c.bf16 %v2068, %v2068
  %v2071 = vsel %vm366, %v2069, 0
  %2073 = vmatprep.subr.bf16.mxu0 %v1861
  %2074 = vmatpush1.bf16.msra.mxu0 %v1860
  %2075 = vmatprep.subr.bf16.mxu0 %v1863
  %2076 = vmatpush1.bf16.msra.mxu0 %v1862
  %2077 = vmatprep.subr.bf16.mxu0 %v1865
  %2078 = vmatpush1.bf16.msra.mxu0 %v1864
  %2079 = vmatprep.subr.bf16.mxu0 %v1867
  %2080 = vmatpush1.bf16.msra.mxu0 %v1866
  %2081 = vmatprep.subr.bf16.mxu0 0
  %2082 = vmatpush1.bf16.msra.mxu0 0
  %2083 = vmatprep.subr.bf16.mxu0 0
  %2084 = vmatpush1.bf16.msra.mxu0 0
  %2085 = vmatprep.subr.bf16.mxu0 0
  %2086 = vmatpush1.bf16.msra.mxu0 0
  %2087 = vmatprep.subr.bf16.mxu0 0
  %2088 = vmatpush1.bf16.msra.mxu0 0
  %2089 = vmatprep.subr.bf16.mxu0 0
  %2090 = vmatpush1.bf16.msra.mxu0 0
  %2091 = vmatprep.subr.bf16.mxu0 0
  %2092 = vmatpush1.bf16.msra.mxu0 0
  %2093 = vmatprep.subr.bf16.mxu0 0
  %2094 = vmatpush1.bf16.msra.mxu0 0
  %2095 = vmatprep.subr.bf16.mxu0 0
  %2096 = vmatpush1.bf16.msra.mxu0 0
  %2097 = vmatprep.subr.bf16.mxu0 0
  %2098 = vmatpush1.bf16.msra.mxu0 0
  %2099 = vmatprep.subr.bf16.mxu0 0
  %2100 = vmatpush1.bf16.msra.mxu0 0
  %2101 = vmatprep.subr.bf16.mxu0 0
  %2102 = vmatpush1.bf16.msra.mxu0 0
  %2103 = vmatprep.subr.bf16.mxu0 0
  %2104 = vmatpush1.bf16.msra.mxu0 0
  %2105 = vmatprep.mubr.bf16.mxu0 0
  %2106 = vmatmul.mubr.bf16.gmra.mrb[0].mxu0 %v2071
  %v2107 = vpop.f32.mrb[0].mxu0
  %v2108 = vadd.f32 0.0, %v2107
  %v2109 = vpop.f32.mrb[0].mxu0
  %v2110 = vadd.f32 0.0, %v2109
  %v2111 = vpop.f32.mrb[0].mxu0
  %v2112 = vpop.f32.mrb[0].mxu0
  %2113 = vdwg.mxu0
  %v2114 = vadd.f32 %v2066, %v2108
  %v2115 = vadd.f32 %v2067, %v2110
  %v2116 = vxor.u32 %v2114, 2147483648
  %v2117 = vxor.u32 %v2115, 2147483648
  %v2118 = vmul.f32 %v2116, 1.442695
  %v2119 = vpow.pop %v2118
  %v2120 = vmul.f32 %v2117, 1.442695
  %v2121 = vpow.pop %v2120
  %v2122 = vadd.f32 %v2119, 1.0
  %v2123 = vadd.f32 %v2121, 1.0
  %v2124 = vrcp.pop %v2122
  %v2125 = vmul.f32 1.0, %v2124
  %v2126 = vrcp.pop %v2123
  %v2127 = vmul.f32 1.0, %v2126
  %v2128 = vtanh.pop %v2115
  %v2129 = vld [vmem:[#allocation9] sm:$0xff]
  %2131 = vrot.lane.b32.xlu0 %v2129, 64
  %v2132 = vpop.permute.xlu0 %2131
  %v2134 = vmul.f32 %v2125, %v2132
  %2136 = vrot.lane.b32.xlu0 %v2128, 64
  %v2137 = vpop.permute.xlu0 %2136
  %v2139 = vmul.f32 %v2125, %v2137
  %2141 = vrot.lane.b32.xlu0 %v2139, 64
  %v2142 = vpop.permute.xlu0 %2141
  %v2144 = vadd.f32 %v2134, %v2142
  %v2145 = vtanh.pop %v2144
  %2147 = vrot.lane.b32.xlu0 %v2145, 64
  %v2148 = vpop.permute.xlu0 %2147
  %v2150 = vmul.f32 %v2127, %v2148
  %2152 = vrot.lane.b32.xlu0 %v2144, 64
  %v2153 = vpop.permute.xlu0 %2152
  %2155 = vst.msk [vmem:[#allocation9] sm:$0xff] %vm366, %v2153
  %2156 = vst.msk [vmem:[#allocation8] sm:$0xff] %vm366, %v2150
  %2157 = vst.msk [vmem:[%s722] sm:$0xff] %vm511, %v2150
  %2159 = vrot.lane.b32.xlu0 %v2150, 96
  %v2160 = vpop.permute.xlu0 %2159
  %2162 = vst.msk [vmem:[%s728] sm:$0xff] %vm511, %v2160
  %v2163 = vld [vmem:[%s736] sm:$0xff]
  %v2164 = vld [vmem:[%s736 + $0x8] sm:$0xff]
  %v2165 = vld [vmem:[#allocation8] sm:$0xff]
  %v2166 = vpack.c.bf16 %v2165, %v2165
  %v2168 = vsel %vm366, %v2166, 0
  %2170 = vmatprep.subr.bf16.mxu0 %v1861
  %2171 = vmatpush1.bf16.msra.mxu0 %v1860
  %2172 = vmatprep.subr.bf16.mxu0 %v1863
  %2173 = vmatpush1.bf16.msra.mxu0 %v1862
  %2174 = vmatprep.subr.bf16.mxu0 %v1865
  %2175 = vmatpush1.bf16.msra.mxu0 %v1864
  %2176 = vmatprep.subr.bf16.mxu0 %v1867
  %2177 = vmatpush1.bf16.msra.mxu0 %v1866
  %2178 = vmatprep.subr.bf16.mxu0 0
  %2179 = vmatpush1.bf16.msra.mxu0 0
  %2180 = vmatprep.subr.bf16.mxu0 0
  %2181 = vmatpush1.bf16.msra.mxu0 0
  %2182 = vmatprep.subr.bf16.mxu0 0
  %2183 = vmatpush1.bf16.msra.mxu0 0
  %2184 = vmatprep.subr.bf16.mxu0 0
  %2185 = vmatpush1.bf16.msra.mxu0 0
  %2186 = vmatprep.subr.bf16.mxu0 0
  %2187 = vmatpush1.bf16.msra.mxu0 0
  %2188 = vmatprep.subr.bf16.mxu0 0
  %2189 = vmatpush1.bf16.msra.mxu0 0
  %2190 = vmatprep.subr.bf16.mxu0 0
  %2191 = vmatpush1.bf16.msra.mxu0 0
  %2192 = vmatprep.subr.bf16.mxu0 0
  %2193 = vmatpush1.bf16.msra.mxu0 0
  %2194 = vmatprep.subr.bf16.mxu0 0
  %2195 = vmatpush1.bf16.msra.mxu0 0
  %2196 = vmatprep.subr.bf16.mxu0 0
  %2197 = vmatpush1.bf16.msra.mxu0 0
  %2198 = vmatprep.subr.bf16.mxu0 0
  %2199 = vmatpush1.bf16.msra.mxu0 0
  %2200 = vmatprep.subr.bf16.mxu0 0
  %2201 = vmatpush1.bf16.msra.mxu0 0
  %2202 = vmatprep.mubr.bf16.mxu0 0
  %2203 = vmatmul.mubr.bf16.gmra.mrb[0].mxu0 %v2168
  %v2204 = vpop.f32.mrb[0].mxu0
  %v2205 = vadd.f32 0.0, %v2204
  %v2206 = vpop.f32.mrb[0].mxu0
  %v2207 = vadd.f32 0.0, %v2206
  %v2208 = vpop.f32.mrb[0].mxu0
  %v2209 = vpop.f32.mrb[0].mxu0
  %2210 = vdwg.mxu0
  %v2211 = vadd.f32 %v2163, %v2205
  %v2212 = vadd.f32 %v2164, %v2207
  %v2213 = vxor.u32 %v2211, 2147483648
  %v2214 = vxor.u32 %v2212, 2147483648
  %v2215 = vmul.f32 %v2213, 1.442695
  %v2216 = vpow.pop %v2215
  %v2217 = vmul.f32 %v2214, 1.442695
  %v2218 = vpow.pop %v2217
  %v2219 = vadd.f32 %v2216, 1.0
  %v2220 = vadd.f32 %v2218, 1.0
  %v2221 = vrcp.pop %v2219
  %v2222 = vmul.f32 1.0, %v2221
  %v2223 = vrcp.pop %v2220
  %v2224 = vmul.f32 1.0, %v2223
  %v2225 = vtanh.pop %v2212
  %v2226 = vld [vmem:[#allocation9] sm:$0xff]
  %2228 = vrot.lane.b32.xlu0 %v2226, 64
  %v2229 = vpop.permute.xlu0 %2228
  %v2231 = vmul.f32 %v2222, %v2229
  %2233 = vrot.lane.b32.xlu0 %v2225, 64
  %v2234 = vpop.permute.xlu0 %2233
  %v2236 = vmul.f32 %v2222, %v2234
  %2238 = vrot.lane.b32.xlu0 %v2236, 64
  %v2239 = vpop.permute.xlu0 %2238
  %v2241 = vadd.f32 %v2231, %v2239
  %v2242 = vtanh.pop %v2241
  %2244 = vrot.lane.b32.xlu0 %v2242, 64
  %v2245 = vpop.permute.xlu0 %2244
  %v2247 = vmul.f32 %v2224, %v2245
  %2249 = vrot.lane.b32.xlu0 %v2241, 64
  %v2250 = vpop.permute.xlu0 %2249
  %2252 = vst.msk [vmem:[#allocation9] sm:$0xff] %vm366, %v2250
  %2253 = vst.msk [vmem:[#allocation8] sm:$0xff] %vm366, %v2247
  %2254 = vst.msk [vmem:[%s828] sm:$0xff] %vm511, %v2247
  %2256 = vrot.lane.b32.xlu0 %v2247, 96
  %v2257 = vpop.permute.xlu0 %2256
  %2259 = vst.msk [vmem:[%s834] sm:$0xff] %vm511, %v2257
  %v2260 = vld [vmem:[%s842] sm:$0xff]
  %v2261 = vld [vmem:[%s842 + $0x8] sm:$0xff]
  %v2262 = vld [vmem:[#allocation8] sm:$0xff]
  %v2263 = vpack.c.bf16 %v2262, %v2262
  %v2265 = vsel %vm366, %v2263, 0
  %2267 = vmatprep.subr.bf16.mxu0 %v1861
  %2268 = vmatpush1.bf16.msra.mxu0 %v1860
  %2269 = vmatprep.subr.bf16.mxu0 %v1863
  %2270 = vmatpush1.bf16.msra.mxu0 %v1862
  %2271 = vmatprep.subr.bf16.mxu0 %v1865
  %2272 = vmatpush1.bf16.msra.mxu0 %v1864
  %2273 = vmatprep.subr.bf16.mxu0 %v1867
  %2274 = vmatpush1.bf16.msra.mxu0 %v1866
  %2275 = vmatprep.subr.bf16.mxu0 0
  %2276 = vmatpush1.bf16.msra.mxu0 0
  %2277 = vmatprep.subr.bf16.mxu0 0
  %2278 = vmatpush1.bf16.msra.mxu0 0
  %2279 = vmatprep.subr.bf16.mxu0 0
  %2280 = vmatpush1.bf16.msra.mxu0 0
  %2281 = vmatprep.subr.bf16.mxu0 0
  %2282 = vmatpush1.bf16.msra.mxu0 0
  %2283 = vmatprep.subr.bf16.mxu0 0
  %2284 = vmatpush1.bf16.msra.mxu0 0
  %2285 = vmatprep.subr.bf16.mxu0 0
  %2286 = vmatpush1.bf16.msra.mxu0 0
  %2287 = vmatprep.subr.bf16.mxu0 0
  %2288 = vmatpush1.bf16.msra.mxu0 0
  %2289 = vmatprep.subr.bf16.mxu0 0
  %2290 = vmatpush1.bf16.msra.mxu0 0
  %2291 = vmatprep.subr.bf16.mxu0 0
  %2292 = vmatpush1.bf16.msra.mxu0 0
  %2293 = vmatprep.subr.bf16.mxu0 0
  %2294 = vmatpush1.bf16.msra.mxu0 0
  %2295 = vmatprep.subr.bf16.mxu0 0
  %2296 = vmatpush1.bf16.msra.mxu0 0
  %2297 = vmatprep.subr.bf16.mxu0 0
  %2298 = vmatpush1.bf16.msra.mxu0 0
  %2299 = vmatprep.mubr.bf16.mxu0 0
  %2300 = vmatmul.mubr.bf16.gmra.mrb[0].mxu0 %v2265
  %v2301 = vpop.f32.mrb[0].mxu0
  %v2302 = vadd.f32 0.0, %v2301
  %v2303 = vpop.f32.mrb[0].mxu0
  %v2304 = vadd.f32 0.0, %v2303
  %v2305 = vpop.f32.mrb[0].mxu0
  %v2306 = vpop.f32.mrb[0].mxu0
  %2307 = vdwg.mxu0
  %v2308 = vadd.f32 %v2260, %v2302
  %v2309 = vadd.f32 %v2261, %v2304
  %v2310 = vxor.u32 %v2308, 2147483648
  %v2311 = vxor.u32 %v2309, 2147483648
  %v2312 = vmul.f32 %v2310, 1.442695
  %v2313 = vpow.pop %v2312
  %v2314 = vmul.f32 %v2311, 1.442695
  %v2315 = vpow.pop %v2314
  %v2316 = vadd.f32 %v2313, 1.0
  %v2317 = vadd.f32 %v2315, 1.0
  %v2318 = vrcp.pop %v2316
  %v2319 = vmul.f32 1.0, %v2318
  %v2320 = vrcp.pop %v2317
  %v2321 = vmul.f32 1.0, %v2320
  %v2322 = vtanh.pop %v2309
  %v2323 = vld [vmem:[#allocation9] sm:$0xff]
  %2325 = vrot.lane.b32.xlu0 %v2323, 64
  %v2326 = vpop.permute.xlu0 %2325
  %v2328 = vmul.f32 %v2319, %v2326
  %2330 = vrot.lane.b32.xlu0 %v2322, 64
  %v2331 = vpop.permute.xlu0 %2330
  %v2333 = vmul.f32 %v2319, %v2331
  %2335 = vrot.lane.b32.xlu0 %v2333, 64
  %v2336 = vpop.permute.xlu0 %2335
  %v2338 = vadd.f32 %v2328, %v2336
  %v2339 = vtanh.pop %v2338
  %2341 = vrot.lane.b32.xlu0 %v2339, 64
  %v2342 = vpop.permute.xlu0 %2341
  %v2344 = vmul.f32 %v2321, %v2342
  %2346 = vrot.lane.b32.xlu0 %v2338, 64
  %v2347 = vpop.permute.xlu0 %2346
  %2349 = vst.msk [vmem:[#allocation9] sm:$0xff] %vm366, %v2347
  %2350 = vst.msk [vmem:[#allocation8] sm:$0xff] %vm366, %v2344
  %2351 = vst.msk [vmem:[%s934] sm:$0xff] %vm511, %v2344
  %2353 = vrot.lane.b32.xlu0 %v2344, 96
  %v2354 = vpop.permute.xlu0 %2353
  %2356 = vst.msk [vmem:[%s940] sm:$0xff] %vm511, %v2354
  %v2357 = vld [vmem:[%s948] sm:$0xff]
  %v2358 = vld [vmem:[%s948 + $0x8] sm:$0xff]
  %v2359 = vld [vmem:[#allocation8] sm:$0xff]
  %v2360 = vpack.c.bf16 %v2359, %v2359
  %v2362 = vsel %vm366, %v2360, 0
  %2364 = vmatprep.subr.bf16.mxu0 %v1861
  %2365 = vmatpush1.bf16.msra.mxu0 %v1860
  %2366 = vmatprep.subr.bf16.mxu0 %v1863
  %2367 = vmatpush1.bf16.msra.mxu0 %v1862
  %2368 = vmatprep.subr.bf16.mxu0 %v1865
  %2369 = vmatpush1.bf16.msra.mxu0 %v1864
  %2370 = vmatprep.subr.bf16.mxu0 %v1867
  %2371 = vmatpush1.bf16.msra.mxu0 %v1866
  %2372 = vmatprep.subr.bf16.mxu0 0
  %2373 = vmatpush1.bf16.msra.mxu0 0
  %2374 = vmatprep.subr.bf16.mxu0 0
  %2375 = vmatpush1.bf16.msra.mxu0 0
  %2376 = vmatprep.subr.bf16.mxu0 0
  %2377 = vmatpush1.bf16.msra.mxu0 0
  %2378 = vmatprep.subr.bf16.mxu0 0
  %2379 = vmatpush1.bf16.msra.mxu0 0
  %2380 = vmatprep.subr.bf16.mxu0 0
  %2381 = vmatpush1.bf16.msra.mxu0 0
  %2382 = vmatprep.subr.bf16.mxu0 0
  %2383 = vmatpush1.bf16.msra.mxu0 0
  %2384 = vmatprep.subr.bf16.mxu0 0
  %2385 = vmatpush1.bf16.msra.mxu0 0
  %2386 = vmatprep.subr.bf16.mxu0 0
  %2387 = vmatpush1.bf16.msra.mxu0 0
  %2388 = vmatprep.subr.bf16.mxu0 0
  %2389 = vmatpush1.bf16.msra.mxu0 0
  %2390 = vmatprep.subr.bf16.mxu0 0
  %2391 = vmatpush1.bf16.msra.mxu0 0
  %2392 = vmatprep.subr.bf16.mxu0 0
  %2393 = vmatpush1.bf16.msra.mxu0 0
  %2394 = vmatprep.subr.bf16.mxu0 0
  %2395 = vmatpush1.bf16.msra.mxu0 0
  %2396 = vmatprep.mubr.bf16.mxu0 0
  %2397 = vmatmul.mubr.bf16.gmra.mrb[0].mxu0 %v2362
  %v2398 = vpop.f32.mrb[0].mxu0
  %v2399 = vadd.f32 0.0, %v2398
  %v2400 = vpop.f32.mrb[0].mxu0
  %v2401 = vadd.f32 0.0, %v2400
  %v2402 = vpop.f32.mrb[0].mxu0
  %v2403 = vpop.f32.mrb[0].mxu0
  %2404 = vdwg.mxu0
  %v2405 = vadd.f32 %v2357, %v2399
  %v2406 = vadd.f32 %v2358, %v2401
  %v2407 = vxor.u32 %v2405, 2147483648
  %v2408 = vxor.u32 %v2406, 2147483648
  %v2409 = vmul.f32 %v2407, 1.442695
  %v2410 = vpow.pop %v2409
  %v2411 = vmul.f32 %v2408, 1.442695
  %v2412 = vpow.pop %v2411
  %v2413 = vadd.f32 %v2410, 1.0
  %v2414 = vadd.f32 %v2412, 1.0
  %v2415 = vrcp.pop %v2413
  %v2416 = vmul.f32 1.0, %v2415
  %v2417 = vrcp.pop %v2414
  %v2418 = vmul.f32 1.0, %v2417
  %v2419 = vtanh.pop %v2406
  %v2420 = vld [vmem:[#allocation9] sm:$0xff]
  %2422 = vrot.lane.b32.xlu0 %v2420, 64
  %v2423 = vpop.permute.xlu0 %2422
  %v2425 = vmul.f32 %v2416, %v2423
  %2427 = vrot.lane.b32.xlu0 %v2419, 64
  %v2428 = vpop.permute.xlu0 %2427
  %v2430 = vmul.f32 %v2416, %v2428
  %2432 = vrot.lane.b32.xlu0 %v2430, 64
  %v2433 = vpop.permute.xlu0 %2432
  %v2435 = vadd.f32 %v2425, %v2433
  %v2436 = vtanh.pop %v2435
  %2438 = vrot.lane.b32.xlu0 %v2436, 64
  %v2439 = vpop.permute.xlu0 %2438
  %v2441 = vmul.f32 %v2418, %v2439
  %2443 = vrot.lane.b32.xlu0 %v2435, 64
  %v2444 = vpop.permute.xlu0 %2443
  %2446 = vst.msk [vmem:[#allocation9] sm:$0xff] %vm366, %v2444
  %2447 = vst.msk [vmem:[#allocation8] sm:$0xff] %vm366, %v2441
  %2448 = vst.msk [vmem:[%s1040] sm:$0xff] %vm511, %v2441
  %2450 = vrot.lane.b32.xlu0 %v2441, 96
  %v2451 = vpop.permute.xlu0 %2450
  %2453 = vst.msk [vmem:[%s1046] sm:$0xff] %vm511, %v2451
  %v2454 = vld [vmem:[%s1054] sm:$0xff]
  %v2455 = vld [vmem:[%s1054 + $0x8] sm:$0xff]
  %v2456 = vld [vmem:[#allocation8] sm:$0xff]
  %v2457 = vpack.c.bf16 %v2456, %v2456
  %v2459 = vsel %vm366, %v2457, 0
  %2461 = vmatprep.subr.bf16.mxu0 %v1861
  %2462 = vmatpush1.bf16.msra.mxu0 %v1860
  %2463 = vmatprep.subr.bf16.mxu0 %v1863
  %2464 = vmatpush1.bf16.msra.mxu0 %v1862
  %2465 = vmatprep.subr.bf16.mxu0 %v1865
  %2466 = vmatpush1.bf16.msra.mxu0 %v1864
  %2467 = vmatprep.subr.bf16.mxu0 %v1867
  %2468 = vmatpush1.bf16.msra.mxu0 %v1866
  %2469 = vmatprep.subr.bf16.mxu0 0
  %2470 = vmatpush1.bf16.msra.mxu0 0
  %2471 = vmatprep.subr.bf16.mxu0 0
  %2472 = vmatpush1.bf16.msra.mxu0 0
  %2473 = vmatprep.subr.bf16.mxu0 0
  %2474 = vmatpush1.bf16.msra.mxu0 0
  %2475 = vmatprep.subr.bf16.mxu0 0
  %2476 = vmatpush1.bf16.msra.mxu0 0
  %2477 = vmatprep.subr.bf16.mxu0 0
  %2478 = vmatpush1.bf16.msra.mxu0 0
  %2479 = vmatprep.subr.bf16.mxu0 0
  %2480 = vmatpush1.bf16.msra.mxu0 0
  %2481 = vmatprep.subr.bf16.mxu0 0
  %2482 = vmatpush1.bf16.msra.mxu0 0
  %2483 = vmatprep.subr.bf16.mxu0 0
  %2484 = vmatpush1.bf16.msra.mxu0 0
  %2485 = vmatprep.subr.bf16.mxu0 0
  %2486 = vmatpush1.bf16.msra.mxu0 0
  %2487 = vmatprep.subr.bf16.mxu0 0
  %2488 = vmatpush1.bf16.msra.mxu0 0
  %2489 = vmatprep.subr.bf16.mxu0 0
  %2490 = vmatpush1.bf16.msra.mxu0 0
  %2491 = vmatprep.subr.bf16.mxu0 0
  %2492 = vmatpush1.bf16.msra.mxu0 0
  %2493 = vmatprep.mubr.bf16.mxu0 0
  %2494 = vmatmul.mubr.bf16.gmra.mrb[0].mxu0 %v2459
  %v2495 = vpop.f32.mrb[0].mxu0
  %v2496 = vadd.f32 0.0, %v2495
  %v2497 = vpop.f32.mrb[0].mxu0
  %v2498 = vadd.f32 0.0, %v2497
  %v2499 = vpop.f32.mrb[0].mxu0
  %v2500 = vpop.f32.mrb[0].mxu0
  %2501 = vdwg.mxu0
  %v2502 = vadd.f32 %v2454, %v2496
  %v2503 = vadd.f32 %v2455, %v2498
  %v2504 = vxor.u32 %v2502, 2147483648
  %v2505 = vxor.u32 %v2503, 2147483648
  %v2506 = vmul.f32 %v2504, 1.442695
  %v2507 = vpow.pop %v2506
  %v2508 = vmul.f32 %v2505, 1.442695
  %v2509 = vpow.pop %v2508
  %v2510 = vadd.f32 %v2507, 1.0
  %v2511 = vadd.f32 %v2509, 1.0
  %v2512 = vrcp.pop %v2510
  %v2513 = vmul.f32 1.0, %v2512
  %v2514 = vrcp.pop %v2511
  %v2515 = vmul.f32 1.0, %v2514
  %v2516 = vtanh.pop %v2503
  %v2517 = vld [vmem:[#allocation9] sm:$0xff]
  %2519 = vrot.lane.b32.xlu0 %v2517, 64
  %v2520 = vpop.permute.xlu0 %2519
  %v2522 = vmul.f32 %v2513, %v2520
  %2524 = vrot.lane.b32.xlu0 %v2516, 64
  %v2525 = vpop.permute.xlu0 %2524
  %v2527 = vmul.f32 %v2513, %v2525
  %2529 = vrot.lane.b32.xlu0 %v2527, 64
  %v2530 = vpop.permute.xlu0 %2529
  %v2532 = vadd.f32 %v2522, %v2530
  %v2533 = vtanh.pop %v2532
  %2535 = vrot.lane.b32.xlu0 %v2533, 64
  %v2536 = vpop.permute.xlu0 %2535
  %v2538 = vmul.f32 %v2515, %v2536
  %2540 = vrot.lane.b32.xlu0 %v2532, 64
  %v2541 = vpop.permute.xlu0 %2540
  %2543 = vst.msk [vmem:[#allocation9] sm:$0xff] %vm366, %v2541
  %2544 = vst.msk [vmem:[#allocation8] sm:$0xff] %vm366, %v2538
  %2545 = vst.msk [vmem:[%s1146] sm:$0xff] %vm511, %v2538
  %2547 = vrot.lane.b32.xlu0 %v2538, 96
  %v2548 = vpop.permute.xlu0 %2547
  %2550 = vst.msk [vmem:[%s1152] sm:$0xff] %vm511, %v2548
  %v2551 = vld [vmem:[%s1160] sm:$0xff]
  %v2552 = vld [vmem:[%s1160 + $0x8] sm:$0xff]
  %v2553 = vld [vmem:[#allocation8] sm:$0xff]
  %v2554 = vpack.c.bf16 %v2553, %v2553
  %v2556 = vsel %vm366, %v2554, 0
  %2558 = vmatprep.subr.bf16.mxu0 %v1861
  %2559 = vmatpush1.bf16.msra.mxu0 %v1860
  %2560 = vmatprep.subr.bf16.mxu0 %v1863
  %2561 = vmatpush1.bf16.msra.mxu0 %v1862
  %2562 = vmatprep.subr.bf16.mxu0 %v1865
  %2563 = vmatpush1.bf16.msra.mxu0 %v1864
  %2564 = vmatprep.subr.bf16.mxu0 %v1867
  %2565 = vmatpush1.bf16.msra.mxu0 %v1866
  %2566 = vmatprep.subr.bf16.mxu0 0
  %2567 = vmatpush1.bf16.msra.mxu0 0
  %2568 = vmatprep.subr.bf16.mxu0 0
  %2569 = vmatpush1.bf16.msra.mxu0 0
  %2570 = vmatprep.subr.bf16.mxu0 0
  %2571 = vmatpush1.bf16.msra.mxu0 0
  %2572 = vmatprep.subr.bf16.mxu0 0
  %2573 = vmatpush1.bf16.msra.mxu0 0
  %2574 = vmatprep.subr.bf16.mxu0 0
  %2575 = vmatpush1.bf16.msra.mxu0 0
  %2576 = vmatprep.subr.bf16.mxu0 0
  %2577 = vmatpush1.bf16.msra.mxu0 0
  %2578 = vmatprep.subr.bf16.mxu0 0
  %2579 = vmatpush1.bf16.msra.mxu0 0
  %2580 = vmatprep.subr.bf16.mxu0 0
  %2581 = vmatpush1.bf16.msra.mxu0 0
  %2582 = vmatprep.subr.bf16.mxu0 0
  %2583 = vmatpush1.bf16.msra.mxu0 0
  %2584 = vmatprep.subr.bf16.mxu0 0
  %2585 = vmatpush1.bf16.msra.mxu0 0
  %2586 = vmatprep.subr.bf16.mxu0 0
  %2587 = vmatpush1.bf16.msra.mxu0 0
  %2588 = vmatprep.subr.bf16.mxu0 0
  %2589 = vmatpush1.bf16.msra.mxu0 0
  %2590 = vmatprep.mubr.bf16.mxu0 0
  %2591 = vmatmul.mubr.bf16.gmra.mrb[0].mxu0 %v2556
  %v2592 = vpop.f32.mrb[0].mxu0
  %v2593 = vadd.f32 0.0, %v2592
  %v2594 = vpop.f32.mrb[0].mxu0
  %v2595 = vadd.f32 0.0, %v2594
  %v2596 = vpop.f32.mrb[0].mxu0
  %v2597 = vpop.f32.mrb[0].mxu0
  %2598 = vdwg.mxu0
  %v2599 = vadd.f32 %v2551, %v2593
  %v2600 = vadd.f32 %v2552, %v2595
  %v2601 = vxor.u32 %v2599, 2147483648
  %v2602 = vxor.u32 %v2600, 2147483648
  %v2603 = vmul.f32 %v2601, 1.442695
  %v2604 = vpow.pop %v2603
  %v2605 = vmul.f32 %v2602, 1.442695
  %v2606 = vpow.pop %v2605
  %v2607 = vadd.f32 %v2604, 1.0
  %v2608 = vadd.f32 %v2606, 1.0
  %v2609 = vrcp.pop %v2607
  %v2610 = vmul.f32 1.0, %v2609
  %v2611 = vrcp.pop %v2608
  %v2612 = vmul.f32 1.0, %v2611
  %v2613 = vtanh.pop %v2600
  %v2614 = vld [vmem:[#allocation9] sm:$0xff]
  %2616 = vrot.lane.b32.xlu0 %v2614, 64
  %v2617 = vpop.permute.xlu0 %2616
  %v2619 = vmul.f32 %v2610, %v2617
  %2621 = vrot.lane.b32.xlu0 %v2613, 64
  %v2622 = vpop.permute.xlu0 %2621
  %v2624 = vmul.f32 %v2610, %v2622
  %2626 = vrot.lane.b32.xlu0 %v2624, 64
  %v2627 = vpop.permute.xlu0 %2626
  %v2629 = vadd.f32 %v2619, %v2627
  %v2630 = vtanh.pop %v2629
  %2632 = vrot.lane.b32.xlu0 %v2630, 64
  %v2633 = vpop.permute.xlu0 %2632
  %v2635 = vmul.f32 %v2612, %v2633
  %2637 = vrot.lane.b32.xlu0 %v2629, 64
  %v2638 = vpop.permute.xlu0 %2637
  %2640 = vst.msk [vmem:[#allocation9] sm:$0xff] %vm366, %v2638
  %2641 = vst.msk [vmem:[#allocation8] sm:$0xff] %vm366, %v2635
  %2642 = vst.msk [vmem:[%s1252] sm:$0xff] %vm511, %v2635
  %2644 = vrot.lane.b32.xlu0 %v2635, 96
  %v2645 = vpop.permute.xlu0 %2644
  %2647 = vst.msk [vmem:[#allocation5] sm:$0xff] %vm511, %v2645
  %v2648 = vld [vmem:[#allocation4] sm:$0xff]
  %v2649 = vld [vmem:[#allocation4 + $0x8] sm:$0xff]
  %v2650 = vld [vmem:[#allocation4 + $0x10] sm:$0xff]
  %v2651 = vld [vmem:[#allocation4 + $0x18] sm:$0xff]
  %v2652 = vld [vmem:[#allocation4 + $0x20] sm:$0xff]
  %v2653 = vld [vmem:[#allocation4 + $0x28] sm:$0xff]
  %v2654 = vld [vmem:[#allocation4 + $0x30] sm:$0xff]
  %v2655 = vld [vmem:[#allocation4 + $0x38] sm:$0xff]
  %v2656 = vld [vmem:[%s11] sm:$0xf]
  %v2657 = vld [vmem:[%s11 + $0x4] sm:$0xf]
  %v2658 = vld [vmem:[%s11 + $0x8] sm:$0xf]
  %v2659 = vld [vmem:[%s11 + $0xc] sm:$0xf]
  %v2660 = vpack.c.bf16 %v2649, %v2648
  %v2661 = vpack.c.bf16 %v2651, %v2650
  %v2662 = vpack.c.bf16 %v2653, %v2652
  %v2663 = vpack.c.bf16 %v2655, %v2654
  %v2664 = vld [vmem:[#allocation5] sm:$0xff]
  %v2665 = vld [vmem:[#allocation5 + $0x8] sm:$0xff]
  %v2666 = vld [vmem:[#allocation5 + $0x10] sm:$0xff]
  %v2667 = vld [vmem:[#allocation5 + $0x18] sm:$0xff]
  %v2668 = vld [vmem:[#allocation5 + $0x20] sm:$0xff]
  %v2669 = vld [vmem:[#allocation5 + $0x28] sm:$0xff]
  %v2670 = vld [vmem:[#allocation5 + $0x30] sm:$0xff]
  %v2671 = vld [vmem:[#allocation5 + $0x38] sm:$0xff]
  %v2672 = vld [vmem:[%s12] sm:$0xf]
  %v2673 = vld [vmem:[%s12 + $0x4] sm:$0xf]
  %v2674 = vld [vmem:[%s12 + $0x8] sm:$0xf]
  %v2675 = vld [vmem:[%s12 + $0xc] sm:$0xf]
  %v2676 = vpack.c.bf16 %v2665, %v2664
  %v2677 = vpack.c.bf16 %v2667, %v2666
  %v2678 = vpack.c.bf16 %v2669, %v2668
  %v2679 = vpack.c.bf16 %v2671, %v2670
  %v2684 = vunpack.c.l.b16 %v2672
  %v2685 = vunpack.c.l.b16 %v2673
  %v2686 = vunpack.c.l.b16 %v2674
  %v2687 = vunpack.c.l.b16 %v2675
  %v2688 = vpack.c.b16 %v2685, %v2684
  %v2689 = vpack.c.b16 %v2687, %v2686
  %v2693 = vsel %vm511, %v2676, 0
  %v2696 = vsel %vm511, %v2677, 0
  %v2699 = vsel %vm511, %v2678, 0
  %v2702 = vsel %vm511, %v2679, 0
  %2704 = vmatprep.subr.bf16.mxu0 0
  %2705 = vmatpush1.bf16.msra.mxu0 %v2688
  %2706 = vmatprep.subr.bf16.mxu0 0
  %2707 = vmatpush1.bf16.msra.mxu0 %v2689
  %2708 = vmatprep.subr.bf16.mxu0 0
  %2709 = vmatpush1.bf16.msra.mxu0 0
  %2710 = vmatprep.subr.bf16.mxu0 0
  %2711 = vmatpush1.bf16.msra.mxu0 0
  %2712 = vmatprep.subr.bf16.mxu0 0
  %2713 = vmatpush1.bf16.msra.mxu0 0
  %2714 = vmatprep.subr.bf16.mxu0 0
  %2715 = vmatpush1.bf16.msra.mxu0 0
  %2716 = vmatprep.subr.bf16.mxu0 0
  %2717 = vmatpush1.bf16.msra.mxu0 0
  %2718 = vmatprep.subr.bf16.mxu0 0
  %2719 = vmatpush1.bf16.msra.mxu0 0
  %2720 = vmatprep.subr.bf16.mxu0 0
  %2721 = vmatpush1.bf16.msra.mxu0 0
  %2722 = vmatprep.subr.bf16.mxu0 0
  %2723 = vmatpush1.bf16.msra.mxu0 0
  %2724 = vmatprep.subr.bf16.mxu0 0
  %2725 = vmatpush1.bf16.msra.mxu0 0
  %2726 = vmatprep.subr.bf16.mxu0 0
  %2727 = vmatpush1.bf16.msra.mxu0 0
  %2728 = vmatprep.subr.bf16.mxu0 0
  %2729 = vmatpush1.bf16.msra.mxu0 0
  %2730 = vmatprep.subr.bf16.mxu0 0
  %2731 = vmatpush1.bf16.msra.mxu0 0
  %2732 = vmatprep.subr.bf16.mxu0 0
  %2733 = vmatpush1.bf16.msra.mxu0 0
  %2734 = vmatprep.subr.bf16.mxu0 0
  %2735 = vmatpush1.bf16.msra.mxu0 0
  %2736 = vmatprep.mubr.bf16.mxu0 0
  %2737 = vmatmul.mubr.bf16.gmra.mrb[0].mxu0 %v2693
  %v2738 = vpop.f32.mrb[0].mxu0
  %v2739 = vadd.f32 0.0, %v2738
  %v2740 = vpop.f32.mrb[0].mxu0
  %v2741 = vpop.f32.mrb[0].mxu0
  %v2742 = vadd.f32 0.0, %v2741
  %v2743 = vpop.f32.mrb[0].mxu0
  %2744 = vmatprep.mubr.bf16.mxu0 0
  %2745 = vmatmul.mubr.bf16.gmra.mrb[0].mxu0 %v2696
  %v2746 = vpop.f32.mrb[0].mxu0
  %v2747 = vadd.f32 0.0, %v2746
  %v2748 = vpop.f32.mrb[0].mxu0
  %v2749 = vpop.f32.mrb[0].mxu0
  %v2750 = vadd.f32 0.0, %v2749
  %v2751 = vpop.f32.mrb[0].mxu0
  %2752 = vmatprep.mubr.bf16.mxu0 0
  %2753 = vmatmul.mubr.bf16.gmra.mrb[0].mxu0 %v2699
  %v2754 = vpop.f32.mrb[0].mxu0
  %v2755 = vadd.f32 0.0, %v2754
  %v2756 = vpop.f32.mrb[0].mxu0
  %v2757 = vpop.f32.mrb[0].mxu0
  %v2758 = vadd.f32 0.0, %v2757
  %v2759 = vpop.f32.mrb[0].mxu0
  %2760 = vmatprep.mubr.bf16.mxu0 0
  %2761 = vmatmul.mubr.bf16.gmra.mrb[0].mxu0 %v2702
  %v2762 = vpop.f32.mrb[0].mxu0
  %v2763 = vadd.f32 0.0, %v2762
  %v2764 = vpop.f32.mrb[0].mxu0
  %v2765 = vpop.f32.mrb[0].mxu0
  %v2766 = vadd.f32 0.0, %v2765
  %v2767 = vpop.f32.mrb[0].mxu0
  %2768 = vdwg.mxu0
  %v2773 = vunpack.c.l.b16 %v2656
  %v2774 = vunpack.c.l.b16 %v2657
  %v2775 = vunpack.c.l.b16 %v2658
  %v2776 = vunpack.c.l.b16 %v2659
  %v2777 = vpack.c.b16 %v2774, %v2773
  %v2778 = vpack.c.b16 %v2776, %v2775
  %v2782 = vsel %vm511, %v2660, 0
  %v2785 = vsel %vm511, %v2661, 0
  %v2788 = vsel %vm511, %v2662, 0
  %v2791 = vsel %vm511, %v2663, 0
  %2793 = vmatprep.subr.bf16.mxu0 0
  %2794 = vmatpush1.bf16.msra.mxu0 %v2777
  %2795 = vmatprep.subr.bf16.mxu0 0
  %2796 = vmatpush1.bf16.msra.mxu0 %v2778
  %2797 = vmatprep.subr.bf16.mxu0 0
  %2798 = vmatpush1.bf16.msra.mxu0 0
  %2799 = vmatprep.subr.bf16.mxu0 0
  %2800 = vmatpush1.bf16.msra.mxu0 0
  %2801 = vmatprep.subr.bf16.mxu0 0
  %2802 = vmatpush1.bf16.msra.mxu0 0
  %2803 = vmatprep.subr.bf16.mxu0 0
  %2804 = vmatpush1.bf16.msra.mxu0 0
  %2805 = vmatprep.subr.bf16.mxu0 0
  %2806 = vmatpush1.bf16.msra.mxu0 0
  %2807 = vmatprep.subr.bf16.mxu0 0
  %2808 = vmatpush1.bf16.msra.mxu0 0
  %2809 = vmatprep.subr.bf16.mxu0 0
  %2810 = vmatpush1.bf16.msra.mxu0 0
  %2811 = vmatprep.subr.bf16.mxu0 0
  %2812 = vmatpush1.bf16.msra.mxu0 0
  %2813 = vmatprep.subr.bf16.mxu0 0
  %2814 = vmatpush1.bf16.msra.mxu0 0
  %2815 = vmatprep.subr.bf16.mxu0 0
  %2816 = vmatpush1.bf16.msra.mxu0 0
  %2817 = vmatprep.subr.bf16.mxu0 0
  %2818 = vmatpush1.bf16.msra.mxu0 0
  %2819 = vmatprep.subr.bf16.mxu0 0
  %2820 = vmatpush1.bf16.msra.mxu0 0
  %2821 = vmatprep.subr.bf16.mxu0 0
  %2822 = vmatpush1.bf16.msra.mxu0 0
  %2823 = vmatprep.subr.bf16.mxu0 0
  %2824 = vmatpush1.bf16.msra.mxu0 0
  %2825 = vmatprep.mubr.bf16.mxu0 0
  %2826 = vmatmul.mubr.bf16.gmra.mrb[0].mxu0 %v2782
  %v2827 = vpop.f32.mrb[0].mxu0
  %v2828 = vadd.f32 %v2739, %v2827
  %v2829 = vpop.f32.mrb[0].mxu0
  %v2830 = vpop.f32.mrb[0].mxu0
  %v2831 = vadd.f32 %v2742, %v2830
  %v2832 = vpop.f32.mrb[0].mxu0
  %2833 = vmatprep.mubr.bf16.mxu0 0
  %2834 = vmatmul.mubr.bf16.gmra.mrb[0].mxu0 %v2785
  %v2835 = vpop.f32.mrb[0].mxu0
  %v2836 = vadd.f32 %v2747, %v2835
  %v2837 = vpop.f32.mrb[0].mxu0
  %v2838 = vpop.f32.mrb[0].mxu0
  %v2839 = vadd.f32 %v2750, %v2838
  %v2840 = vpop.f32.mrb[0].mxu0
  %2841 = vmatprep.mubr.bf16.mxu0 0
  %2842 = vmatmul.mubr.bf16.gmra.mrb[0].mxu0 %v2788
  %v2843 = vpop.f32.mrb[0].mxu0
  %v2844 = vadd.f32 %v2755, %v2843
  %v2845 = vpop.f32.mrb[0].mxu0
  %v2846 = vpop.f32.mrb[0].mxu0
  %v2847 = vadd.f32 %v2758, %v2846
  %v2848 = vpop.f32.mrb[0].mxu0
  %2849 = vmatprep.mubr.bf16.mxu0 0
  %2850 = vmatmul.mubr.bf16.gmra.mrb[0].mxu0 %v2791
  %v2851 = vpop.f32.mrb[0].mxu0
  %v2852 = vadd.f32 %v2763, %v2851
  %v2853 = vpop.f32.mrb[0].mxu0
  %v2854 = vpop.f32.mrb[0].mxu0
  %v2855 = vadd.f32 %v2766, %v2854
  %v2856 = vpop.f32.mrb[0].mxu0
  %2857 = vdwg.mxu0
  %v2858 = vld [vmem:[%s13] sm:$0x1]
  %v2860 = vlaneseq
  %v2861 = vshrl.u32 %v2860, 7
  %v2862 = vsub.s32 0, %v2861
  %v2863 = vrot.slane %v2858, %v2862
  %v2865 = vadd.f32 %v2828, %v2863
  %v2866 = vadd.f32 %v2831, %v2863
  %v2867 = vadd.f32 %v2836, %v2863
  %v2868 = vadd.f32 %v2839, %v2863
  %v2869 = vadd.f32 %v2844, %v2863
  %v2870 = vadd.f32 %v2847, %v2863
  %v2871 = vadd.f32 %v2852, %v2863
  %v2872 = vadd.f32 %v2855, %v2863
  %2873 = vst [vmem:[%s14] sm:$0xff] %v2865
  %2874 = vst [vmem:[%s14 + $0x8] sm:$0xff] %v2866
  %2875 = vst [vmem:[%s14 + $0x10] sm:$0xff] %v2867
  %2876 = vst [vmem:[%s14 + $0x18] sm:$0xff] %v2868
  %2877 = vst [vmem:[%s14 + $0x20] sm:$0xff] %v2869
  %2878 = vst [vmem:[%s14 + $0x28] sm:$0xff] %v2870
  %2879 = vst [vmem:[%s14 + $0x30] sm:$0xff] %v2871
  %2880 = vst [vmem:[%s14 + $0x38] sm:$0xff] %v2872
  // Predicated region
  $region58: #{lstm_tagger_forward.1} parent=0 // pred_check
    _
  $region59: #{lstm_tagger_forward.1} parent=0 // pred_check_branch
    %2882 = sbr.rel (0) target = $region61
  $region60: #{lstm_tagger_forward.1} parent=0 // pred_region
    _
  $region61: #{lstm_tagger_forward.1} parent=0 // pred_fallthru
    _
  // Predicated region
  $region62: #{lstm_tagger_forward.1} parent=0 // pred_check
    _
  $region63: #{lstm_tagger_forward.1} parent=0 // pred_check_branch
    %2884 = sbr.rel (0) target = $region65
  $region64: #{lstm_tagger_forward.1} parent=0 // pred_region
    _
  $region65: #{lstm_tagger_forward.1} parent=0 // pred_fallthru
    _

</llo_original>
